<compile_context>
chip_gen: v5e
topology: v5e:2x2
jax: 0.10.0
libtpu: 0.0.40
codegen_flags: <defaults>
</compile_context>

<pallas_src>
import math

import jax
import jax.numpy as jnp
from jax.experimental import pallas as pl
from jax.experimental.pallas import tpu as pltpu

IN_DIMS = 4              # input_dims = (4,)
N_ACTIONS = 1            # forward() reshapes `action` to (B, 1)
IN_TOTAL = IN_DIMS + N_ACTIONS
HID = 256                # conv channels = fc1_dims = fc2_dims = 256
Q_PAD = 128              # q head Linear(256, 1) zero-padded to 128 lanes (unmasked stores)
TILE_B = 256             # batch tile: multiple of 256 for v6e/v7x MXU, of 128 for v5e


def critic_kernel(s_ref, a_ref,
                  w1_ref, b1_ref,      # conv1 (k=1) == Linear(IN_TOTAL, 256)   f32
                  w2_ref, b2_ref,      # conv2 (k=1) == Linear(256, 256)        bf16 / f32 bias
                  w3_ref, b3_ref,      # conv3 (k=1) == Linear(256, 256)        bf16 / f32 bias
                  wf1_ref, bf1_ref,    # fc1   Linear(256, 256)                 bf16 / f32 bias
                  wf2_ref, bf2_ref,    # fc2   Linear(256, 256)                 bf16 / f32 bias
                  wq_ref, bq_ref,      # q     Linear(256, 1) padded to (256,128)
                  out_ref):
    s = s_ref[...]                      # (TILE_B, IN_DIMS)   f32
    a = a_ref[...]                      # (TILE_B, N_ACTIONS) f32
    w1 = w1_ref[...]                    # (IN_TOTAL, 256)     f32

    # --- Layer 1 on the VPU: K=5 would use <2% of the MXU contraction depth, so do
    #     5 broadcast-FMAs instead (cat([state, action]) is folded into the two loops).
    h = b1_ref[...]                     # (1, 256) -> broadcasts up on first add
    for k in range(IN_DIMS):
        h = h + s[:, k:k + 1] * w1[k:k + 1, :]
    for j in range(N_ACTIONS):
        h = h + a[:, j:j + 1] * w1[IN_DIMS + j:IN_DIMS + j + 1, :]
    h = jnp.maximum(h, 0.0)             # relu (+ MaxPool1d(1,1) identity)

    def dense(hh, w_ref, b_ref):
        # bf16 operands on the MXU, f32 accumulation; bias add stays f32 on the VPU.
        return jnp.dot(hh.astype(jnp.bfloat16), w_ref[...],
                       preferred_element_type=jnp.float32) + b_ref[...]

    h = jnp.maximum(dense(h, w2_ref, b2_ref), 0.0)      # conv2 -> relu -> pool(id)
    h = jnp.maximum(dense(h, w3_ref, b3_ref), 0.0)      # conv3 -> relu -> pool(id)
    h = jnp.maximum(dense(h, wf1_ref, bf1_ref), 0.0)    # fc1 -> relu
    h = jnp.maximum(dense(h, wf2_ref, bf2_ref), 0.0)    # fc2 -> relu
    out_ref[...] = dense(h, wq_ref, bq_ref)             # q head, lane-padded to 128


def critic_forward(state, action, params, *, tile_b=TILE_B):
    """state: (B, IN_DIMS) f32, action: (B,) or (B, N_ACTIONS). Returns q: (B, 1) f32."""
    B = state.shape[0]
    state = state.astype(jnp.float32)
    action = action.reshape(B, N_ACTIONS).astype(jnp.float32)   # T.reshape(action, (B, 1))

    n_tiles = -(-B // tile_b)
    b_pad = n_tiles * tile_b
    if b_pad != B:
        state = jnp.pad(state, ((0, b_pad - B), (0, 0)))
        action = jnp.pad(action, ((0, b_pad - B), (0, 0)))

    def batched(cols):
        return pl.BlockSpec((tile_b, cols), lambda i: (i, 0))

    def resident(arr):
        # constant block index -> weight stays VMEM-resident across all grid steps
        return pl.BlockSpec(arr.shape, lambda i: (0, 0))

    in_specs = [batched(IN_DIMS), batched(N_ACTIONS)] + [resident(p) for p in params]
    out_specs = pl.BlockSpec((tile_b, Q_PAD), lambda i: (i, 0))

    w_bytes = sum(int(p.size) * p.dtype.itemsize for p in params)
    cost = pl.CostEstimate(
        flops=2 * b_pad * (IN_TOTAL * HID + 4 * HID * HID + HID * Q_PAD),
        transcendentals=0,
        bytes_accessed=b_pad * (IN_TOTAL + Q_PAD) * 4 + w_bytes,
    )

    q_padded = pl.pallas_call(
        critic_kernel,
        out_shape=jax.ShapeDtypeStruct((b_pad, Q_PAD), jnp.float32),
        grid=(n_tiles,),
        in_specs=in_specs,
        out_specs=out_specs,
        compiler_params=pltpu.CompilerParams(
            dimension_semantics=("parallel",),          # v7x: shard batch across both TCs
            vmem_limit_bytes=32 * 1024 * 1024,
        ),
        cost_estimate=cost,
    )(state, action, *params)

    return q_padded[:B, :1]


def _uniform(key, shape, fan_in, dtype=jnp.float32):
    """PyTorch-style uniform(-1/sqrt(fan_in), 1/sqrt(fan_in)) init."""
    bound = 1.0 / math.sqrt(float(fan_in))
    return jax.random.uniform(key, shape, jnp.float32, -bound, bound).astype(dtype)


def init_params(key):
    """Weights stored transposed, i.e. (in_features, out_features), so the kernel does x @ W + b."""
    ks = jax.random.split(key, 12)
    w1 = _uniform(ks[0], (IN_TOTAL, HID), IN_TOTAL)                      # conv1, f32 (VPU layer)
    b1 = _uniform(ks[1], (1, HID), IN_TOTAL)
    w2 = _uniform(ks[2], (HID, HID), HID, jnp.bfloat16)                  # conv2
    b2 = _uniform(ks[3], (1, HID), HID)
    w3 = _uniform(ks[4], (HID, HID), HID, jnp.bfloat16)                  # conv3
    b3 = _uniform(ks[5], (1, HID), HID)
    wf1 = _uniform(ks[6], (HID, HID), HID, jnp.bfloat16)                 # fc1
    bf1 = _uniform(ks[7], (1, HID), HID)
    wf2 = _uniform(ks[8], (HID, HID), HID, jnp.bfloat16)                 # fc2
    bf2 = _uniform(ks[9], (1, HID), HID)
    # q head Linear(256, 1), zero-padded to 128 output lanes for unmasked stores
    wq_col = _uniform(ks[10], (HID, 1), HID)
    wq = jnp.zeros((HID, Q_PAD), jnp.float32).at[:, :1].set(wq_col).astype(jnp.bfloat16)
    bq_col = _uniform(ks[11], (1, 1), HID)
    bq = jnp.zeros((1, Q_PAD), jnp.float32).at[:, :1].set(bq_col)
    return (w1, b1, w2, b2, w3, b3, wf1, bf1, wf2, bf2, wq, bq)


def reference_forward(state, action, params):
    """Pure-JAX reference of the same math (same bf16 matmul casting as the kernel)."""
    (w1, b1, w2, b2, w3, b3, wf1, bf1, wf2, bf2, wq, bq) = params
    B = state.shape[0]
    x = jnp.concatenate([state, action.reshape(B, N_ACTIONS)], axis=-1)
    h = b1
    for k in range(IN_TOTAL):
        h = h + x[:, k:k + 1] * w1[k:k + 1, :]
    h = jnp.maximum(h, 0.0)

    def d(hh, w, b):
        return jnp.dot(hh.astype(jnp.bfloat16), w, preferred_element_type=jnp.float32) + b

    h = jnp.maximum(d(h, w2, b2), 0.0)
    h = jnp.maximum(d(h, w3, b3), 0.0)
    h = jnp.maximum(d(h, wf1, bf1), 0.0)
    h = jnp.maximum(d(h, wf2, bf2), 0.0)
    q = d(h, wq, bq)
    return q[:, :1]


if __name__ == "__main__":
    key = jax.random.PRNGKey(0)
    k_params, k_s, k_a = jax.random.split(key, 3)

    params = init_params(k_params)

    # The PyTorch forward hardcodes T.reshape(action, (256, 1)), i.e. batch = 256.
    B = 256
    state = jax.random.normal(k_s, (B, IN_DIMS), jnp.float32)
    action = jax.random.normal(k_a, (B,), jnp.float32)

    q = critic_forward(state, action, params)
    q = jax.block_until_ready(q)

    ref = reference_forward(state, action, params)
    assert q.shape == (B, 1)
    assert bool(jnp.all(jnp.isfinite(q)))
    # bf16 MXU matmuls: allow small drift vs the (identically-cast) JAX reference.
    assert jnp.allclose(q, ref, atol=2e-2, rtol=2e-2), float(jnp.max(jnp.abs(q - ref)))

    print("KERNEL_OK")
</pallas_src>

<mosaic_0001>
module attributes {stable_mosaic.version = 11 : i64} {
  func.func @critic_kernel(%arg0: i32, %arg1: memref<256x4xf32, #tpu.memory_space<vmem>>, %arg2: memref<256x1xf32, #tpu.memory_space<vmem>>, %arg3: memref<5x256xf32, #tpu.memory_space<vmem>>, %arg4: memref<1x256xf32, #tpu.memory_space<vmem>>, %arg5: memref<256x256xbf16, #tpu.memory_space<vmem>>, %arg6: memref<1x256xf32, #tpu.memory_space<vmem>>, %arg7: memref<256x256xbf16, #tpu.memory_space<vmem>>, %arg8: memref<1x256xf32, #tpu.memory_space<vmem>>, %arg9: memref<256x256xbf16, #tpu.memory_space<vmem>>, %arg10: memref<1x256xf32, #tpu.memory_space<vmem>>, %arg11: memref<256x256xbf16, #tpu.memory_space<vmem>>, %arg12: memref<1x256xf32, #tpu.memory_space<vmem>>, %arg13: memref<256x128xbf16, #tpu.memory_space<vmem>>, %arg14: memref<1x128xf32, #tpu.memory_space<vmem>>, %arg15: memref<256x128xf32, #tpu.memory_space<vmem>>) attributes {dimension_semantics = [#tpu.dimension_semantics<parallel>], iteration_bounds = array<i64: 1>, scalar_prefetch = 0 : i64, scratch_operands = 0 : i64, tpu.core_type = #tpu.core_type<tc>, window_params = [{transform_indices = @transform_0, window_bounds = array<i64: 256, 4>}, {transform_indices = @transform_1, window_bounds = array<i64: 256, 1>}, {pipeline_mode = #tpu.pipeline_mode<synchronous>, transform_indices = @transform_2, window_bounds = array<i64: 5, 256>}, {pipeline_mode = #tpu.pipeline_mode<synchronous>, transform_indices = @transform_3, window_bounds = array<i64: 1, 256>}, {pipeline_mode = #tpu.pipeline_mode<synchronous>, transform_indices = @transform_4, window_bounds = array<i64: 256, 256>}, {pipeline_mode = #tpu.pipeline_mode<synchronous>, transform_indices = @transform_5, window_bounds = array<i64: 1, 256>}, {pipeline_mode = #tpu.pipeline_mode<synchronous>, transform_indices = @transform_6, window_bounds = array<i64: 256, 256>}, {pipeline_mode = #tpu.pipeline_mode<synchronous>, transform_indices = @transform_7, window_bounds = array<i64: 1, 256>}, {pipeline_mode = #tpu.pipeline_mode<synchronous>, transform_indices = @transform_8, window_bounds = array<i64: 256, 256>}, {pipeline_mode = #tpu.pipeline_mode<synchronous>, transform_indices = @transform_9, window_bounds = array<i64: 1, 256>}, {pipeline_mode = #tpu.pipeline_mode<synchronous>, transform_indices = @transform_10, window_bounds = array<i64: 256, 256>}, {pipeline_mode = #tpu.pipeline_mode<synchronous>, transform_indices = @transform_11, window_bounds = array<i64: 1, 256>}, {pipeline_mode = #tpu.pipeline_mode<synchronous>, transform_indices = @transform_12, window_bounds = array<i64: 256, 128>}, {pipeline_mode = #tpu.pipeline_mode<synchronous>, transform_indices = @transform_13, window_bounds = array<i64: 1, 128>}, {transform_indices = @transform_14, window_bounds = array<i64: 256, 128>}]} {
    %c0 = arith.constant 0 : index
    %c0_0 = arith.constant 0 : index
    %0 = vector.load %arg1[%c0, %c0_0] : memref<256x4xf32, #tpu.memory_space<vmem>>, vector<256x4xf32>
    %c0_1 = arith.constant 0 : index
    %c0_2 = arith.constant 0 : index
    %1 = vector.load %arg2[%c0_1, %c0_2] : memref<256x1xf32, #tpu.memory_space<vmem>>, vector<256x1xf32>
    %c0_3 = arith.constant 0 : index
    %c0_4 = arith.constant 0 : index
    %2 = vector.load %arg3[%c0_3, %c0_4] : memref<5x256xf32, #tpu.memory_space<vmem>>, vector<5x256xf32>
    %c0_5 = arith.constant 0 : index
    %c0_6 = arith.constant 0 : index
    %3 = vector.load %arg4[%c0_5, %c0_6] : memref<1x256xf32, #tpu.memory_space<vmem>>, vector<1x256xf32>
    %4 = vector.extract_strided_slice %0 {offsets = [0, 0], sizes = [256, 1], strides = [1, 1]} : vector<256x4xf32> to vector<256x1xf32>
    %5 = vector.extract_strided_slice %2 {offsets = [0, 0], sizes = [1, 256], strides = [1, 1]} : vector<5x256xf32> to vector<1x256xf32>
    %6 = vector.broadcast %4 : vector<256x1xf32> to vector<256x256xf32>
    %7 = vector.broadcast %5 : vector<1x256xf32> to vector<256x256xf32>
    %8 = arith.mulf %6, %7 : vector<256x256xf32>
    %9 = vector.broadcast %3 : vector<1x256xf32> to vector<256x256xf32>
    %10 = arith.addf %9, %8 : vector<256x256xf32>
    %11 = vector.extract_strided_slice %0 {offsets = [0, 1], sizes = [256, 1], strides = [1, 1]} : vector<256x4xf32> to vector<256x1xf32>
    %12 = vector.extract_strided_slice %2 {offsets = [1, 0], sizes = [1, 256], strides = [1, 1]} : vector<5x256xf32> to vector<1x256xf32>
    %13 = vector.broadcast %11 : vector<256x1xf32> to vector<256x256xf32>
    %14 = vector.broadcast %12 : vector<1x256xf32> to vector<256x256xf32>
    %15 = arith.mulf %13, %14 : vector<256x256xf32>
    %16 = arith.addf %10, %15 : vector<256x256xf32>
    %17 = vector.extract_strided_slice %0 {offsets = [0, 2], sizes = [256, 1], strides = [1, 1]} : vector<256x4xf32> to vector<256x1xf32>
    %18 = vector.extract_strided_slice %2 {offsets = [2, 0], sizes = [1, 256], strides = [1, 1]} : vector<5x256xf32> to vector<1x256xf32>
    %19 = vector.broadcast %17 : vector<256x1xf32> to vector<256x256xf32>
    %20 = vector.broadcast %18 : vector<1x256xf32> to vector<256x256xf32>
    %21 = arith.mulf %19, %20 : vector<256x256xf32>
    %22 = arith.addf %16, %21 : vector<256x256xf32>
    %23 = vector.extract_strided_slice %0 {offsets = [0, 3], sizes = [256, 1], strides = [1, 1]} : vector<256x4xf32> to vector<256x1xf32>
    %24 = vector.extract_strided_slice %2 {offsets = [3, 0], sizes = [1, 256], strides = [1, 1]} : vector<5x256xf32> to vector<1x256xf32>
    %25 = vector.broadcast %23 : vector<256x1xf32> to vector<256x256xf32>
    %26 = vector.broadcast %24 : vector<1x256xf32> to vector<256x256xf32>
    %27 = arith.mulf %25, %26 : vector<256x256xf32>
    %28 = arith.addf %22, %27 : vector<256x256xf32>
    %29 = vector.extract_strided_slice %2 {offsets = [4, 0], sizes = [1, 256], strides = [1, 1]} : vector<5x256xf32> to vector<1x256xf32>
    %30 = vector.broadcast %1 : vector<256x1xf32> to vector<256x256xf32>
    %31 = vector.broadcast %29 : vector<1x256xf32> to vector<256x256xf32>
    %32 = arith.mulf %30, %31 : vector<256x256xf32>
    %33 = arith.addf %28, %32 : vector<256x256xf32>
    %cst = arith.constant 0.000000e+00 : f32
    %34 = vector.broadcast %cst : f32 to vector<256x256xf32>
    %35 = arith.maximumf %33, %34 : vector<256x256xf32>
    %36 = arith.truncf %35 : vector<256x256xf32> to vector<256x256xbf16>
    %c0_7 = arith.constant 0 : index
    %c0_8 = arith.constant 0 : index
    %37 = vector.load %arg5[%c0_7, %c0_8] : memref<256x256xbf16, #tpu.memory_space<vmem>>, vector<256x256xbf16>
    %cst_9 = arith.constant dense<0.000000e+00> : vector<256x256xf32>
    %38 = tpu.matmul %36, %37, %cst_9 {dimension_numbers = #tpu.dot_dimension_numbers<[1], [0], [0], [1], [0, 0, 1, 1], [], []>} : vector<256x256xbf16>, vector<256x256xbf16>, vector<256x256xf32> -> vector<256x256xf32>
    %c0_10 = arith.constant 0 : index
    %c0_11 = arith.constant 0 : index
    %39 = vector.load %arg6[%c0_10, %c0_11] : memref<1x256xf32, #tpu.memory_space<vmem>>, vector<1x256xf32>
    %40 = vector.broadcast %39 : vector<1x256xf32> to vector<256x256xf32>
    %41 = arith.addf %38, %40 : vector<256x256xf32>
    %cst_12 = arith.constant 0.000000e+00 : f32
    %42 = vector.broadcast %cst_12 : f32 to vector<256x256xf32>
    %43 = arith.maximumf %41, %42 : vector<256x256xf32>
    %44 = arith.truncf %43 : vector<256x256xf32> to vector<256x256xbf16>
    %c0_13 = arith.constant 0 : index
    %c0_14 = arith.constant 0 : index
    %45 = vector.load %arg7[%c0_13, %c0_14] : memref<256x256xbf16, #tpu.memory_space<vmem>>, vector<256x256xbf16>
    %cst_15 = arith.constant dense<0.000000e+00> : vector<256x256xf32>
    %46 = tpu.matmul %44, %45, %cst_15 {dimension_numbers = #tpu.dot_dimension_numbers<[1], [0], [0], [1], [0, 0, 1, 1], [], []>} : vector<256x256xbf16>, vector<256x256xbf16>, vector<256x256xf32> -> vector<256x256xf32>
    %c0_16 = arith.constant 0 : index
    %c0_17 = arith.constant 0 : index
    %47 = vector.load %arg8[%c0_16, %c0_17] : memref<1x256xf32, #tpu.memory_space<vmem>>, vector<1x256xf32>
    %48 = vector.broadcast %47 : vector<1x256xf32> to vector<256x256xf32>
    %49 = arith.addf %46, %48 : vector<256x256xf32>
    %cst_18 = arith.constant 0.000000e+00 : f32
    %50 = vector.broadcast %cst_18 : f32 to vector<256x256xf32>
    %51 = arith.maximumf %49, %50 : vector<256x256xf32>
    %52 = arith.truncf %51 : vector<256x256xf32> to vector<256x256xbf16>
    %c0_19 = arith.constant 0 : index
    %c0_20 = arith.constant 0 : index
    %53 = vector.load %arg9[%c0_19, %c0_20] : memref<256x256xbf16, #tpu.memory_space<vmem>>, vector<256x256xbf16>
    %cst_21 = arith.constant dense<0.000000e+00> : vector<256x256xf32>
    %54 = tpu.matmul %52, %53, %cst_21 {dimension_numbers = #tpu.dot_dimension_numbers<[1], [0], [0], [1], [0, 0, 1, 1], [], []>} : vector<256x256xbf16>, vector<256x256xbf16>, vector<256x256xf32> -> vector<256x256xf32>
    %c0_22 = arith.constant 0 : index
    %c0_23 = arith.constant 0 : index
    %55 = vector.load %arg10[%c0_22, %c0_23] : memref<1x256xf32, #tpu.memory_space<vmem>>, vector<1x256xf32>
    %56 = vector.broadcast %55 : vector<1x256xf32> to vector<256x256xf32>
    %57 = arith.addf %54, %56 : vector<256x256xf32>
    %cst_24 = arith.constant 0.000000e+00 : f32
    %58 = vector.broadcast %cst_24 : f32 to vector<256x256xf32>
    %59 = arith.maximumf %57, %58 : vector<256x256xf32>
    %60 = arith.truncf %59 : vector<256x256xf32> to vector<256x256xbf16>
    %c0_25 = arith.constant 0 : index
    %c0_26 = arith.constant 0 : index
    %61 = vector.load %arg11[%c0_25, %c0_26] : memref<256x256xbf16, #tpu.memory_space<vmem>>, vector<256x256xbf16>
    %cst_27 = arith.constant dense<0.000000e+00> : vector<256x256xf32>
    %62 = tpu.matmul %60, %61, %cst_27 {dimension_numbers = #tpu.dot_dimension_numbers<[1], [0], [0], [1], [0, 0, 1, 1], [], []>} : vector<256x256xbf16>, vector<256x256xbf16>, vector<256x256xf32> -> vector<256x256xf32>
    %c0_28 = arith.constant 0 : index
    %c0_29 = arith.constant 0 : index
    %63 = vector.load %arg12[%c0_28, %c0_29] : memref<1x256xf32, #tpu.memory_space<vmem>>, vector<1x256xf32>
    %64 = vector.broadcast %63 : vector<1x256xf32> to vector<256x256xf32>
    %65 = arith.addf %62, %64 : vector<256x256xf32>
    %cst_30 = arith.constant 0.000000e+00 : f32
    %66 = vector.broadcast %cst_30 : f32 to vector<256x256xf32>
    %67 = arith.maximumf %65, %66 : vector<256x256xf32>
    %68 = arith.truncf %67 : vector<256x256xf32> to vector<256x256xbf16>
    %c0_31 = arith.constant 0 : index
    %c0_32 = arith.constant 0 : index
    %69 = vector.load %arg13[%c0_31, %c0_32] : memref<256x128xbf16, #tpu.memory_space<vmem>>, vector<256x128xbf16>
    %cst_33 = arith.constant dense<0.000000e+00> : vector<256x128xf32>
    %70 = tpu.matmul %68, %69, %cst_33 {dimension_numbers = #tpu.dot_dimension_numbers<[1], [0], [0], [1], [0, 0, 1, 1], [], []>} : vector<256x256xbf16>, vector<256x128xbf16>, vector<256x128xf32> -> vector<256x128xf32>
    %c0_34 = arith.constant 0 : index
    %c0_35 = arith.constant 0 : index
    %71 = vector.load %arg14[%c0_34, %c0_35] : memref<1x128xf32, #tpu.memory_space<vmem>>, vector<1x128xf32>
    %72 = vector.broadcast %71 : vector<1x128xf32> to vector<256x128xf32>
    %73 = arith.addf %70, %72 : vector<256x128xf32>
    %c0_36 = arith.constant 0 : index
    %c0_37 = arith.constant 0 : index
    %74 = vector.load %arg15[%c0_36, %c0_37] : memref<256x128xf32, #tpu.memory_space<vmem>>, vector<256x128xf32>
    tpu.vector_store %arg15[%c0_36, %c0_37], %73 {strides = array<i32>} : memref<256x128xf32, #tpu.memory_space<vmem>>, vector<256x128xf32>,
    return
  }
  func.func @transform_0(%arg0: i32) -> (i32, i32) {
    %c0_i32 = arith.constant 0 : i32
    %c0_i32_0 = arith.constant 0 : i32
    return %arg0, %c0_i32 : i32, i32
  }
  func.func @transform_1(%arg0: i32) -> (i32, i32) {
    %c0_i32 = arith.constant 0 : i32
    %c0_i32_0 = arith.constant 0 : i32
    return %arg0, %c0_i32 : i32, i32
  }
  func.func @transform_2(%arg0: i32) -> (i32, i32) {
    %c0_i32 = arith.constant 0 : i32
    %c0_i32_0 = arith.constant 0 : i32
    %c0_i32_1 = arith.constant 0 : i32
    return %c0_i32, %c0_i32_0 : i32, i32
  }
  func.func @transform_3(%arg0: i32) -> (i32, i32) {
    %c0_i32 = arith.constant 0 : i32
    %c0_i32_0 = arith.constant 0 : i32
    %c0_i32_1 = arith.constant 0 : i32
    return %c0_i32, %c0_i32_0 : i32, i32
  }
  func.func @transform_4(%arg0: i32) -> (i32, i32) {
    %c0_i32 = arith.constant 0 : i32
    %c0_i32_0 = arith.constant 0 : i32
    %c0_i32_1 = arith.constant 0 : i32
    return %c0_i32, %c0_i32_0 : i32, i32
  }
  func.func @transform_5(%arg0: i32) -> (i32, i32) {
    %c0_i32 = arith.constant 0 : i32
    %c0_i32_0 = arith.constant 0 : i32
    %c0_i32_1 = arith.constant 0 : i32
    return %c0_i32, %c0_i32_0 : i32, i32
  }
  func.func @transform_6(%arg0: i32) -> (i32, i32) {
    %c0_i32 = arith.constant 0 : i32
    %c0_i32_0 = arith.constant 0 : i32
    %c0_i32_1 = arith.constant 0 : i32
    return %c0_i32, %c0_i32_0 : i32, i32
  }
  func.func @transform_7(%arg0: i32) -> (i32, i32) {
    %c0_i32 = arith.constant 0 : i32
    %c0_i32_0 = arith.constant 0 : i32
    %c0_i32_1 = arith.constant 0 : i32
    return %c0_i32, %c0_i32_0 : i32, i32
  }
  func.func @transform_8(%arg0: i32) -> (i32, i32) {
    %c0_i32 = arith.constant 0 : i32
    %c0_i32_0 = arith.constant 0 : i32
    %c0_i32_1 = arith.constant 0 : i32
    return %c0_i32, %c0_i32_0 : i32, i32
  }
  func.func @transform_9(%arg0: i32) -> (i32, i32) {
    %c0_i32 = arith.constant 0 : i32
    %c0_i32_0 = arith.constant 0 : i32
    %c0_i32_1 = arith.constant 0 : i32
    return %c0_i32, %c0_i32_0 : i32, i32
  }
  func.func @transform_10(%arg0: i32) -> (i32, i32) {
    %c0_i32 = arith.constant 0 : i32
    %c0_i32_0 = arith.constant 0 : i32
    %c0_i32_1 = arith.constant 0 : i32
    return %c0_i32, %c0_i32_0 : i32, i32
  }
  func.func @transform_11(%arg0: i32) -> (i32, i32) {
    %c0_i32 = arith.constant 0 : i32
    %c0_i32_0 = arith.constant 0 : i32
    %c0_i32_1 = arith.constant 0 : i32
    return %c0_i32, %c0_i32_0 : i32, i32
  }
  func.func @transform_12(%arg0: i32) -> (i32, i32) {
    %c0_i32 = arith.constant 0 : i32
    %c0_i32_0 = arith.constant 0 : i32
    %c0_i32_1 = arith.constant 0 : i32
    return %c0_i32, %c0_i32_0 : i32, i32
  }
  func.func @transform_13(%arg0: i32) -> (i32, i32) {
    %c0_i32 = arith.constant 0 : i32
    %c0_i32_0 = arith.constant 0 : i32
    %c0_i32_1 = arith.constant 0 : i32
    return %c0_i32, %c0_i32_0 : i32, i32
  }
  func.func @transform_14(%arg0: i32) -> (i32, i32) {
    %c0_i32 = arith.constant 0 : i32
    %c0_i32_0 = arith.constant 0 : i32
    return %arg0, %c0_i32 : i32, i32
  }
}

</mosaic_0001>

<llo_original>
// kernel: tpu_custom_call.1
$region0: #{tpu_custom_call.1}
  #allocation0 [shape = 'u32[]', space=smem, size = 0x4, offset = 0x4, fixed_abs, tag = 'smem constant byte address 0x4 - core index']
  #allocation1 [shape = 'u32[72,128]{1,0:T(1,128)}', space=vmem, size = 0x9000, scoped, tag = 'internal scratch']
  %s0 = inlined_call_operand.vmem [shape: f32[256,4], index: 0, kind: input, shape index: {}]
  %s1 = inlined_call_operand.vmem [shape: f32[256,1], index: 1, kind: input, shape index: {}]
  %s2 = inlined_call_operand.hbm [shape: f32[5,256], index: 2, kind: input, shape index: {}]
  %s3 = inlined_call_operand.vmem [shape: f32[1,256], index: 3, kind: input, shape index: {}]
  %s4 = inlined_call_operand.vmem [shape: bf16[256,256], index: 4, kind: input, shape index: {}]
  %s5 = inlined_call_operand.vmem [shape: f32[1,256], index: 5, kind: input, shape index: {}]
  %s6 = inlined_call_operand.vmem [shape: bf16[256,256], index: 6, kind: input, shape index: {}]
  %s7 = inlined_call_operand.vmem [shape: f32[1,256], index: 7, kind: input, shape index: {}]
  %s8 = inlined_call_operand.hbm [shape: bf16[256,256], index: 8, kind: input, shape index: {}]
  %s9 = inlined_call_operand.vmem [shape: f32[1,256], index: 9, kind: input, shape index: {}]
  %s10 = inlined_call_operand.hbm [shape: bf16[256,256], index: 10, kind: input, shape index: {}]
  %s11 = inlined_call_operand.vmem [shape: f32[1,256], index: 11, kind: input, shape index: {}]
  %s12 = inlined_call_operand.hbm [shape: bf16[256,128], index: 12, kind: input, shape index: {}]
  %s13 = inlined_call_operand.vmem [shape: f32[1,128], index: 13, kind: input, shape index: {}]
  %s14 = inlined_call_operand.hbm [shape: f32[256,128], index: 14, kind: output, shape index: {}]
  %s15 = sld [smem:[#allocation0]]
  $region82: #{tpu_custom_call.1} parent=0
    _
  %s17 = ssub.s32 1, %s15
  %s18 = scalar_select 0, %s17, %s15
  $region1: #{tpu_custom_call.1} parent=0
    #allocation2 [shape = 'u8[8192]{0}', space=vmem, size = 0x2000, scoped, tag = 'input window, operand 2, single buffered']
    #allocation3 [shape = 's32[1]{0}', space=sflag, size = 0x4, scoped, tag = 'scoped memory for tpu_custom_call.1']
    #allocation4 [shape = 's32[1]{0}', space=sflag, size = 0x4, scoped, tag = 'scoped memory for tpu_custom_call.1']
    #allocation5 [shape = 'u8[131072]{0}', space=vmem, size = 0x20000, scoped, tag = 'input window, operand 8, single buffered']
    #allocation6 [shape = 's32[1]{0}', space=sflag, size = 0x4, scoped, tag = 'scoped memory for tpu_custom_call.1']
    #allocation7 [shape = 'u8[131072]{0}', space=vmem, size = 0x20000, scoped, tag = 'input window, operand 10, single buffered']
    #allocation8 [shape = 'u8[65536]{0}', space=vmem, size = 0x10000, scoped, tag = 'input window, operand 12, single buffered']
    #allocation9 [shape = 's32[1]{0}', space=sflag, size = 0x4, scoped, tag = 'scoped memory for tpu_custom_call.1']
    #allocation10 [shape = 'u8[131072]{0}', space=vmem, size = 0x20000, scoped, tag = 'output window, operand 0, single buffered']
    %19 = vsyncpa [#allocation3], 0
    %20 = vsyncpa [#allocation6], 0
    %21 = vsyncpa [#allocation9], 0
    %22 = vsyncpa [#allocation4], 0
    // Predicated region
    $region2: #{tpu_custom_call.1} parent=1 // pred_check
      _
    $region3: #{tpu_custom_call.1} parent=1 // pred_check_branch
      %24 = sbr.rel (0) target = $region5
    $region4: #{tpu_custom_call.1} parent=1 // pred_region
      _
    $region5: #{tpu_custom_call.1} parent=1 // pred_fallthru
      _
    // Predicated region
    $region6: #{tpu_custom_call.1} parent=1 // pred_check
      _
    $region7: #{tpu_custom_call.1} parent=1 // pred_check_branch
      %26 = sbr.rel (0) target = $region9
    $region8: #{tpu_custom_call.1} parent=1 // pred_region
      _
    $region9: #{tpu_custom_call.1} parent=1 // pred_fallthru
      _
    // Predicated region
    $region10: #{tpu_custom_call.1} parent=1 // pred_check
      _
    $region11: #{tpu_custom_call.1} parent=1 // pred_check_branch
      %28 = sbr.rel (0) target = $region13
    $region12: #{tpu_custom_call.1} parent=1 // pred_region
      %30 = vsyncadd [#allocation3], 0
      %s32 = sshll.u32 %s2, 4
      %s33 = int_to_ptr.hbm [resolvable:$true] %s32
      %s34 = sshll.u32 [#allocation2], 4
      %s35 = int_to_ptr.vmem [resolvable:$true] %s34
      %37 = dma.hbm_to_vmem [thread:$0]  %s33, 256, %s35, [#allocation3]
    $region13: #{tpu_custom_call.1} parent=1 // pred_fallthru
      _
    // Predicated region
    $region14: #{tpu_custom_call.1} parent=1 // pred_check
      _
    $region15: #{tpu_custom_call.1} parent=1 // pred_check_branch
      %39 = sbr.rel (0) target = $region17
    $region16: #{tpu_custom_call.1} parent=1 // pred_region
      _
    $region17: #{tpu_custom_call.1} parent=1 // pred_fallthru
      _
    // Predicated region
    $region18: #{tpu_custom_call.1} parent=1 // pred_check
      _
    $region19: #{tpu_custom_call.1} parent=1 // pred_check_branch
      %41 = sbr.rel (0) target = $region21
    $region20: #{tpu_custom_call.1} parent=1 // pred_region
      _
    $region21: #{tpu_custom_call.1} parent=1 // pred_fallthru
      _
    // Predicated region
    $region22: #{tpu_custom_call.1} parent=1 // pred_check
      _
    $region23: #{tpu_custom_call.1} parent=1 // pred_check_branch
      %43 = sbr.rel (0) target = $region25
    $region24: #{tpu_custom_call.1} parent=1 // pred_region
      _
    $region25: #{tpu_custom_call.1} parent=1 // pred_fallthru
      _
    // Predicated region
    $region26: #{tpu_custom_call.1} parent=1 // pred_check
      _
    $region27: #{tpu_custom_call.1} parent=1 // pred_check_branch
      %45 = sbr.rel (0) target = $region29
    $region28: #{tpu_custom_call.1} parent=1 // pred_region
      _
    $region29: #{tpu_custom_call.1} parent=1 // pred_fallthru
      _
    // Predicated region
    $region30: #{tpu_custom_call.1} parent=1 // pred_check
      _
    $region31: #{tpu_custom_call.1} parent=1 // pred_check_branch
      %47 = sbr.rel (0) target = $region33
    $region32: #{tpu_custom_call.1} parent=1 // pred_region
      _
    $region33: #{tpu_custom_call.1} parent=1 // pred_fallthru
      _
    // Predicated region
    $region34: #{tpu_custom_call.1} parent=1 // pred_check
      _
    $region35: #{tpu_custom_call.1} parent=1 // pred_check_branch
      %49 = sbr.rel (0) target = $region37
    $region36: #{tpu_custom_call.1} parent=1 // pred_region
      %51 = vsyncadd [#allocation6], 0
      %s52 = sshll.u32 %s8, 4
      %s53 = int_to_ptr.hbm [resolvable:$true] %s52
      %s54 = sshll.u32 [#allocation5], 4
      %s55 = int_to_ptr.vmem [resolvable:$true] %s54
      %60 = dma.hbm_to_vmem [thread:$0]  %s53, 4096, %s55, [#allocation6], 128, 128, 8
    $region37: #{tpu_custom_call.1} parent=1 // pred_fallthru
      _
    // Predicated region
    $region38: #{tpu_custom_call.1} parent=1 // pred_check
      _
    $region39: #{tpu_custom_call.1} parent=1 // pred_check_branch
      %62 = sbr.rel (0) target = $region41
    $region40: #{tpu_custom_call.1} parent=1 // pred_region
      _
    $region41: #{tpu_custom_call.1} parent=1 // pred_fallthru
      _
    // Predicated region
    $region42: #{tpu_custom_call.1} parent=1 // pred_check
      _
    $region43: #{tpu_custom_call.1} parent=1 // pred_check_branch
      %64 = sbr.rel (0) target = $region45
    $region44: #{tpu_custom_call.1} parent=1 // pred_region
      %66 = vsyncadd [#allocation6], 0
      %s67 = sshll.u32 %s10, 4
      %s68 = int_to_ptr.hbm [resolvable:$true] %s67
      %s69 = sshll.u32 [#allocation7], 4
      %s70 = int_to_ptr.vmem [resolvable:$true] %s69
      %75 = dma.hbm_to_vmem [thread:$0]  %s68, 4096, %s70, [#allocation6], 128, 128, 8
    $region45: #{tpu_custom_call.1} parent=1 // pred_fallthru
      _
    // Predicated region
    $region46: #{tpu_custom_call.1} parent=1 // pred_check
      _
    $region47: #{tpu_custom_call.1} parent=1 // pred_check_branch
      %77 = sbr.rel (0) target = $region49
    $region48: #{tpu_custom_call.1} parent=1 // pred_region
      _
    $region49: #{tpu_custom_call.1} parent=1 // pred_fallthru
      _
    // Predicated region
    $region50: #{tpu_custom_call.1} parent=1 // pred_check
      _
    $region51: #{tpu_custom_call.1} parent=1 // pred_check_branch
      %79 = sbr.rel (0) target = $region53
    $region52: #{tpu_custom_call.1} parent=1 // pred_region
      %81 = vsyncadd [#allocation9], 0
      %s82 = sshll.u32 %s12, 4
      %s83 = int_to_ptr.hbm [resolvable:$true] %s82
      %s84 = sshll.u32 [#allocation8], 4
      %s85 = int_to_ptr.vmem [resolvable:$true] %s84
      %90 = dma.hbm_to_vmem [thread:$0]  %s83, 2048, %s85, [#allocation9], 64, 64, 4
    $region53: #{tpu_custom_call.1} parent=1 // pred_fallthru
      _
    // Predicated region
    $region54: #{tpu_custom_call.1} parent=1 // pred_check
      _
    $region55: #{tpu_custom_call.1} parent=1 // pred_check_branch
      %92 = sbr.rel (0) target = $region57
    $region56: #{tpu_custom_call.1} parent=1 // pred_region
      _
    $region57: #{tpu_custom_call.1} parent=1 // pred_fallthru
      _
    // Predicated region
    $region58: #{tpu_custom_call.1} parent=1 // pred_check
      _
    $region59: #{tpu_custom_call.1} parent=1 // pred_check_branch
      %94 = sbr.rel (0) target = $region61
    $region60: #{tpu_custom_call.1} parent=1 // pred_region
      %96 = dma.done [#allocation3], 256
    $region61: #{tpu_custom_call.1} parent=1 // pred_fallthru
      _
    // Predicated region
    $region62: #{tpu_custom_call.1} parent=1 // pred_check
      _
    $region63: #{tpu_custom_call.1} parent=1 // pred_check_branch
      %98 = sbr.rel (0) target = $region65
    $region64: #{tpu_custom_call.1} parent=1 // pred_region
      %100 = dma.done [#allocation6], 4096
    $region65: #{tpu_custom_call.1} parent=1 // pred_fallthru
      _
    // Predicated region
    $region66: #{tpu_custom_call.1} parent=1 // pred_check
      _
    $region67: #{tpu_custom_call.1} parent=1 // pred_check_branch
      %102 = sbr.rel (0) target = $region69
    $region68: #{tpu_custom_call.1} parent=1 // pred_region
      %104 = dma.done [#allocation6], 4096
    $region69: #{tpu_custom_call.1} parent=1 // pred_fallthru
      _
    // Predicated region
    $region70: #{tpu_custom_call.1} parent=1 // pred_check
      _
    $region71: #{tpu_custom_call.1} parent=1 // pred_check_branch
      %106 = sbr.rel (0) target = $region73
    $region72: #{tpu_custom_call.1} parent=1 // pred_region
      %108 = dma.done [#allocation9], 2048
    $region73: #{tpu_custom_call.1} parent=1 // pred_fallthru
      _
    %v109 = vld [vmem:[%s0] sm:$0xff]
    %v110 = vld [vmem:[%s0 + $0x8] sm:$0xff]
    %v111 = vld [vmem:[%s0 + $0x10] sm:$0xff]
    %v112 = vld [vmem:[%s0 + $0x18] sm:$0xff]
    %v113 = vld [vmem:[%s0 + $0x20] sm:$0xff]
    %v114 = vld [vmem:[%s0 + $0x28] sm:$0xff]
    %v115 = vld [vmem:[%s0 + $0x30] sm:$0xff]
    %v116 = vld [vmem:[%s0 + $0x38] sm:$0xff]
    %v117 = vld [vmem:[%s0 + $0x40] sm:$0xff]
    %v118 = vld [vmem:[%s0 + $0x48] sm:$0xff]
    %v119 = vld [vmem:[%s0 + $0x50] sm:$0xff]
    %v120 = vld [vmem:[%s0 + $0x58] sm:$0xff]
    %v121 = vld [vmem:[%s0 + $0x60] sm:$0xff]
    %v122 = vld [vmem:[%s0 + $0x68] sm:$0xff]
    %v123 = vld [vmem:[%s0 + $0x70] sm:$0xff]
    %v124 = vld [vmem:[%s0 + $0x78] sm:$0xff]
    %v125 = vld [vmem:[%s0 + $0x80] sm:$0xff]
    %v126 = vld [vmem:[%s0 + $0x88] sm:$0xff]
    %v127 = vld [vmem:[%s0 + $0x90] sm:$0xff]
    %v128 = vld [vmem:[%s0 + $0x98] sm:$0xff]
    %v129 = vld [vmem:[%s0 + $0xa0] sm:$0xff]
    %v130 = vld [vmem:[%s0 + $0xa8] sm:$0xff]
    %v131 = vld [vmem:[%s0 + $0xb0] sm:$0xff]
    %v132 = vld [vmem:[%s0 + $0xb8] sm:$0xff]
    %v133 = vld [vmem:[%s0 + $0xc0] sm:$0xff]
    %v134 = vld [vmem:[%s0 + $0xc8] sm:$0xff]
    %v135 = vld [vmem:[%s0 + $0xd0] sm:$0xff]
    %v136 = vld [vmem:[%s0 + $0xd8] sm:$0xff]
    %v137 = vld [vmem:[%s0 + $0xe0] sm:$0xff]
    %v138 = vld [vmem:[%s0 + $0xe8] sm:$0xff]
    %v139 = vld [vmem:[%s0 + $0xf0] sm:$0xff]
    %v140 = vld [vmem:[%s0 + $0xf8] sm:$0xff]
    %v141 = vld [vmem:[%s1] sm:$0xff]
    %v142 = vld [vmem:[%s1 + $0x8] sm:$0xff]
    %v143 = vld [vmem:[%s1 + $0x10] sm:$0xff]
    %v144 = vld [vmem:[%s1 + $0x18] sm:$0xff]
    %v145 = vld [vmem:[%s1 + $0x20] sm:$0xff]
    %v146 = vld [vmem:[%s1 + $0x28] sm:$0xff]
    %v147 = vld [vmem:[%s1 + $0x30] sm:$0xff]
    %v148 = vld [vmem:[%s1 + $0x38] sm:$0xff]
    %v149 = vld [vmem:[%s1 + $0x40] sm:$0xff]
    %v150 = vld [vmem:[%s1 + $0x48] sm:$0xff]
    %v151 = vld [vmem:[%s1 + $0x50] sm:$0xff]
    %v152 = vld [vmem:[%s1 + $0x58] sm:$0xff]
    %v153 = vld [vmem:[%s1 + $0x60] sm:$0xff]
    %v154 = vld [vmem:[%s1 + $0x68] sm:$0xff]
    %v155 = vld [vmem:[%s1 + $0x70] sm:$0xff]
    %v156 = vld [vmem:[%s1 + $0x78] sm:$0xff]
    %v157 = vld [vmem:[%s1 + $0x80] sm:$0xff]
    %v158 = vld [vmem:[%s1 + $0x88] sm:$0xff]
    %v159 = vld [vmem:[%s1 + $0x90] sm:$0xff]
    %v160 = vld [vmem:[%s1 + $0x98] sm:$0xff]
    %v161 = vld [vmem:[%s1 + $0xa0] sm:$0xff]
    %v162 = vld [vmem:[%s1 + $0xa8] sm:$0xff]
    %v163 = vld [vmem:[%s1 + $0xb0] sm:$0xff]
    %v164 = vld [vmem:[%s1 + $0xb8] sm:$0xff]
    %v165 = vld [vmem:[%s1 + $0xc0] sm:$0xff]
    %v166 = vld [vmem:[%s1 + $0xc8] sm:$0xff]
    %v167 = vld [vmem:[%s1 + $0xd0] sm:$0xff]
    %v168 = vld [vmem:[%s1 + $0xd8] sm:$0xff]
    %v169 = vld [vmem:[%s1 + $0xe0] sm:$0xff]
    %v170 = vld [vmem:[%s1 + $0xe8] sm:$0xff]
    %v171 = vld [vmem:[%s1 + $0xf0] sm:$0xff]
    %v172 = vld [vmem:[%s1 + $0xf8] sm:$0xff]
    %v173 = vld [vmem:[#allocation2] sm:$0x1f]
    %v174 = vld [vmem:[#allocation2 + $0x8] sm:$0x1f]
    %v175 = vld [vmem:[%s3] sm:$0x3]
    %177 = vset.pattern.permute.xlu0 0
    %178 = vperm.xlu0 %177, %v109
    %v179 = vpop.permute.xlu0 %178
    %182 = vset.pattern.permute.xlu0 0
    %183 = vperm.xlu0 %182, %v110
    %v184 = vpop.permute.xlu0 %183
    %187 = vset.pattern.permute.xlu0 0
    %188 = vperm.xlu0 %187, %v111
    %v189 = vpop.permute.xlu0 %188
    %192 = vset.pattern.permute.xlu0 0
    %193 = vperm.xlu0 %192, %v112
    %v194 = vpop.permute.xlu0 %193
    %197 = vset.pattern.permute.xlu0 0
    %198 = vperm.xlu0 %197, %v113
    %v199 = vpop.permute.xlu0 %198
    %202 = vset.pattern.permute.xlu0 0
    %203 = vperm.xlu0 %202, %v114
    %v204 = vpop.permute.xlu0 %203
    %207 = vset.pattern.permute.xlu0 0
    %208 = vperm.xlu0 %207, %v115
    %v209 = vpop.permute.xlu0 %208
    %212 = vset.pattern.permute.xlu0 0
    %213 = vperm.xlu0 %212, %v116
    %v214 = vpop.permute.xlu0 %213
    %217 = vset.pattern.permute.xlu0 0
    %218 = vperm.xlu0 %217, %v117
    %v219 = vpop.permute.xlu0 %218
    %222 = vset.pattern.permute.xlu0 0
    %223 = vperm.xlu0 %222, %v118
    %v224 = vpop.permute.xlu0 %223
    %227 = vset.pattern.permute.xlu0 0
    %228 = vperm.xlu0 %227, %v119
    %v229 = vpop.permute.xlu0 %228
    %232 = vset.pattern.permute.xlu0 0
    %233 = vperm.xlu0 %232, %v120
    %v234 = vpop.permute.xlu0 %233
    %237 = vset.pattern.permute.xlu0 0
    %238 = vperm.xlu0 %237, %v121
    %v239 = vpop.permute.xlu0 %238
    %242 = vset.pattern.permute.xlu0 0
    %243 = vperm.xlu0 %242, %v122
    %v244 = vpop.permute.xlu0 %243
    %247 = vset.pattern.permute.xlu0 0
    %248 = vperm.xlu0 %247, %v123
    %v249 = vpop.permute.xlu0 %248
    %252 = vset.pattern.permute.xlu0 0
    %253 = vperm.xlu0 %252, %v124
    %v254 = vpop.permute.xlu0 %253
    %257 = vset.pattern.permute.xlu0 0
    %258 = vperm.xlu0 %257, %v125
    %v259 = vpop.permute.xlu0 %258
    %262 = vset.pattern.permute.xlu0 0
    %263 = vperm.xlu0 %262, %v126
    %v264 = vpop.permute.xlu0 %263
    %267 = vset.pattern.permute.xlu0 0
    %268 = vperm.xlu0 %267, %v127
    %v269 = vpop.permute.xlu0 %268
    %272 = vset.pattern.permute.xlu0 0
    %273 = vperm.xlu0 %272, %v128
    %v274 = vpop.permute.xlu0 %273
    %277 = vset.pattern.permute.xlu0 0
    %278 = vperm.xlu0 %277, %v129
    %v279 = vpop.permute.xlu0 %278
    %282 = vset.pattern.permute.xlu0 0
    %283 = vperm.xlu0 %282, %v130
    %v284 = vpop.permute.xlu0 %283
    %287 = vset.pattern.permute.xlu0 0
    %288 = vperm.xlu0 %287, %v131
    %v289 = vpop.permute.xlu0 %288
    %292 = vset.pattern.permute.xlu0 0
    %293 = vperm.xlu0 %292, %v132
    %v294 = vpop.permute.xlu0 %293
    %297 = vset.pattern.permute.xlu0 0
    %298 = vperm.xlu0 %297, %v133
    %v299 = vpop.permute.xlu0 %298
    %302 = vset.pattern.permute.xlu0 0
    %303 = vperm.xlu0 %302, %v134
    %v304 = vpop.permute.xlu0 %303
    %307 = vset.pattern.permute.xlu0 0
    %308 = vperm.xlu0 %307, %v135
    %v309 = vpop.permute.xlu0 %308
    %312 = vset.pattern.permute.xlu0 0
    %313 = vperm.xlu0 %312, %v136
    %v314 = vpop.permute.xlu0 %313
    %317 = vset.pattern.permute.xlu0 0
    %318 = vperm.xlu0 %317, %v137
    %v319 = vpop.permute.xlu0 %318
    %322 = vset.pattern.permute.xlu0 0
    %323 = vperm.xlu0 %322, %v138
    %v324 = vpop.permute.xlu0 %323
    %327 = vset.pattern.permute.xlu0 0
    %328 = vperm.xlu0 %327, %v139
    %v329 = vpop.permute.xlu0 %328
    %332 = vset.pattern.permute.xlu0 0
    %333 = vperm.xlu0 %332, %v140
    %v334 = vpop.permute.xlu0 %333
    %v336 = vperm.slane %v173, 0
    %v337 = vperm.slane %v174, 0
    %v338 = vmul.f32 %v179, %v336
    %v339 = vmul.f32 %v179, %v337
    %v340 = vmul.f32 %v184, %v336
    %v341 = vmul.f32 %v184, %v337
    %v342 = vmul.f32 %v189, %v336
    %v343 = vmul.f32 %v189, %v337
    %v344 = vmul.f32 %v194, %v336
    %v345 = vmul.f32 %v194, %v337
    %v346 = vmul.f32 %v199, %v336
    %v347 = vmul.f32 %v199, %v337
    %v348 = vmul.f32 %v204, %v336
    %v349 = vmul.f32 %v204, %v337
    %v350 = vmul.f32 %v209, %v336
    %v351 = vmul.f32 %v209, %v337
    %v352 = vmul.f32 %v214, %v336
    %v353 = vmul.f32 %v214, %v337
    %v354 = vmul.f32 %v219, %v336
    %v355 = vmul.f32 %v219, %v337
    %v356 = vmul.f32 %v224, %v336
    %v357 = vmul.f32 %v224, %v337
    %v358 = vmul.f32 %v229, %v336
    %v359 = vmul.f32 %v229, %v337
    %v360 = vmul.f32 %v234, %v336
    %v361 = vmul.f32 %v234, %v337
    %v362 = vmul.f32 %v239, %v336
    %v363 = vmul.f32 %v239, %v337
    %v364 = vmul.f32 %v244, %v336
    %v365 = vmul.f32 %v244, %v337
    %v366 = vmul.f32 %v249, %v336
    %v367 = vmul.f32 %v249, %v337
    %v368 = vmul.f32 %v254, %v336
    %v369 = vmul.f32 %v254, %v337
    %v370 = vmul.f32 %v259, %v336
    %v371 = vmul.f32 %v259, %v337
    %v372 = vmul.f32 %v264, %v336
    %v373 = vmul.f32 %v264, %v337
    %v374 = vmul.f32 %v269, %v336
    %v375 = vmul.f32 %v269, %v337
    %v376 = vmul.f32 %v274, %v336
    %v377 = vmul.f32 %v274, %v337
    %v378 = vmul.f32 %v279, %v336
    %v379 = vmul.f32 %v279, %v337
    %v380 = vmul.f32 %v284, %v336
    %v381 = vmul.f32 %v284, %v337
    %v382 = vmul.f32 %v289, %v336
    %v383 = vmul.f32 %v289, %v337
    %v384 = vmul.f32 %v294, %v336
    %v385 = vmul.f32 %v294, %v337
    %v386 = vmul.f32 %v299, %v336
    %v387 = vmul.f32 %v299, %v337
    %v388 = vmul.f32 %v304, %v336
    %v389 = vmul.f32 %v304, %v337
    %v390 = vmul.f32 %v309, %v336
    %v391 = vmul.f32 %v309, %v337
    %v392 = vmul.f32 %v314, %v336
    %v393 = vmul.f32 %v314, %v337
    %v394 = vmul.f32 %v319, %v336
    %v395 = vmul.f32 %v319, %v337
    %v396 = vmul.f32 %v324, %v336
    %v397 = vmul.f32 %v324, %v337
    %v398 = vmul.f32 %v329, %v336
    %v399 = vmul.f32 %v329, %v337
    %v400 = vmul.f32 %v334, %v336
    %v401 = vmul.f32 %v334, %v337
    %v403 = vperm.slane %v175, 0
    %v404 = vperm.slane %v175, 1
    %v407 = vadd.f32 %v403, %v338
    %v408 = vadd.f32 %v404, %v339
    %v409 = vadd.f32 %v403, %v340
    %v410 = vadd.f32 %v404, %v341
    %v411 = vadd.f32 %v403, %v342
    %v412 = vadd.f32 %v404, %v343
    %v413 = vadd.f32 %v403, %v344
    %v414 = vadd.f32 %v404, %v345
    %v415 = vadd.f32 %v403, %v346
    %v416 = vadd.f32 %v404, %v347
    %v417 = vadd.f32 %v403, %v348
    %v418 = vadd.f32 %v404, %v349
    %v419 = vadd.f32 %v403, %v350
    %v420 = vadd.f32 %v404, %v351
    %v421 = vadd.f32 %v403, %v352
    %v422 = vadd.f32 %v404, %v353
    %v423 = vadd.f32 %v403, %v354
    %v424 = vadd.f32 %v404, %v355
    %v425 = vadd.f32 %v403, %v356
    %v426 = vadd.f32 %v404, %v357
    %v427 = vadd.f32 %v403, %v358
    %v428 = vadd.f32 %v404, %v359
    %v429 = vadd.f32 %v403, %v360
    %v430 = vadd.f32 %v404, %v361
    %v431 = vadd.f32 %v403, %v362
    %v432 = vadd.f32 %v404, %v363
    %v433 = vadd.f32 %v403, %v364
    %v434 = vadd.f32 %v404, %v365
    %v435 = vadd.f32 %v403, %v366
    %v436 = vadd.f32 %v404, %v367
    %v437 = vadd.f32 %v403, %v368
    %v438 = vadd.f32 %v404, %v369
    %v439 = vadd.f32 %v403, %v370
    %v440 = vadd.f32 %v404, %v371
    %v441 = vadd.f32 %v403, %v372
    %v442 = vadd.f32 %v404, %v373
    %v443 = vadd.f32 %v403, %v374
    %v444 = vadd.f32 %v404, %v375
    %v445 = vadd.f32 %v403, %v376
    %v446 = vadd.f32 %v404, %v377
    %v447 = vadd.f32 %v403, %v378
    %v448 = vadd.f32 %v404, %v379
    %v449 = vadd.f32 %v403, %v380
    %v450 = vadd.f32 %v404, %v381
    %v451 = vadd.f32 %v403, %v382
    %v452 = vadd.f32 %v404, %v383
    %v453 = vadd.f32 %v403, %v384
    %v454 = vadd.f32 %v404, %v385
    %v455 = vadd.f32 %v403, %v386
    %v456 = vadd.f32 %v404, %v387
    %v457 = vadd.f32 %v403, %v388
    %v458 = vadd.f32 %v404, %v389
    %v459 = vadd.f32 %v403, %v390
    %v460 = vadd.f32 %v404, %v391
    %v461 = vadd.f32 %v403, %v392
    %v462 = vadd.f32 %v404, %v393
    %v463 = vadd.f32 %v403, %v394
    %v464 = vadd.f32 %v404, %v395
    %v465 = vadd.f32 %v403, %v396
    %v466 = vadd.f32 %v404, %v397
    %v467 = vadd.f32 %v403, %v398
    %v468 = vadd.f32 %v404, %v399
    %v469 = vadd.f32 %v403, %v400
    %v470 = vadd.f32 %v404, %v401
    %471 = vset.pattern.permute.xlu0 1
    %472 = vperm.xlu0 %471, %v109
    %v473 = vpop.permute.xlu0 %472
    %475 = vset.pattern.permute.xlu0 1
    %476 = vperm.xlu0 %475, %v110
    %v477 = vpop.permute.xlu0 %476
    %479 = vset.pattern.permute.xlu0 1
    %480 = vperm.xlu0 %479, %v111
    %v481 = vpop.permute.xlu0 %480
    %483 = vset.pattern.permute.xlu0 1
    %484 = vperm.xlu0 %483, %v112
    %v485 = vpop.permute.xlu0 %484
    %487 = vset.pattern.permute.xlu0 1
    %488 = vperm.xlu0 %487, %v113
    %v489 = vpop.permute.xlu0 %488
    %491 = vset.pattern.permute.xlu0 1
    %492 = vperm.xlu0 %491, %v114
    %v493 = vpop.permute.xlu0 %492
    %495 = vset.pattern.permute.xlu0 1
    %496 = vperm.xlu0 %495, %v115
    %v497 = vpop.permute.xlu0 %496
    %499 = vset.pattern.permute.xlu0 1
    %500 = vperm.xlu0 %499, %v116
    %v501 = vpop.permute.xlu0 %500
    %503 = vset.pattern.permute.xlu0 1
    %504 = vperm.xlu0 %503, %v117
    %v505 = vpop.permute.xlu0 %504
    %507 = vset.pattern.permute.xlu0 1
    %508 = vperm.xlu0 %507, %v118
    %v509 = vpop.permute.xlu0 %508
    %511 = vset.pattern.permute.xlu0 1
    %512 = vperm.xlu0 %511, %v119
    %v513 = vpop.permute.xlu0 %512
    %515 = vset.pattern.permute.xlu0 1
    %516 = vperm.xlu0 %515, %v120
    %v517 = vpop.permute.xlu0 %516
    %519 = vset.pattern.permute.xlu0 1
    %520 = vperm.xlu0 %519, %v121
    %v521 = vpop.permute.xlu0 %520
    %523 = vset.pattern.permute.xlu0 1
    %524 = vperm.xlu0 %523, %v122
    %v525 = vpop.permute.xlu0 %524
    %527 = vset.pattern.permute.xlu0 1
    %528 = vperm.xlu0 %527, %v123
    %v529 = vpop.permute.xlu0 %528
    %531 = vset.pattern.permute.xlu0 1
    %532 = vperm.xlu0 %531, %v124
    %v533 = vpop.permute.xlu0 %532
    %535 = vset.pattern.permute.xlu0 1
    %536 = vperm.xlu0 %535, %v125
    %v537 = vpop.permute.xlu0 %536
    %539 = vset.pattern.permute.xlu0 1
    %540 = vperm.xlu0 %539, %v126
    %v541 = vpop.permute.xlu0 %540
    %543 = vset.pattern.permute.xlu0 1
    %544 = vperm.xlu0 %543, %v127
    %v545 = vpop.permute.xlu0 %544
    %547 = vset.pattern.permute.xlu0 1
    %548 = vperm.xlu0 %547, %v128
    %v549 = vpop.permute.xlu0 %548
    %551 = vset.pattern.permute.xlu0 1
    %552 = vperm.xlu0 %551, %v129
    %v553 = vpop.permute.xlu0 %552
    %555 = vset.pattern.permute.xlu0 1
    %556 = vperm.xlu0 %555, %v130
    %v557 = vpop.permute.xlu0 %556
    %559 = vset.pattern.permute.xlu0 1
    %560 = vperm.xlu0 %559, %v131
    %v561 = vpop.permute.xlu0 %560
    %563 = vset.pattern.permute.xlu0 1
    %564 = vperm.xlu0 %563, %v132
    %v565 = vpop.permute.xlu0 %564
    %567 = vset.pattern.permute.xlu0 1
    %568 = vperm.xlu0 %567, %v133
    %v569 = vpop.permute.xlu0 %568
    %571 = vset.pattern.permute.xlu0 1
    %572 = vperm.xlu0 %571, %v134
    %v573 = vpop.permute.xlu0 %572
    %575 = vset.pattern.permute.xlu0 1
    %576 = vperm.xlu0 %575, %v135
    %v577 = vpop.permute.xlu0 %576
    %579 = vset.pattern.permute.xlu0 1
    %580 = vperm.xlu0 %579, %v136
    %v581 = vpop.permute.xlu0 %580
    %583 = vset.pattern.permute.xlu0 1
    %584 = vperm.xlu0 %583, %v137
    %v585 = vpop.permute.xlu0 %584
    %587 = vset.pattern.permute.xlu0 1
    %588 = vperm.xlu0 %587, %v138
    %v589 = vpop.permute.xlu0 %588
    %591 = vset.pattern.permute.xlu0 1
    %592 = vperm.xlu0 %591, %v139
    %v593 = vpop.permute.xlu0 %592
    %595 = vset.pattern.permute.xlu0 1
    %596 = vperm.xlu0 %595, %v140
    %v597 = vpop.permute.xlu0 %596
    %v599 = vperm.slane %v173, 1
    %v600 = vperm.slane %v174, 1
    %v601 = vmul.f32 %v473, %v599
    %v602 = vmul.f32 %v473, %v600
    %v603 = vmul.f32 %v477, %v599
    %v604 = vmul.f32 %v477, %v600
    %v605 = vmul.f32 %v481, %v599
    %v606 = vmul.f32 %v481, %v600
    %v607 = vmul.f32 %v485, %v599
    %v608 = vmul.f32 %v485, %v600
    %v609 = vmul.f32 %v489, %v599
    %v610 = vmul.f32 %v489, %v600
    %v611 = vmul.f32 %v493, %v599
    %v612 = vmul.f32 %v493, %v600
    %v613 = vmul.f32 %v497, %v599
    %v614 = vmul.f32 %v497, %v600
    %v615 = vmul.f32 %v501, %v599
    %v616 = vmul.f32 %v501, %v600
    %v617 = vmul.f32 %v505, %v599
    %v618 = vmul.f32 %v505, %v600
    %v619 = vmul.f32 %v509, %v599
    %v620 = vmul.f32 %v509, %v600
    %v621 = vmul.f32 %v513, %v599
    %v622 = vmul.f32 %v513, %v600
    %v623 = vmul.f32 %v517, %v599
    %v624 = vmul.f32 %v517, %v600
    %v625 = vmul.f32 %v521, %v599
    %v626 = vmul.f32 %v521, %v600
    %v627 = vmul.f32 %v525, %v599
    %v628 = vmul.f32 %v525, %v600
    %v629 = vmul.f32 %v529, %v599
    %v630 = vmul.f32 %v529, %v600
    %v631 = vmul.f32 %v533, %v599
    %v632 = vmul.f32 %v533, %v600
    %v633 = vmul.f32 %v537, %v599
    %v634 = vmul.f32 %v537, %v600
    %v635 = vmul.f32 %v541, %v599
    %v636 = vmul.f32 %v541, %v600
    %v637 = vmul.f32 %v545, %v599
    %v638 = vmul.f32 %v545, %v600
    %v639 = vmul.f32 %v549, %v599
    %v640 = vmul.f32 %v549, %v600
    %v641 = vmul.f32 %v553, %v599
    %v642 = vmul.f32 %v553, %v600
    %v643 = vmul.f32 %v557, %v599
    %v644 = vmul.f32 %v557, %v600
    %v645 = vmul.f32 %v561, %v599
    %v646 = vmul.f32 %v561, %v600
    %v647 = vmul.f32 %v565, %v599
    %v648 = vmul.f32 %v565, %v600
    %v649 = vmul.f32 %v569, %v599
    %v650 = vmul.f32 %v569, %v600
    %v651 = vmul.f32 %v573, %v599
    %v652 = vmul.f32 %v573, %v600
    %v653 = vmul.f32 %v577, %v599
    %v654 = vmul.f32 %v577, %v600
    %v655 = vmul.f32 %v581, %v599
    %v656 = vmul.f32 %v581, %v600
    %v657 = vmul.f32 %v585, %v599
    %v658 = vmul.f32 %v585, %v600
    %v659 = vmul.f32 %v589, %v599
    %v660 = vmul.f32 %v589, %v600
    %v661 = vmul.f32 %v593, %v599
    %v662 = vmul.f32 %v593, %v600
    %v663 = vmul.f32 %v597, %v599
    %v664 = vmul.f32 %v597, %v600
    %v665 = vadd.f32 %v407, %v601
    %v666 = vadd.f32 %v408, %v602
    %v667 = vadd.f32 %v409, %v603
    %v668 = vadd.f32 %v410, %v604
    %v669 = vadd.f32 %v411, %v605
    %v670 = vadd.f32 %v412, %v606
    %v671 = vadd.f32 %v413, %v607
    %v672 = vadd.f32 %v414, %v608
    %v673 = vadd.f32 %v415, %v609
    %v674 = vadd.f32 %v416, %v610
    %v675 = vadd.f32 %v417, %v611
    %v676 = vadd.f32 %v418, %v612
    %v677 = vadd.f32 %v419, %v613
    %v678 = vadd.f32 %v420, %v614
    %v679 = vadd.f32 %v421, %v615
    %v680 = vadd.f32 %v422, %v616
    %v681 = vadd.f32 %v423, %v617
    %v682 = vadd.f32 %v424, %v618
    %v683 = vadd.f32 %v425, %v619
    %v684 = vadd.f32 %v426, %v620
    %v685 = vadd.f32 %v427, %v621
    %v686 = vadd.f32 %v428, %v622
    %v687 = vadd.f32 %v429, %v623
    %v688 = vadd.f32 %v430, %v624
    %v689 = vadd.f32 %v431, %v625
    %v690 = vadd.f32 %v432, %v626
    %v691 = vadd.f32 %v433, %v627
    %v692 = vadd.f32 %v434, %v628
    %v693 = vadd.f32 %v435, %v629
    %v694 = vadd.f32 %v436, %v630
    %v695 = vadd.f32 %v437, %v631
    %v696 = vadd.f32 %v438, %v632
    %v697 = vadd.f32 %v439, %v633
    %v698 = vadd.f32 %v440, %v634
    %v699 = vadd.f32 %v441, %v635
    %v700 = vadd.f32 %v442, %v636
    %v701 = vadd.f32 %v443, %v637
    %v702 = vadd.f32 %v444, %v638
    %v703 = vadd.f32 %v445, %v639
    %v704 = vadd.f32 %v446, %v640
    %v705 = vadd.f32 %v447, %v641
    %v706 = vadd.f32 %v448, %v642
    %v707 = vadd.f32 %v449, %v643
    %v708 = vadd.f32 %v450, %v644
    %v709 = vadd.f32 %v451, %v645
    %v710 = vadd.f32 %v452, %v646
    %v711 = vadd.f32 %v453, %v647
    %v712 = vadd.f32 %v454, %v648
    %v713 = vadd.f32 %v455, %v649
    %v714 = vadd.f32 %v456, %v650
    %v715 = vadd.f32 %v457, %v651
    %v716 = vadd.f32 %v458, %v652
    %v717 = vadd.f32 %v459, %v653
    %v718 = vadd.f32 %v460, %v654
    %v719 = vadd.f32 %v461, %v655
    %v720 = vadd.f32 %v462, %v656
    %v721 = vadd.f32 %v463, %v657
    %v722 = vadd.f32 %v464, %v658
    %v723 = vadd.f32 %v465, %v659
    %v724 = vadd.f32 %v466, %v660
    %v725 = vadd.f32 %v467, %v661
    %v726 = vadd.f32 %v468, %v662
    %v727 = vadd.f32 %v469, %v663
    %v728 = vadd.f32 %v470, %v664
    %729 = vset.pattern.permute.xlu0 2
    %730 = vperm.xlu0 %729, %v109
    %v731 = vpop.permute.xlu0 %730
    %733 = vset.pattern.permute.xlu0 2
    %734 = vperm.xlu0 %733, %v110
    %v735 = vpop.permute.xlu0 %734
    %737 = vset.pattern.permute.xlu0 2
    %738 = vperm.xlu0 %737, %v111
    %v739 = vpop.permute.xlu0 %738
    %741 = vset.pattern.permute.xlu0 2
    %742 = vperm.xlu0 %741, %v112
    %v743 = vpop.permute.xlu0 %742
    %745 = vset.pattern.permute.xlu0 2
    %746 = vperm.xlu0 %745, %v113
    %v747 = vpop.permute.xlu0 %746
    %749 = vset.pattern.permute.xlu0 2
    %750 = vperm.xlu0 %749, %v114
    %v751 = vpop.permute.xlu0 %750
    %753 = vset.pattern.permute.xlu0 2
    %754 = vperm.xlu0 %753, %v115
    %v755 = vpop.permute.xlu0 %754
    %757 = vset.pattern.permute.xlu0 2
    %758 = vperm.xlu0 %757, %v116
    %v759 = vpop.permute.xlu0 %758
    %761 = vset.pattern.permute.xlu0 2
    %762 = vperm.xlu0 %761, %v117
    %v763 = vpop.permute.xlu0 %762
    %765 = vset.pattern.permute.xlu0 2
    %766 = vperm.xlu0 %765, %v118
    %v767 = vpop.permute.xlu0 %766
    %769 = vset.pattern.permute.xlu0 2
    %770 = vperm.xlu0 %769, %v119
    %v771 = vpop.permute.xlu0 %770
    %773 = vset.pattern.permute.xlu0 2
    %774 = vperm.xlu0 %773, %v120
    %v775 = vpop.permute.xlu0 %774
    %777 = vset.pattern.permute.xlu0 2
    %778 = vperm.xlu0 %777, %v121
    %v779 = vpop.permute.xlu0 %778
    %781 = vset.pattern.permute.xlu0 2
    %782 = vperm.xlu0 %781, %v122
    %v783 = vpop.permute.xlu0 %782
    %785 = vset.pattern.permute.xlu0 2
    %786 = vperm.xlu0 %785, %v123
    %v787 = vpop.permute.xlu0 %786
    %789 = vset.pattern.permute.xlu0 2
    %790 = vperm.xlu0 %789, %v124
    %v791 = vpop.permute.xlu0 %790
    %793 = vset.pattern.permute.xlu0 2
    %794 = vperm.xlu0 %793, %v125
    %v795 = vpop.permute.xlu0 %794
    %797 = vset.pattern.permute.xlu0 2
    %798 = vperm.xlu0 %797, %v126
    %v799 = vpop.permute.xlu0 %798
    %801 = vset.pattern.permute.xlu0 2
    %802 = vperm.xlu0 %801, %v127
    %v803 = vpop.permute.xlu0 %802
    %805 = vset.pattern.permute.xlu0 2
    %806 = vperm.xlu0 %805, %v128
    %v807 = vpop.permute.xlu0 %806
    %809 = vset.pattern.permute.xlu0 2
    %810 = vperm.xlu0 %809, %v129
    %v811 = vpop.permute.xlu0 %810
    %813 = vset.pattern.permute.xlu0 2
    %814 = vperm.xlu0 %813, %v130
    %v815 = vpop.permute.xlu0 %814
    %817 = vset.pattern.permute.xlu0 2
    %818 = vperm.xlu0 %817, %v131
    %v819 = vpop.permute.xlu0 %818
    %821 = vset.pattern.permute.xlu0 2
    %822 = vperm.xlu0 %821, %v132
    %v823 = vpop.permute.xlu0 %822
    %825 = vset.pattern.permute.xlu0 2
    %826 = vperm.xlu0 %825, %v133
    %v827 = vpop.permute.xlu0 %826
    %829 = vset.pattern.permute.xlu0 2
    %830 = vperm.xlu0 %829, %v134
    %v831 = vpop.permute.xlu0 %830
    %833 = vset.pattern.permute.xlu0 2
    %834 = vperm.xlu0 %833, %v135
    %v835 = vpop.permute.xlu0 %834
    %837 = vset.pattern.permute.xlu0 2
    %838 = vperm.xlu0 %837, %v136
    %v839 = vpop.permute.xlu0 %838
    %841 = vset.pattern.permute.xlu0 2
    %842 = vperm.xlu0 %841, %v137
    %v843 = vpop.permute.xlu0 %842
    %845 = vset.pattern.permute.xlu0 2
    %846 = vperm.xlu0 %845, %v138
    %v847 = vpop.permute.xlu0 %846
    %849 = vset.pattern.permute.xlu0 2
    %850 = vperm.xlu0 %849, %v139
    %v851 = vpop.permute.xlu0 %850
    %853 = vset.pattern.permute.xlu0 2
    %854 = vperm.xlu0 %853, %v140
    %v855 = vpop.permute.xlu0 %854
    %v857 = vperm.slane %v173, 2
    %v858 = vperm.slane %v174, 2
    %v859 = vmul.f32 %v731, %v857
    %v860 = vmul.f32 %v731, %v858
    %v861 = vmul.f32 %v735, %v857
    %v862 = vmul.f32 %v735, %v858
    %v863 = vmul.f32 %v739, %v857
    %v864 = vmul.f32 %v739, %v858
    %v865 = vmul.f32 %v743, %v857
    %v866 = vmul.f32 %v743, %v858
    %v867 = vmul.f32 %v747, %v857
    %v868 = vmul.f32 %v747, %v858
    %v869 = vmul.f32 %v751, %v857
    %v870 = vmul.f32 %v751, %v858
    %v871 = vmul.f32 %v755, %v857
    %v872 = vmul.f32 %v755, %v858
    %v873 = vmul.f32 %v759, %v857
    %v874 = vmul.f32 %v759, %v858
    %v875 = vmul.f32 %v763, %v857
    %v876 = vmul.f32 %v763, %v858
    %v877 = vmul.f32 %v767, %v857
    %v878 = vmul.f32 %v767, %v858
    %v879 = vmul.f32 %v771, %v857
    %v880 = vmul.f32 %v771, %v858
    %v881 = vmul.f32 %v775, %v857
    %v882 = vmul.f32 %v775, %v858
    %v883 = vmul.f32 %v779, %v857
    %v884 = vmul.f32 %v779, %v858
    %v885 = vmul.f32 %v783, %v857
    %v886 = vmul.f32 %v783, %v858
    %v887 = vmul.f32 %v787, %v857
    %v888 = vmul.f32 %v787, %v858
    %v889 = vmul.f32 %v791, %v857
    %v890 = vmul.f32 %v791, %v858
    %v891 = vmul.f32 %v795, %v857
    %v892 = vmul.f32 %v795, %v858
    %v893 = vmul.f32 %v799, %v857
    %v894 = vmul.f32 %v799, %v858
    %v895 = vmul.f32 %v803, %v857
    %v896 = vmul.f32 %v803, %v858
    %v897 = vmul.f32 %v807, %v857
    %v898 = vmul.f32 %v807, %v858
    %v899 = vmul.f32 %v811, %v857
    %v900 = vmul.f32 %v811, %v858
    %v901 = vmul.f32 %v815, %v857
    %v902 = vmul.f32 %v815, %v858
    %v903 = vmul.f32 %v819, %v857
    %v904 = vmul.f32 %v819, %v858
    %v905 = vmul.f32 %v823, %v857
    %v906 = vmul.f32 %v823, %v858
    %v907 = vmul.f32 %v827, %v857
    %v908 = vmul.f32 %v827, %v858
    %v909 = vmul.f32 %v831, %v857
    %v910 = vmul.f32 %v831, %v858
    %v911 = vmul.f32 %v835, %v857
    %v912 = vmul.f32 %v835, %v858
    %v913 = vmul.f32 %v839, %v857
    %v914 = vmul.f32 %v839, %v858
    %v915 = vmul.f32 %v843, %v857
    %v916 = vmul.f32 %v843, %v858
    %v917 = vmul.f32 %v847, %v857
    %v918 = vmul.f32 %v847, %v858
    %v919 = vmul.f32 %v851, %v857
    %v920 = vmul.f32 %v851, %v858
    %v921 = vmul.f32 %v855, %v857
    %v922 = vmul.f32 %v855, %v858
    %v923 = vadd.f32 %v665, %v859
    %v924 = vadd.f32 %v666, %v860
    %v925 = vadd.f32 %v667, %v861
    %v926 = vadd.f32 %v668, %v862
    %v927 = vadd.f32 %v669, %v863
    %v928 = vadd.f32 %v670, %v864
    %v929 = vadd.f32 %v671, %v865
    %v930 = vadd.f32 %v672, %v866
    %v931 = vadd.f32 %v673, %v867
    %v932 = vadd.f32 %v674, %v868
    %v933 = vadd.f32 %v675, %v869
    %v934 = vadd.f32 %v676, %v870
    %v935 = vadd.f32 %v677, %v871
    %v936 = vadd.f32 %v678, %v872
    %v937 = vadd.f32 %v679, %v873
    %v938 = vadd.f32 %v680, %v874
    %v939 = vadd.f32 %v681, %v875
    %v940 = vadd.f32 %v682, %v876
    %v941 = vadd.f32 %v683, %v877
    %v942 = vadd.f32 %v684, %v878
    %v943 = vadd.f32 %v685, %v879
    %v944 = vadd.f32 %v686, %v880
    %v945 = vadd.f32 %v687, %v881
    %v946 = vadd.f32 %v688, %v882
    %v947 = vadd.f32 %v689, %v883
    %v948 = vadd.f32 %v690, %v884
    %v949 = vadd.f32 %v691, %v885
    %v950 = vadd.f32 %v692, %v886
    %v951 = vadd.f32 %v693, %v887
    %v952 = vadd.f32 %v694, %v888
    %v953 = vadd.f32 %v695, %v889
    %v954 = vadd.f32 %v696, %v890
    %v955 = vadd.f32 %v697, %v891
    %v956 = vadd.f32 %v698, %v892
    %v957 = vadd.f32 %v699, %v893
    %v958 = vadd.f32 %v700, %v894
    %v959 = vadd.f32 %v701, %v895
    %v960 = vadd.f32 %v702, %v896
    %v961 = vadd.f32 %v703, %v897
    %v962 = vadd.f32 %v704, %v898
    %v963 = vadd.f32 %v705, %v899
    %v964 = vadd.f32 %v706, %v900
    %v965 = vadd.f32 %v707, %v901
    %v966 = vadd.f32 %v708, %v902
    %v967 = vadd.f32 %v709, %v903
    %v968 = vadd.f32 %v710, %v904
    %v969 = vadd.f32 %v711, %v905
    %v970 = vadd.f32 %v712, %v906
    %v971 = vadd.f32 %v713, %v907
    %v972 = vadd.f32 %v714, %v908
    %v973 = vadd.f32 %v715, %v909
    %v974 = vadd.f32 %v716, %v910
    %v975 = vadd.f32 %v717, %v911
    %v976 = vadd.f32 %v718, %v912
    %v977 = vadd.f32 %v719, %v913
    %v978 = vadd.f32 %v720, %v914
    %v979 = vadd.f32 %v721, %v915
    %v980 = vadd.f32 %v722, %v916
    %v981 = vadd.f32 %v723, %v917
    %v982 = vadd.f32 %v724, %v918
    %v983 = vadd.f32 %v725, %v919
    %v984 = vadd.f32 %v726, %v920
    %v985 = vadd.f32 %v727, %v921
    %v986 = vadd.f32 %v728, %v922
    %987 = vset.pattern.permute.xlu0 3
    %988 = vperm.xlu0 %987, %v109
    %v989 = vpop.permute.xlu0 %988
    %991 = vset.pattern.permute.xlu0 3
    %992 = vperm.xlu0 %991, %v110
    %v993 = vpop.permute.xlu0 %992
    %995 = vset.pattern.permute.xlu0 3
    %996 = vperm.xlu0 %995, %v111
    %v997 = vpop.permute.xlu0 %996
    %999 = vset.pattern.permute.xlu0 3
    %1000 = vperm.xlu0 %999, %v112
    %v1001 = vpop.permute.xlu0 %1000
    %1003 = vset.pattern.permute.xlu0 3
    %1004 = vperm.xlu0 %1003, %v113
    %v1005 = vpop.permute.xlu0 %1004
    %1007 = vset.pattern.permute.xlu0 3
    %1008 = vperm.xlu0 %1007, %v114
    %v1009 = vpop.permute.xlu0 %1008
    %1011 = vset.pattern.permute.xlu0 3
    %1012 = vperm.xlu0 %1011, %v115
    %v1013 = vpop.permute.xlu0 %1012
    %1015 = vset.pattern.permute.xlu0 3
    %1016 = vperm.xlu0 %1015, %v116
    %v1017 = vpop.permute.xlu0 %1016
    %1019 = vset.pattern.permute.xlu0 3
    %1020 = vperm.xlu0 %1019, %v117
    %v1021 = vpop.permute.xlu0 %1020
    %1023 = vset.pattern.permute.xlu0 3
    %1024 = vperm.xlu0 %1023, %v118
    %v1025 = vpop.permute.xlu0 %1024
    %1027 = vset.pattern.permute.xlu0 3
    %1028 = vperm.xlu0 %1027, %v119
    %v1029 = vpop.permute.xlu0 %1028
    %1031 = vset.pattern.permute.xlu0 3
    %1032 = vperm.xlu0 %1031, %v120
    %v1033 = vpop.permute.xlu0 %1032
    %1035 = vset.pattern.permute.xlu0 3
    %1036 = vperm.xlu0 %1035, %v121
    %v1037 = vpop.permute.xlu0 %1036
    %1039 = vset.pattern.permute.xlu0 3
    %1040 = vperm.xlu0 %1039, %v122
    %v1041 = vpop.permute.xlu0 %1040
    %1043 = vset.pattern.permute.xlu0 3
    %1044 = vperm.xlu0 %1043, %v123
    %v1045 = vpop.permute.xlu0 %1044
    %1047 = vset.pattern.permute.xlu0 3
    %1048 = vperm.xlu0 %1047, %v124
    %v1049 = vpop.permute.xlu0 %1048
    %1051 = vset.pattern.permute.xlu0 3
    %1052 = vperm.xlu0 %1051, %v125
    %v1053 = vpop.permute.xlu0 %1052
    %1055 = vset.pattern.permute.xlu0 3
    %1056 = vperm.xlu0 %1055, %v126
    %v1057 = vpop.permute.xlu0 %1056
    %1059 = vset.pattern.permute.xlu0 3
    %1060 = vperm.xlu0 %1059, %v127
    %v1061 = vpop.permute.xlu0 %1060
    %1063 = vset.pattern.permute.xlu0 3
    %1064 = vperm.xlu0 %1063, %v128
    %v1065 = vpop.permute.xlu0 %1064
    %1067 = vset.pattern.permute.xlu0 3
    %1068 = vperm.xlu0 %1067, %v129
    %v1069 = vpop.permute.xlu0 %1068
    %1071 = vset.pattern.permute.xlu0 3
    %1072 = vperm.xlu0 %1071, %v130
    %v1073 = vpop.permute.xlu0 %1072
    %1075 = vset.pattern.permute.xlu0 3
    %1076 = vperm.xlu0 %1075, %v131
    %v1077 = vpop.permute.xlu0 %1076
    %1079 = vset.pattern.permute.xlu0 3
    %1080 = vperm.xlu0 %1079, %v132
    %v1081 = vpop.permute.xlu0 %1080
    %1083 = vset.pattern.permute.xlu0 3
    %1084 = vperm.xlu0 %1083, %v133
    %v1085 = vpop.permute.xlu0 %1084
    %1087 = vset.pattern.permute.xlu0 3
    %1088 = vperm.xlu0 %1087, %v134
    %v1089 = vpop.permute.xlu0 %1088
    %1091 = vset.pattern.permute.xlu0 3
    %1092 = vperm.xlu0 %1091, %v135
    %v1093 = vpop.permute.xlu0 %1092
    %1095 = vset.pattern.permute.xlu0 3
    %1096 = vperm.xlu0 %1095, %v136
    %v1097 = vpop.permute.xlu0 %1096
    %1099 = vset.pattern.permute.xlu0 3
    %1100 = vperm.xlu0 %1099, %v137
    %v1101 = vpop.permute.xlu0 %1100
    %1103 = vset.pattern.permute.xlu0 3
    %1104 = vperm.xlu0 %1103, %v138
    %v1105 = vpop.permute.xlu0 %1104
    %1107 = vset.pattern.permute.xlu0 3
    %1108 = vperm.xlu0 %1107, %v139
    %v1109 = vpop.permute.xlu0 %1108
    %1111 = vset.pattern.permute.xlu0 3
    %1112 = vperm.xlu0 %1111, %v140
    %v1113 = vpop.permute.xlu0 %1112
    %v1115 = vperm.slane %v173, 3
    %v1116 = vperm.slane %v174, 3
    %v1117 = vmul.f32 %v989, %v1115
    %v1118 = vmul.f32 %v989, %v1116
    %v1119 = vmul.f32 %v993, %v1115
    %v1120 = vmul.f32 %v993, %v1116
    %v1121 = vmul.f32 %v997, %v1115
    %v1122 = vmul.f32 %v997, %v1116
    %v1123 = vmul.f32 %v1001, %v1115
    %v1124 = vmul.f32 %v1001, %v1116
    %v1125 = vmul.f32 %v1005, %v1115
    %v1126 = vmul.f32 %v1005, %v1116
    %v1127 = vmul.f32 %v1009, %v1115
    %v1128 = vmul.f32 %v1009, %v1116
    %v1129 = vmul.f32 %v1013, %v1115
    %v1130 = vmul.f32 %v1013, %v1116
    %v1131 = vmul.f32 %v1017, %v1115
    %v1132 = vmul.f32 %v1017, %v1116
    %v1133 = vmul.f32 %v1021, %v1115
    %v1134 = vmul.f32 %v1021, %v1116
    %v1135 = vmul.f32 %v1025, %v1115
    %v1136 = vmul.f32 %v1025, %v1116
    %v1137 = vmul.f32 %v1029, %v1115
    %v1138 = vmul.f32 %v1029, %v1116
    %v1139 = vmul.f32 %v1033, %v1115
    %v1140 = vmul.f32 %v1033, %v1116
    %v1141 = vmul.f32 %v1037, %v1115
    %v1142 = vmul.f32 %v1037, %v1116
    %v1143 = vmul.f32 %v1041, %v1115
    %v1144 = vmul.f32 %v1041, %v1116
    %v1145 = vmul.f32 %v1045, %v1115
    %v1146 = vmul.f32 %v1045, %v1116
    %v1147 = vmul.f32 %v1049, %v1115
    %v1148 = vmul.f32 %v1049, %v1116
    %v1149 = vmul.f32 %v1053, %v1115
    %v1150 = vmul.f32 %v1053, %v1116
    %v1151 = vmul.f32 %v1057, %v1115
    %v1152 = vmul.f32 %v1057, %v1116
    %v1153 = vmul.f32 %v1061, %v1115
    %v1154 = vmul.f32 %v1061, %v1116
    %v1155 = vmul.f32 %v1065, %v1115
    %v1156 = vmul.f32 %v1065, %v1116
    %v1157 = vmul.f32 %v1069, %v1115
    %v1158 = vmul.f32 %v1069, %v1116
    %v1159 = vmul.f32 %v1073, %v1115
    %v1160 = vmul.f32 %v1073, %v1116
    %v1161 = vmul.f32 %v1077, %v1115
    %v1162 = vmul.f32 %v1077, %v1116
    %v1163 = vmul.f32 %v1081, %v1115
    %v1164 = vmul.f32 %v1081, %v1116
    %v1165 = vmul.f32 %v1085, %v1115
    %v1166 = vmul.f32 %v1085, %v1116
    %v1167 = vmul.f32 %v1089, %v1115
    %v1168 = vmul.f32 %v1089, %v1116
    %v1169 = vmul.f32 %v1093, %v1115
    %v1170 = vmul.f32 %v1093, %v1116
    %v1171 = vmul.f32 %v1097, %v1115
    %v1172 = vmul.f32 %v1097, %v1116
    %v1173 = vmul.f32 %v1101, %v1115
    %v1174 = vmul.f32 %v1101, %v1116
    %v1175 = vmul.f32 %v1105, %v1115
    %v1176 = vmul.f32 %v1105, %v1116
    %v1177 = vmul.f32 %v1109, %v1115
    %v1178 = vmul.f32 %v1109, %v1116
    %v1179 = vmul.f32 %v1113, %v1115
    %v1180 = vmul.f32 %v1113, %v1116
    %v1181 = vadd.f32 %v923, %v1117
    %v1182 = vadd.f32 %v924, %v1118
    %v1183 = vadd.f32 %v925, %v1119
    %v1184 = vadd.f32 %v926, %v1120
    %v1185 = vadd.f32 %v927, %v1121
    %v1186 = vadd.f32 %v928, %v1122
    %v1187 = vadd.f32 %v929, %v1123
    %v1188 = vadd.f32 %v930, %v1124
    %v1189 = vadd.f32 %v931, %v1125
    %v1190 = vadd.f32 %v932, %v1126
    %v1191 = vadd.f32 %v933, %v1127
    %v1192 = vadd.f32 %v934, %v1128
    %v1193 = vadd.f32 %v935, %v1129
    %v1194 = vadd.f32 %v936, %v1130
    %v1195 = vadd.f32 %v937, %v1131
    %v1196 = vadd.f32 %v938, %v1132
    %v1197 = vadd.f32 %v939, %v1133
    %v1198 = vadd.f32 %v940, %v1134
    %v1199 = vadd.f32 %v941, %v1135
    %v1200 = vadd.f32 %v942, %v1136
    %v1201 = vadd.f32 %v943, %v1137
    %v1202 = vadd.f32 %v944, %v1138
    %v1203 = vadd.f32 %v945, %v1139
    %v1204 = vadd.f32 %v946, %v1140
    %v1205 = vadd.f32 %v947, %v1141
    %v1206 = vadd.f32 %v948, %v1142
    %v1207 = vadd.f32 %v949, %v1143
    %v1208 = vadd.f32 %v950, %v1144
    %v1209 = vadd.f32 %v951, %v1145
    %v1210 = vadd.f32 %v952, %v1146
    %v1211 = vadd.f32 %v953, %v1147
    %v1212 = vadd.f32 %v954, %v1148
    %v1213 = vadd.f32 %v955, %v1149
    %v1214 = vadd.f32 %v956, %v1150
    %v1215 = vadd.f32 %v957, %v1151
    %v1216 = vadd.f32 %v958, %v1152
    %v1217 = vadd.f32 %v959, %v1153
    %v1218 = vadd.f32 %v960, %v1154
    %v1219 = vadd.f32 %v961, %v1155
    %v1220 = vadd.f32 %v962, %v1156
    %v1221 = vadd.f32 %v963, %v1157
    %v1222 = vadd.f32 %v964, %v1158
    %v1223 = vadd.f32 %v965, %v1159
    %v1224 = vadd.f32 %v966, %v1160
    %v1225 = vadd.f32 %v967, %v1161
    %v1226 = vadd.f32 %v968, %v1162
    %v1227 = vadd.f32 %v969, %v1163
    %v1228 = vadd.f32 %v970, %v1164
    %v1229 = vadd.f32 %v971, %v1165
    %v1230 = vadd.f32 %v972, %v1166
    %v1231 = vadd.f32 %v973, %v1167
    %v1232 = vadd.f32 %v974, %v1168
    %v1233 = vadd.f32 %v975, %v1169
    %v1234 = vadd.f32 %v976, %v1170
    %v1235 = vadd.f32 %v977, %v1171
    %v1236 = vadd.f32 %v978, %v1172
    %v1237 = vadd.f32 %v979, %v1173
    %v1238 = vadd.f32 %v980, %v1174
    %v1239 = vadd.f32 %v981, %v1175
    %v1240 = vadd.f32 %v982, %v1176
    %v1241 = vadd.f32 %v983, %v1177
    %v1242 = vadd.f32 %v984, %v1178
    %v1243 = vadd.f32 %v985, %v1179
    %v1244 = vadd.f32 %v986, %v1180
    %1246 = vset.pattern.permute.xlu0 0
    %1247 = vperm.xlu0 %1246, %v141
    %v1248 = vpop.permute.xlu0 %1247
    %1251 = vset.pattern.permute.xlu0 0
    %1252 = vperm.xlu0 %1251, %v142
    %v1253 = vpop.permute.xlu0 %1252
    %1256 = vset.pattern.permute.xlu0 0
    %1257 = vperm.xlu0 %1256, %v143
    %v1258 = vpop.permute.xlu0 %1257
    %1261 = vset.pattern.permute.xlu0 0
    %1262 = vperm.xlu0 %1261, %v144
    %v1263 = vpop.permute.xlu0 %1262
    %1266 = vset.pattern.permute.xlu0 0
    %1267 = vperm.xlu0 %1266, %v145
    %v1268 = vpop.permute.xlu0 %1267
    %1271 = vset.pattern.permute.xlu0 0
    %1272 = vperm.xlu0 %1271, %v146
    %v1273 = vpop.permute.xlu0 %1272
    %1276 = vset.pattern.permute.xlu0 0
    %1277 = vperm.xlu0 %1276, %v147
    %v1278 = vpop.permute.xlu0 %1277
    %1281 = vset.pattern.permute.xlu0 0
    %1282 = vperm.xlu0 %1281, %v148
    %v1283 = vpop.permute.xlu0 %1282
    %1286 = vset.pattern.permute.xlu0 0
    %1287 = vperm.xlu0 %1286, %v149
    %v1288 = vpop.permute.xlu0 %1287
    %1291 = vset.pattern.permute.xlu0 0
    %1292 = vperm.xlu0 %1291, %v150
    %v1293 = vpop.permute.xlu0 %1292
    %1296 = vset.pattern.permute.xlu0 0
    %1297 = vperm.xlu0 %1296, %v151
    %v1298 = vpop.permute.xlu0 %1297
    %1301 = vset.pattern.permute.xlu0 0
    %1302 = vperm.xlu0 %1301, %v152
    %v1303 = vpop.permute.xlu0 %1302
    %1306 = vset.pattern.permute.xlu0 0
    %1307 = vperm.xlu0 %1306, %v153
    %v1308 = vpop.permute.xlu0 %1307
    %1311 = vset.pattern.permute.xlu0 0
    %1312 = vperm.xlu0 %1311, %v154
    %v1313 = vpop.permute.xlu0 %1312
    %1316 = vset.pattern.permute.xlu0 0
    %1317 = vperm.xlu0 %1316, %v155
    %v1318 = vpop.permute.xlu0 %1317
    %1321 = vset.pattern.permute.xlu0 0
    %1322 = vperm.xlu0 %1321, %v156
    %v1323 = vpop.permute.xlu0 %1322
    %1326 = vset.pattern.permute.xlu0 0
    %1327 = vperm.xlu0 %1326, %v157
    %v1328 = vpop.permute.xlu0 %1327
    %1331 = vset.pattern.permute.xlu0 0
    %1332 = vperm.xlu0 %1331, %v158
    %v1333 = vpop.permute.xlu0 %1332
    %1336 = vset.pattern.permute.xlu0 0
    %1337 = vperm.xlu0 %1336, %v159
    %v1338 = vpop.permute.xlu0 %1337
    %1341 = vset.pattern.permute.xlu0 0
    %1342 = vperm.xlu0 %1341, %v160
    %v1343 = vpop.permute.xlu0 %1342
    %1346 = vset.pattern.permute.xlu0 0
    %1347 = vperm.xlu0 %1346, %v161
    %v1348 = vpop.permute.xlu0 %1347
    %1351 = vset.pattern.permute.xlu0 0
    %1352 = vperm.xlu0 %1351, %v162
    %v1353 = vpop.permute.xlu0 %1352
    %1356 = vset.pattern.permute.xlu0 0
    %1357 = vperm.xlu0 %1356, %v163
    %v1358 = vpop.permute.xlu0 %1357
    %1361 = vset.pattern.permute.xlu0 0
    %1362 = vperm.xlu0 %1361, %v164
    %v1363 = vpop.permute.xlu0 %1362
    %1366 = vset.pattern.permute.xlu0 0
    %1367 = vperm.xlu0 %1366, %v165
    %v1368 = vpop.permute.xlu0 %1367
    %1371 = vset.pattern.permute.xlu0 0
    %1372 = vperm.xlu0 %1371, %v166
    %v1373 = vpop.permute.xlu0 %1372
    %1376 = vset.pattern.permute.xlu0 0
    %1377 = vperm.xlu0 %1376, %v167
    %v1378 = vpop.permute.xlu0 %1377
    %1381 = vset.pattern.permute.xlu0 0
    %1382 = vperm.xlu0 %1381, %v168
    %v1383 = vpop.permute.xlu0 %1382
    %1386 = vset.pattern.permute.xlu0 0
    %1387 = vperm.xlu0 %1386, %v169
    %v1388 = vpop.permute.xlu0 %1387
    %1391 = vset.pattern.permute.xlu0 0
    %1392 = vperm.xlu0 %1391, %v170
    %v1393 = vpop.permute.xlu0 %1392
    %1396 = vset.pattern.permute.xlu0 0
    %1397 = vperm.xlu0 %1396, %v171
    %v1398 = vpop.permute.xlu0 %1397
    %1401 = vset.pattern.permute.xlu0 0
    %1402 = vperm.xlu0 %1401, %v172
    %v1403 = vpop.permute.xlu0 %1402
    %v1405 = vperm.slane %v173, 4
    %v1406 = vperm.slane %v174, 4
    %v1407 = vmul.f32 %v1248, %v1405
    %v1408 = vmul.f32 %v1248, %v1406
    %v1409 = vmul.f32 %v1253, %v1405
    %v1410 = vmul.f32 %v1253, %v1406
    %v1411 = vmul.f32 %v1258, %v1405
    %v1412 = vmul.f32 %v1258, %v1406
    %v1413 = vmul.f32 %v1263, %v1405
    %v1414 = vmul.f32 %v1263, %v1406
    %v1415 = vmul.f32 %v1268, %v1405
    %v1416 = vmul.f32 %v1268, %v1406
    %v1417 = vmul.f32 %v1273, %v1405
    %v1418 = vmul.f32 %v1273, %v1406
    %v1419 = vmul.f32 %v1278, %v1405
    %v1420 = vmul.f32 %v1278, %v1406
    %v1421 = vmul.f32 %v1283, %v1405
    %v1422 = vmul.f32 %v1283, %v1406
    %v1423 = vmul.f32 %v1288, %v1405
    %v1424 = vmul.f32 %v1288, %v1406
    %v1425 = vmul.f32 %v1293, %v1405
    %v1426 = vmul.f32 %v1293, %v1406
    %v1427 = vmul.f32 %v1298, %v1405
    %v1428 = vmul.f32 %v1298, %v1406
    %v1429 = vmul.f32 %v1303, %v1405
    %v1430 = vmul.f32 %v1303, %v1406
    %v1431 = vmul.f32 %v1308, %v1405
    %v1432 = vmul.f32 %v1308, %v1406
    %v1433 = vmul.f32 %v1313, %v1405
    %v1434 = vmul.f32 %v1313, %v1406
    %v1435 = vmul.f32 %v1318, %v1405
    %v1436 = vmul.f32 %v1318, %v1406
    %v1437 = vmul.f32 %v1323, %v1405
    %v1438 = vmul.f32 %v1323, %v1406
    %v1439 = vmul.f32 %v1328, %v1405
    %v1440 = vmul.f32 %v1328, %v1406
    %v1441 = vmul.f32 %v1333, %v1405
    %v1442 = vmul.f32 %v1333, %v1406
    %v1443 = vmul.f32 %v1338, %v1405
    %v1444 = vmul.f32 %v1338, %v1406
    %v1445 = vmul.f32 %v1343, %v1405
    %v1446 = vmul.f32 %v1343, %v1406
    %v1447 = vmul.f32 %v1348, %v1405
    %v1448 = vmul.f32 %v1348, %v1406
    %v1449 = vmul.f32 %v1353, %v1405
    %v1450 = vmul.f32 %v1353, %v1406
    %v1451 = vmul.f32 %v1358, %v1405
    %v1452 = vmul.f32 %v1358, %v1406
    %v1453 = vmul.f32 %v1363, %v1405
    %v1454 = vmul.f32 %v1363, %v1406
    %v1455 = vmul.f32 %v1368, %v1405
    %v1456 = vmul.f32 %v1368, %v1406
    %v1457 = vmul.f32 %v1373, %v1405
    %v1458 = vmul.f32 %v1373, %v1406
    %v1459 = vmul.f32 %v1378, %v1405
    %v1460 = vmul.f32 %v1378, %v1406
    %v1461 = vmul.f32 %v1383, %v1405
    %v1462 = vmul.f32 %v1383, %v1406
    %v1463 = vmul.f32 %v1388, %v1405
    %v1464 = vmul.f32 %v1388, %v1406
    %v1465 = vmul.f32 %v1393, %v1405
    %v1466 = vmul.f32 %v1393, %v1406
    %v1467 = vmul.f32 %v1398, %v1405
    %v1468 = vmul.f32 %v1398, %v1406
    %v1469 = vmul.f32 %v1403, %v1405
    %v1470 = vmul.f32 %v1403, %v1406
    %v1471 = vadd.f32 %v1181, %v1407
    %v1472 = vadd.f32 %v1182, %v1408
    %v1473 = vadd.f32 %v1183, %v1409
    %v1474 = vadd.f32 %v1184, %v1410
    %v1475 = vadd.f32 %v1185, %v1411
    %v1476 = vadd.f32 %v1186, %v1412
    %v1477 = vadd.f32 %v1187, %v1413
    %v1478 = vadd.f32 %v1188, %v1414
    %v1479 = vadd.f32 %v1189, %v1415
    %v1480 = vadd.f32 %v1190, %v1416
    %v1481 = vadd.f32 %v1191, %v1417
    %v1482 = vadd.f32 %v1192, %v1418
    %v1483 = vadd.f32 %v1193, %v1419
    %v1484 = vadd.f32 %v1194, %v1420
    %v1485 = vadd.f32 %v1195, %v1421
    %v1486 = vadd.f32 %v1196, %v1422
    %v1487 = vadd.f32 %v1197, %v1423
    %v1488 = vadd.f32 %v1198, %v1424
    %v1489 = vadd.f32 %v1199, %v1425
    %v1490 = vadd.f32 %v1200, %v1426
    %v1491 = vadd.f32 %v1201, %v1427
    %v1492 = vadd.f32 %v1202, %v1428
    %v1493 = vadd.f32 %v1203, %v1429
    %v1494 = vadd.f32 %v1204, %v1430
    %v1495 = vadd.f32 %v1205, %v1431
    %v1496 = vadd.f32 %v1206, %v1432
    %v1497 = vadd.f32 %v1207, %v1433
    %v1498 = vadd.f32 %v1208, %v1434
    %v1499 = vadd.f32 %v1209, %v1435
    %v1500 = vadd.f32 %v1210, %v1436
    %v1501 = vadd.f32 %v1211, %v1437
    %v1502 = vadd.f32 %v1212, %v1438
    %v1503 = vadd.f32 %v1213, %v1439
    %v1504 = vadd.f32 %v1214, %v1440
    %v1505 = vadd.f32 %v1215, %v1441
    %v1506 = vadd.f32 %v1216, %v1442
    %v1507 = vadd.f32 %v1217, %v1443
    %v1508 = vadd.f32 %v1218, %v1444
    %v1509 = vadd.f32 %v1219, %v1445
    %v1510 = vadd.f32 %v1220, %v1446
    %v1511 = vadd.f32 %v1221, %v1447
    %v1512 = vadd.f32 %v1222, %v1448
    %v1513 = vadd.f32 %v1223, %v1449
    %v1514 = vadd.f32 %v1224, %v1450
    %v1515 = vadd.f32 %v1225, %v1451
    %v1516 = vadd.f32 %v1226, %v1452
    %v1517 = vadd.f32 %v1227, %v1453
    %v1518 = vadd.f32 %v1228, %v1454
    %v1519 = vadd.f32 %v1229, %v1455
    %v1520 = vadd.f32 %v1230, %v1456
    %v1521 = vadd.f32 %v1231, %v1457
    %v1522 = vadd.f32 %v1232, %v1458
    %v1523 = vadd.f32 %v1233, %v1459
    %v1524 = vadd.f32 %v1234, %v1460
    %v1525 = vadd.f32 %v1235, %v1461
    %v1526 = vadd.f32 %v1236, %v1462
    %v1527 = vadd.f32 %v1237, %v1463
    %v1528 = vadd.f32 %v1238, %v1464
    %v1529 = vadd.f32 %v1239, %v1465
    %v1530 = vadd.f32 %v1240, %v1466
    %v1531 = vadd.f32 %v1241, %v1467
    %v1532 = vadd.f32 %v1242, %v1468
    %v1533 = vadd.f32 %v1243, %v1469
    %v1534 = vadd.f32 %v1244, %v1470
    %v1535 = vmax.f32 %v1471, 0.0
    %v1536 = vmax.f32 %v1472, 0.0
    %v1537 = vmax.f32 %v1473, 0.0
    %v1538 = vmax.f32 %v1474, 0.0
    %v1539 = vmax.f32 %v1475, 0.0
    %v1540 = vmax.f32 %v1476, 0.0
    %v1541 = vmax.f32 %v1477, 0.0
    %v1542 = vmax.f32 %v1478, 0.0
    %v1543 = vmax.f32 %v1479, 0.0
    %v1544 = vmax.f32 %v1480, 0.0
    %v1545 = vmax.f32 %v1481, 0.0
    %v1546 = vmax.f32 %v1482, 0.0
    %v1547 = vmax.f32 %v1483, 0.0
    %v1548 = vmax.f32 %v1484, 0.0
    %v1549 = vmax.f32 %v1485, 0.0
    %v1550 = vmax.f32 %v1486, 0.0
    %v1551 = vmax.f32 %v1487, 0.0
    %v1552 = vmax.f32 %v1488, 0.0
    %v1553 = vmax.f32 %v1489, 0.0
    %v1554 = vmax.f32 %v1490, 0.0
    %v1555 = vmax.f32 %v1491, 0.0
    %v1556 = vmax.f32 %v1492, 0.0
    %v1557 = vmax.f32 %v1493, 0.0
    %v1558 = vmax.f32 %v1494, 0.0
    %v1559 = vmax.f32 %v1495, 0.0
    %v1560 = vmax.f32 %v1496, 0.0
    %v1561 = vmax.f32 %v1497, 0.0
    %v1562 = vmax.f32 %v1498, 0.0
    %v1563 = vmax.f32 %v1499, 0.0
    %v1564 = vmax.f32 %v1500, 0.0
    %v1565 = vmax.f32 %v1501, 0.0
    %v1566 = vmax.f32 %v1502, 0.0
    %v1567 = vmax.f32 %v1503, 0.0
    %v1568 = vmax.f32 %v1504, 0.0
    %v1569 = vmax.f32 %v1505, 0.0
    %v1570 = vmax.f32 %v1506, 0.0
    %v1571 = vmax.f32 %v1507, 0.0
    %v1572 = vmax.f32 %v1508, 0.0
    %v1573 = vmax.f32 %v1509, 0.0
    %v1574 = vmax.f32 %v1510, 0.0
    %v1575 = vmax.f32 %v1511, 0.0
    %v1576 = vmax.f32 %v1512, 0.0
    %v1577 = vmax.f32 %v1513, 0.0
    %v1578 = vmax.f32 %v1514, 0.0
    %v1579 = vmax.f32 %v1515, 0.0
    %v1580 = vmax.f32 %v1516, 0.0
    %v1581 = vmax.f32 %v1517, 0.0
    %v1582 = vmax.f32 %v1518, 0.0
    %v1583 = vmax.f32 %v1519, 0.0
    %v1584 = vmax.f32 %v1520, 0.0
    %v1585 = vmax.f32 %v1521, 0.0
    %v1586 = vmax.f32 %v1522, 0.0
    %v1587 = vmax.f32 %v1523, 0.0
    %v1588 = vmax.f32 %v1524, 0.0
    %v1589 = vmax.f32 %v1525, 0.0
    %v1590 = vmax.f32 %v1526, 0.0
    %v1591 = vmax.f32 %v1527, 0.0
    %v1592 = vmax.f32 %v1528, 0.0
    %v1593 = vmax.f32 %v1529, 0.0
    %v1594 = vmax.f32 %v1530, 0.0
    %v1595 = vmax.f32 %v1531, 0.0
    %v1596 = vmax.f32 %v1532, 0.0
    %v1597 = vmax.f32 %v1533, 0.0
    %v1598 = vmax.f32 %v1534, 0.0
    %v1599 = vpack.c.bf16 %v1537, %v1535
    %v1600 = vpack.c.bf16 %v1538, %v1536
    %v1601 = vpack.c.bf16 %v1541, %v1539
    %v1602 = vpack.c.bf16 %v1542, %v1540
    %v1603 = vpack.c.bf16 %v1545, %v1543
    %v1604 = vpack.c.bf16 %v1546, %v1544
    %v1605 = vpack.c.bf16 %v1549, %v1547
    %v1606 = vpack.c.bf16 %v1550, %v1548
    %v1607 = vpack.c.bf16 %v1553, %v1551
    %v1608 = vpack.c.bf16 %v1554, %v1552
    %v1609 = vpack.c.bf16 %v1557, %v1555
    %v1610 = vpack.c.bf16 %v1558, %v1556
    %v1611 = vpack.c.bf16 %v1561, %v1559
    %v1612 = vpack.c.bf16 %v1562, %v1560
    %v1613 = vpack.c.bf16 %v1565, %v1563
    %v1614 = vpack.c.bf16 %v1566, %v1564
    %v1615 = vpack.c.bf16 %v1569, %v1567
    %v1616 = vpack.c.bf16 %v1570, %v1568
    %v1617 = vpack.c.bf16 %v1573, %v1571
    %v1618 = vpack.c.bf16 %v1574, %v1572
    %v1619 = vpack.c.bf16 %v1577, %v1575
    %v1620 = vpack.c.bf16 %v1578, %v1576
    %v1621 = vpack.c.bf16 %v1581, %v1579
    %v1622 = vpack.c.bf16 %v1582, %v1580
    %v1623 = vpack.c.bf16 %v1585, %v1583
    %v1624 = vpack.c.bf16 %v1586, %v1584
    %v1625 = vpack.c.bf16 %v1589, %v1587
    %v1626 = vpack.c.bf16 %v1590, %v1588
    %v1627 = vpack.c.bf16 %v1593, %v1591
    %v1628 = vpack.c.bf16 %v1594, %v1592
    %v1629 = vpack.c.bf16 %v1597, %v1595
    %v1630 = vpack.c.bf16 %v1598, %v1596
    %v1631 = vld [vmem:[%s4] sm:$0xff]
    %v1632 = vld [vmem:[%s4 + $0x8] sm:$0xff]
    %v1633 = vld [vmem:[%s4 + $0x10] sm:$0xff]
    %v1634 = vld [vmem:[%s4 + $0x18] sm:$0xff]
    %v1635 = vld [vmem:[%s4 + $0x20] sm:$0xff]
    %v1636 = vld [vmem:[%s4 + $0x28] sm:$0xff]
    %v1637 = vld [vmem:[%s4 + $0x30] sm:$0xff]
    %v1638 = vld [vmem:[%s4 + $0x38] sm:$0xff]
    %v1639 = vld [vmem:[%s4 + $0x40] sm:$0xff]
    %v1640 = vld [vmem:[%s4 + $0x48] sm:$0xff]
    %v1641 = vld [vmem:[%s4 + $0x50] sm:$0xff]
    %v1642 = vld [vmem:[%s4 + $0x58] sm:$0xff]
    %v1643 = vld [vmem:[%s4 + $0x60] sm:$0xff]
    %v1644 = vld [vmem:[%s4 + $0x68] sm:$0xff]
    %v1645 = vld [vmem:[%s4 + $0x70] sm:$0xff]
    %v1646 = vld [vmem:[%s4 + $0x78] sm:$0xff]
    %v1647 = vld [vmem:[%s4 + $0x80] sm:$0xff]
    %v1648 = vld [vmem:[%s4 + $0x88] sm:$0xff]
    %v1649 = vld [vmem:[%s4 + $0x90] sm:$0xff]
    %v1650 = vld [vmem:[%s4 + $0x98] sm:$0xff]
    %v1651 = vld [vmem:[%s4 + $0xa0] sm:$0xff]
    %v1652 = vld [vmem:[%s4 + $0xa8] sm:$0xff]
    %v1653 = vld [vmem:[%s4 + $0xb0] sm:$0xff]
    %v1654 = vld [vmem:[%s4 + $0xb8] sm:$0xff]
    %v1655 = vld [vmem:[%s4 + $0xc0] sm:$0xff]
    %v1656 = vld [vmem:[%s4 + $0xc8] sm:$0xff]
    %v1657 = vld [vmem:[%s4 + $0xd0] sm:$0xff]
    %v1658 = vld [vmem:[%s4 + $0xd8] sm:$0xff]
    %v1659 = vld [vmem:[%s4 + $0xe0] sm:$0xff]
    %v1660 = vld [vmem:[%s4 + $0xe8] sm:$0xff]
    %v1661 = vld [vmem:[%s4 + $0xf0] sm:$0xff]
    %v1662 = vld [vmem:[%s4 + $0xf8] sm:$0xff]
    %v1663 = vld [vmem:[%s5] sm:$0x3]
    %v1665 = vperm.slane %v1663, 0
    %v1666 = vperm.slane %v1663, 1
    %v1701 = vunpack.c.l.b16 %v1631
    %v1702 = vunpack.c.h.b16 %v1631
    %v1703 = vunpack.c.l.b16 %v1632
    %v1704 = vunpack.c.h.b16 %v1632
    %v1705 = vunpack.c.l.b16 %v1633
    %v1706 = vunpack.c.h.b16 %v1633
    %v1707 = vunpack.c.l.b16 %v1634
    %v1708 = vunpack.c.h.b16 %v1634
    %v1709 = vunpack.c.l.b16 %v1635
    %v1710 = vunpack.c.h.b16 %v1635
    %v1711 = vunpack.c.l.b16 %v1636
    %v1712 = vunpack.c.h.b16 %v1636
    %v1713 = vunpack.c.l.b16 %v1637
    %v1714 = vunpack.c.h.b16 %v1637
    %v1715 = vunpack.c.l.b16 %v1638
    %v1716 = vunpack.c.h.b16 %v1638
    %v1717 = vunpack.c.l.b16 %v1639
    %v1718 = vunpack.c.h.b16 %v1639
    %v1719 = vunpack.c.l.b16 %v1640
    %v1720 = vunpack.c.h.b16 %v1640
    %v1721 = vunpack.c.l.b16 %v1641
    %v1722 = vunpack.c.h.b16 %v1641
    %v1723 = vunpack.c.l.b16 %v1642
    %v1724 = vunpack.c.h.b16 %v1642
    %v1725 = vunpack.c.l.b16 %v1643
    %v1726 = vunpack.c.h.b16 %v1643
    %v1727 = vunpack.c.l.b16 %v1644
    %v1728 = vunpack.c.h.b16 %v1644
    %v1729 = vunpack.c.l.b16 %v1645
    %v1730 = vunpack.c.h.b16 %v1645
    %v1731 = vunpack.c.l.b16 %v1646
    %v1732 = vunpack.c.h.b16 %v1646
    %v1733 = vunpack.c.l.b16 %v1647
    %v1734 = vunpack.c.h.b16 %v1647
    %v1735 = vunpack.c.l.b16 %v1648
    %v1736 = vunpack.c.h.b16 %v1648
    %v1737 = vunpack.c.l.b16 %v1649
    %v1738 = vunpack.c.h.b16 %v1649
    %v1739 = vunpack.c.l.b16 %v1650
    %v1740 = vunpack.c.h.b16 %v1650
    %v1741 = vunpack.c.l.b16 %v1651
    %v1742 = vunpack.c.h.b16 %v1651
    %v1743 = vunpack.c.l.b16 %v1652
    %v1744 = vunpack.c.h.b16 %v1652
    %v1745 = vunpack.c.l.b16 %v1653
    %v1746 = vunpack.c.h.b16 %v1653
    %v1747 = vunpack.c.l.b16 %v1654
    %v1748 = vunpack.c.h.b16 %v1654
    %v1749 = vunpack.c.l.b16 %v1655
    %v1750 = vunpack.c.h.b16 %v1655
    %v1751 = vunpack.c.l.b16 %v1656
    %v1752 = vunpack.c.h.b16 %v1656
    %v1753 = vunpack.c.l.b16 %v1657
    %v1754 = vunpack.c.h.b16 %v1657
    %v1755 = vunpack.c.l.b16 %v1658
    %v1756 = vunpack.c.h.b16 %v1658
    %v1757 = vunpack.c.l.b16 %v1659
    %v1758 = vunpack.c.h.b16 %v1659
    %v1759 = vunpack.c.l.b16 %v1660
    %v1760 = vunpack.c.h.b16 %v1660
    %v1761 = vunpack.c.l.b16 %v1661
    %v1762 = vunpack.c.h.b16 %v1661
    %v1763 = vunpack.c.l.b16 %v1662
    %v1764 = vunpack.c.h.b16 %v1662
    %v1765 = vpack.c.b16 %v1703, %v1701
    %v1766 = vpack.c.b16 %v1704, %v1702
    %v1767 = vpack.c.b16 %v1707, %v1705
    %v1768 = vpack.c.b16 %v1708, %v1706
    %v1769 = vpack.c.b16 %v1711, %v1709
    %v1770 = vpack.c.b16 %v1712, %v1710
    %v1771 = vpack.c.b16 %v1715, %v1713
    %v1772 = vpack.c.b16 %v1716, %v1714
    %v1773 = vpack.c.b16 %v1719, %v1717
    %v1774 = vpack.c.b16 %v1720, %v1718
    %v1775 = vpack.c.b16 %v1723, %v1721
    %v1776 = vpack.c.b16 %v1724, %v1722
    %v1777 = vpack.c.b16 %v1727, %v1725
    %v1778 = vpack.c.b16 %v1728, %v1726
    %v1779 = vpack.c.b16 %v1731, %v1729
    %v1780 = vpack.c.b16 %v1732, %v1730
    %v1781 = vpack.c.b16 %v1735, %v1733
    %v1782 = vpack.c.b16 %v1736, %v1734
    %v1783 = vpack.c.b16 %v1739, %v1737
    %v1784 = vpack.c.b16 %v1740, %v1738
    %v1785 = vpack.c.b16 %v1743, %v1741
    %v1786 = vpack.c.b16 %v1744, %v1742
    %v1787 = vpack.c.b16 %v1747, %v1745
    %v1788 = vpack.c.b16 %v1748, %v1746
    %v1789 = vpack.c.b16 %v1751, %v1749
    %v1790 = vpack.c.b16 %v1752, %v1750
    %v1791 = vpack.c.b16 %v1755, %v1753
    %v1792 = vpack.c.b16 %v1756, %v1754
    %v1793 = vpack.c.b16 %v1759, %v1757
    %v1794 = vpack.c.b16 %v1760, %v1758
    %v1795 = vpack.c.b16 %v1763, %v1761
    %v1796 = vpack.c.b16 %v1764, %v1762
    %1829 = vmatpush.bf16.msra.mxu0 %v1779
    %1830 = vmatpush.bf16.msra.mxu0 %v1777
    %1831 = vmatpush.bf16.msra.mxu0 %v1775
    %1832 = vmatpush.bf16.msra.mxu0 %v1773
    %1833 = vmatpush.bf16.msra.mxu0 %v1771
    %1834 = vmatpush.bf16.msra.mxu0 %v1769
    %1835 = vmatpush.bf16.msra.mxu0 %v1767
    %1836 = vmatpush.bf16.msra.mxu0 %v1765
    %1837 = vmatmul.bf16.gmra.mxu0 %v1599
    %v1838 = vpop.f32.mrf.mxu0
    %v1839 = vadd.f32 %v1665, %v1838
    %v1840 = vpop.f32.mrf.mxu0
    %v1841 = vadd.f32 %v1665, %v1840
    %1842 = vmatmul.bf16.gmra.mxu0 %v1601
    %v1843 = vpop.f32.mrf.mxu0
    %v1844 = vadd.f32 %v1665, %v1843
    %v1845 = vpop.f32.mrf.mxu0
    %v1846 = vadd.f32 %v1665, %v1845
    %1847 = vmatmul.bf16.gmra.mxu0 %v1603
    %v1848 = vpop.f32.mrf.mxu0
    %v1849 = vadd.f32 %v1665, %v1848
    %v1850 = vpop.f32.mrf.mxu0
    %v1851 = vadd.f32 %v1665, %v1850
    %1852 = vmatmul.bf16.gmra.mxu0 %v1605
    %v1853 = vpop.f32.mrf.mxu0
    %v1854 = vadd.f32 %v1665, %v1853
    %v1855 = vpop.f32.mrf.mxu0
    %v1856 = vadd.f32 %v1665, %v1855
    %1857 = vmatmul.bf16.gmra.mxu0 %v1607
    %v1858 = vpop.f32.mrf.mxu0
    %v1859 = vadd.f32 %v1665, %v1858
    %v1860 = vpop.f32.mrf.mxu0
    %v1861 = vadd.f32 %v1665, %v1860
    %1862 = vmatmul.bf16.gmra.mxu0 %v1609
    %v1863 = vpop.f32.mrf.mxu0
    %v1864 = vadd.f32 %v1665, %v1863
    %v1865 = vpop.f32.mrf.mxu0
    %v1866 = vadd.f32 %v1665, %v1865
    %1867 = vmatmul.bf16.gmra.mxu0 %v1611
    %v1868 = vpop.f32.mrf.mxu0
    %v1869 = vadd.f32 %v1665, %v1868
    %v1870 = vpop.f32.mrf.mxu0
    %v1871 = vadd.f32 %v1665, %v1870
    %1872 = vmatmul.bf16.gmra.mxu0 %v1613
    %v1873 = vpop.f32.mrf.mxu0
    %v1874 = vadd.f32 %v1665, %v1873
    %v1875 = vpop.f32.mrf.mxu0
    %v1876 = vadd.f32 %v1665, %v1875
    %1877 = vmatmul.bf16.gmra.mxu0 %v1615
    %v1878 = vpop.f32.mrf.mxu0
    %v1879 = vadd.f32 %v1665, %v1878
    %v1880 = vpop.f32.mrf.mxu0
    %v1881 = vadd.f32 %v1665, %v1880
    %1882 = vmatmul.bf16.gmra.mxu0 %v1617
    %v1883 = vpop.f32.mrf.mxu0
    %v1884 = vadd.f32 %v1665, %v1883
    %v1885 = vpop.f32.mrf.mxu0
    %v1886 = vadd.f32 %v1665, %v1885
    %1887 = vmatmul.bf16.gmra.mxu0 %v1619
    %v1888 = vpop.f32.mrf.mxu0
    %v1889 = vadd.f32 %v1665, %v1888
    %v1890 = vpop.f32.mrf.mxu0
    %v1891 = vadd.f32 %v1665, %v1890
    %1892 = vmatmul.bf16.gmra.mxu0 %v1621
    %v1893 = vpop.f32.mrf.mxu0
    %v1894 = vadd.f32 %v1665, %v1893
    %v1895 = vpop.f32.mrf.mxu0
    %v1896 = vadd.f32 %v1665, %v1895
    %1897 = vmatmul.bf16.gmra.mxu0 %v1623
    %v1898 = vpop.f32.mrf.mxu0
    %v1899 = vadd.f32 %v1665, %v1898
    %v1900 = vpop.f32.mrf.mxu0
    %v1901 = vadd.f32 %v1665, %v1900
    %1902 = vmatmul.bf16.gmra.mxu0 %v1625
    %v1903 = vpop.f32.mrf.mxu0
    %v1904 = vadd.f32 %v1665, %v1903
    %v1905 = vpop.f32.mrf.mxu0
    %v1906 = vadd.f32 %v1665, %v1905
    %1907 = vmatmul.bf16.gmra.mxu0 %v1627
    %v1908 = vpop.f32.mrf.mxu0
    %v1909 = vadd.f32 %v1665, %v1908
    %v1910 = vpop.f32.mrf.mxu0
    %v1911 = vadd.f32 %v1665, %v1910
    %1912 = vmatmul.bf16.gmra.mxu0 %v1629
    %v1913 = vpop.f32.mrf.mxu0
    %v1914 = vadd.f32 %v1665, %v1913
    %v1915 = vpop.f32.mrf.mxu0
    %v1916 = vadd.f32 %v1665, %v1915
    %1917 = vdwg.mxu0
    %1918 = vmatpush.bf16.msra.mxu0 %v1795
    %1919 = vmatpush.bf16.msra.mxu0 %v1793
    %1920 = vmatpush.bf16.msra.mxu0 %v1791
    %1921 = vmatpush.bf16.msra.mxu0 %v1789
    %1922 = vmatpush.bf16.msra.mxu0 %v1787
    %1923 = vmatpush.bf16.msra.mxu0 %v1785
    %1924 = vmatpush.bf16.msra.mxu0 %v1783
    %1925 = vmatpush.bf16.msra.mxu0 %v1781
    %1926 = vmatmul.bf16.gmra.mxu0 %v1600
    %v1927 = vpop.f32.mrf.mxu0
    %v1928 = vadd.f32 %v1839, %v1927
    %v1929 = vpop.f32.mrf.mxu0
    %v1930 = vadd.f32 %v1841, %v1929
    %1931 = vmatmul.bf16.gmra.mxu0 %v1602
    %v1932 = vpop.f32.mrf.mxu0
    %v1933 = vadd.f32 %v1844, %v1932
    %v1934 = vpop.f32.mrf.mxu0
    %v1935 = vadd.f32 %v1846, %v1934
    %1936 = vmatmul.bf16.gmra.mxu0 %v1604
    %v1937 = vpop.f32.mrf.mxu0
    %v1938 = vadd.f32 %v1849, %v1937
    %v1939 = vpop.f32.mrf.mxu0
    %v1940 = vadd.f32 %v1851, %v1939
    %1941 = vmatmul.bf16.gmra.mxu0 %v1606
    %v1942 = vpop.f32.mrf.mxu0
    %v1943 = vadd.f32 %v1854, %v1942
    %v1944 = vpop.f32.mrf.mxu0
    %v1945 = vadd.f32 %v1856, %v1944
    %1946 = vmatmul.bf16.gmra.mxu0 %v1608
    %v1947 = vpop.f32.mrf.mxu0
    %v1948 = vadd.f32 %v1859, %v1947
    %v1949 = vpop.f32.mrf.mxu0
    %v1950 = vadd.f32 %v1861, %v1949
    %1951 = vmatmul.bf16.gmra.mxu0 %v1610
    %v1952 = vpop.f32.mrf.mxu0
    %v1953 = vadd.f32 %v1864, %v1952
    %v1954 = vpop.f32.mrf.mxu0
    %v1955 = vadd.f32 %v1866, %v1954
    %1956 = vmatmul.bf16.gmra.mxu0 %v1612
    %v1957 = vpop.f32.mrf.mxu0
    %v1958 = vadd.f32 %v1869, %v1957
    %v1959 = vpop.f32.mrf.mxu0
    %v1960 = vadd.f32 %v1871, %v1959
    %1961 = vmatmul.bf16.gmra.mxu0 %v1614
    %v1962 = vpop.f32.mrf.mxu0
    %v1963 = vadd.f32 %v1874, %v1962
    %v1964 = vpop.f32.mrf.mxu0
    %v1965 = vadd.f32 %v1876, %v1964
    %1966 = vmatmul.bf16.gmra.mxu0 %v1616
    %v1967 = vpop.f32.mrf.mxu0
    %v1968 = vadd.f32 %v1879, %v1967
    %v1969 = vpop.f32.mrf.mxu0
    %v1970 = vadd.f32 %v1881, %v1969
    %1971 = vmatmul.bf16.gmra.mxu0 %v1618
    %v1972 = vpop.f32.mrf.mxu0
    %v1973 = vadd.f32 %v1884, %v1972
    %v1974 = vpop.f32.mrf.mxu0
    %v1975 = vadd.f32 %v1886, %v1974
    %1976 = vmatmul.bf16.gmra.mxu0 %v1620
    %v1977 = vpop.f32.mrf.mxu0
    %v1978 = vadd.f32 %v1889, %v1977
    %v1979 = vpop.f32.mrf.mxu0
    %v1980 = vadd.f32 %v1891, %v1979
    %1981 = vmatmul.bf16.gmra.mxu0 %v1622
    %v1982 = vpop.f32.mrf.mxu0
    %v1983 = vadd.f32 %v1894, %v1982
    %v1984 = vpop.f32.mrf.mxu0
    %v1985 = vadd.f32 %v1896, %v1984
    %1986 = vmatmul.bf16.gmra.mxu0 %v1624
    %v1987 = vpop.f32.mrf.mxu0
    %v1988 = vadd.f32 %v1899, %v1987
    %v1989 = vpop.f32.mrf.mxu0
    %v1990 = vadd.f32 %v1901, %v1989
    %1991 = vmatmul.bf16.gmra.mxu0 %v1626
    %v1992 = vpop.f32.mrf.mxu0
    %v1993 = vadd.f32 %v1904, %v1992
    %v1994 = vpop.f32.mrf.mxu0
    %v1995 = vadd.f32 %v1906, %v1994
    %1996 = vmatmul.bf16.gmra.mxu0 %v1628
    %v1997 = vpop.f32.mrf.mxu0
    %v1998 = vadd.f32 %v1909, %v1997
    %v1999 = vpop.f32.mrf.mxu0
    %v2000 = vadd.f32 %v1911, %v1999
    %2001 = vmatmul.bf16.gmra.mxu0 %v1630
    %v2002 = vpop.f32.mrf.mxu0
    %v2003 = vadd.f32 %v1914, %v2002
    %v2004 = vpop.f32.mrf.mxu0
    %v2005 = vadd.f32 %v1916, %v2004
    %2006 = vdwg.mxu0
    %2007 = vmatpush.bf16.msra.mxu0 %v1780
    %2008 = vmatpush.bf16.msra.mxu0 %v1778
    %2009 = vmatpush.bf16.msra.mxu0 %v1776
    %2010 = vmatpush.bf16.msra.mxu0 %v1774
    %2011 = vmatpush.bf16.msra.mxu0 %v1772
    %2012 = vmatpush.bf16.msra.mxu0 %v1770
    %2013 = vmatpush.bf16.msra.mxu0 %v1768
    %2014 = vmatpush.bf16.msra.mxu0 %v1766
    %2015 = vmatmul.bf16.gmra.mxu0 %v1599
    %v2016 = vpop.f32.mrf.mxu0
    %v2017 = vadd.f32 %v1666, %v2016
    %v2018 = vpop.f32.mrf.mxu0
    %v2019 = vadd.f32 %v1666, %v2018
    %2020 = vmatmul.bf16.gmra.mxu0 %v1601
    %v2021 = vpop.f32.mrf.mxu0
    %v2022 = vadd.f32 %v1666, %v2021
    %v2023 = vpop.f32.mrf.mxu0
    %v2024 = vadd.f32 %v1666, %v2023
    %2025 = vmatmul.bf16.gmra.mxu0 %v1603
    %v2026 = vpop.f32.mrf.mxu0
    %v2027 = vadd.f32 %v1666, %v2026
    %v2028 = vpop.f32.mrf.mxu0
    %v2029 = vadd.f32 %v1666, %v2028
    %2030 = vmatmul.bf16.gmra.mxu0 %v1605
    %v2031 = vpop.f32.mrf.mxu0
    %v2032 = vadd.f32 %v1666, %v2031
    %v2033 = vpop.f32.mrf.mxu0
    %v2034 = vadd.f32 %v1666, %v2033
    %2035 = vmatmul.bf16.gmra.mxu0 %v1607
    %v2036 = vpop.f32.mrf.mxu0
    %v2037 = vadd.f32 %v1666, %v2036
    %v2038 = vpop.f32.mrf.mxu0
    %v2039 = vadd.f32 %v1666, %v2038
    %2040 = vmatmul.bf16.gmra.mxu0 %v1609
    %v2041 = vpop.f32.mrf.mxu0
    %v2042 = vadd.f32 %v1666, %v2041
    %v2043 = vpop.f32.mrf.mxu0
    %v2044 = vadd.f32 %v1666, %v2043
    %2045 = vmatmul.bf16.gmra.mxu0 %v1611
    %v2046 = vpop.f32.mrf.mxu0
    %v2047 = vadd.f32 %v1666, %v2046
    %v2048 = vpop.f32.mrf.mxu0
    %v2049 = vadd.f32 %v1666, %v2048
    %2050 = vmatmul.bf16.gmra.mxu0 %v1613
    %v2051 = vpop.f32.mrf.mxu0
    %v2052 = vadd.f32 %v1666, %v2051
    %v2053 = vpop.f32.mrf.mxu0
    %v2054 = vadd.f32 %v1666, %v2053
    %2055 = vmatmul.bf16.gmra.mxu0 %v1615
    %v2056 = vpop.f32.mrf.mxu0
    %v2057 = vadd.f32 %v1666, %v2056
    %v2058 = vpop.f32.mrf.mxu0
    %v2059 = vadd.f32 %v1666, %v2058
    %2060 = vmatmul.bf16.gmra.mxu0 %v1617
    %v2061 = vpop.f32.mrf.mxu0
    %v2062 = vadd.f32 %v1666, %v2061
    %v2063 = vpop.f32.mrf.mxu0
    %v2064 = vadd.f32 %v1666, %v2063
    %2065 = vmatmul.bf16.gmra.mxu0 %v1619
    %v2066 = vpop.f32.mrf.mxu0
    %v2067 = vadd.f32 %v1666, %v2066
    %v2068 = vpop.f32.mrf.mxu0
    %v2069 = vadd.f32 %v1666, %v2068
    %2070 = vmatmul.bf16.gmra.mxu0 %v1621
    %v2071 = vpop.f32.mrf.mxu0
    %v2072 = vadd.f32 %v1666, %v2071
    %v2073 = vpop.f32.mrf.mxu0
    %v2074 = vadd.f32 %v1666, %v2073
    %2075 = vmatmul.bf16.gmra.mxu0 %v1623
    %v2076 = vpop.f32.mrf.mxu0
    %v2077 = vadd.f32 %v1666, %v2076
    %v2078 = vpop.f32.mrf.mxu0
    %v2079 = vadd.f32 %v1666, %v2078
    %2080 = vmatmul.bf16.gmra.mxu0 %v1625
    %v2081 = vpop.f32.mrf.mxu0
    %v2082 = vadd.f32 %v1666, %v2081
    %v2083 = vpop.f32.mrf.mxu0
    %v2084 = vadd.f32 %v1666, %v2083
    %2085 = vmatmul.bf16.gmra.mxu0 %v1627
    %v2086 = vpop.f32.mrf.mxu0
    %v2087 = vadd.f32 %v1666, %v2086
    %v2088 = vpop.f32.mrf.mxu0
    %v2089 = vadd.f32 %v1666, %v2088
    %2090 = vmatmul.bf16.gmra.mxu0 %v1629
    %v2091 = vpop.f32.mrf.mxu0
    %v2092 = vadd.f32 %v1666, %v2091
    %v2093 = vpop.f32.mrf.mxu0
    %v2094 = vadd.f32 %v1666, %v2093
    %2095 = vdwg.mxu0
    %2096 = vmatpush.bf16.msra.mxu0 %v1796
    %2097 = vmatpush.bf16.msra.mxu0 %v1794
    %2098 = vmatpush.bf16.msra.mxu0 %v1792
    %2099 = vmatpush.bf16.msra.mxu0 %v1790
    %2100 = vmatpush.bf16.msra.mxu0 %v1788
    %2101 = vmatpush.bf16.msra.mxu0 %v1786
    %2102 = vmatpush.bf16.msra.mxu0 %v1784
    %2103 = vmatpush.bf16.msra.mxu0 %v1782
    %2104 = vmatmul.bf16.gmra.mxu0 %v1600
    %v2105 = vpop.f32.mrf.mxu0
    %v2106 = vadd.f32 %v2017, %v2105
    %v2107 = vpop.f32.mrf.mxu0
    %v2108 = vadd.f32 %v2019, %v2107
    %2109 = vmatmul.bf16.gmra.mxu0 %v1602
    %v2110 = vpop.f32.mrf.mxu0
    %v2111 = vadd.f32 %v2022, %v2110
    %v2112 = vpop.f32.mrf.mxu0
    %v2113 = vadd.f32 %v2024, %v2112
    %2114 = vmatmul.bf16.gmra.mxu0 %v1604
    %v2115 = vpop.f32.mrf.mxu0
    %v2116 = vadd.f32 %v2027, %v2115
    %v2117 = vpop.f32.mrf.mxu0
    %v2118 = vadd.f32 %v2029, %v2117
    %2119 = vmatmul.bf16.gmra.mxu0 %v1606
    %v2120 = vpop.f32.mrf.mxu0
    %v2121 = vadd.f32 %v2032, %v2120
    %v2122 = vpop.f32.mrf.mxu0
    %v2123 = vadd.f32 %v2034, %v2122
    %2124 = vmatmul.bf16.gmra.mxu0 %v1608
    %v2125 = vpop.f32.mrf.mxu0
    %v2126 = vadd.f32 %v2037, %v2125
    %v2127 = vpop.f32.mrf.mxu0
    %v2128 = vadd.f32 %v2039, %v2127
    %2129 = vmatmul.bf16.gmra.mxu0 %v1610
    %v2130 = vpop.f32.mrf.mxu0
    %v2131 = vadd.f32 %v2042, %v2130
    %v2132 = vpop.f32.mrf.mxu0
    %v2133 = vadd.f32 %v2044, %v2132
    %2134 = vmatmul.bf16.gmra.mxu0 %v1612
    %v2135 = vpop.f32.mrf.mxu0
    %v2136 = vadd.f32 %v2047, %v2135
    %v2137 = vpop.f32.mrf.mxu0
    %v2138 = vadd.f32 %v2049, %v2137
    %2139 = vmatmul.bf16.gmra.mxu0 %v1614
    %v2140 = vpop.f32.mrf.mxu0
    %v2141 = vadd.f32 %v2052, %v2140
    %v2142 = vpop.f32.mrf.mxu0
    %v2143 = vadd.f32 %v2054, %v2142
    %2144 = vmatmul.bf16.gmra.mxu0 %v1616
    %v2145 = vpop.f32.mrf.mxu0
    %v2146 = vadd.f32 %v2057, %v2145
    %v2147 = vpop.f32.mrf.mxu0
    %v2148 = vadd.f32 %v2059, %v2147
    %2149 = vmatmul.bf16.gmra.mxu0 %v1618
    %v2150 = vpop.f32.mrf.mxu0
    %v2151 = vadd.f32 %v2062, %v2150
    %v2152 = vpop.f32.mrf.mxu0
    %v2153 = vadd.f32 %v2064, %v2152
    %2154 = vmatmul.bf16.gmra.mxu0 %v1620
    %v2155 = vpop.f32.mrf.mxu0
    %v2156 = vadd.f32 %v2067, %v2155
    %v2157 = vpop.f32.mrf.mxu0
    %v2158 = vadd.f32 %v2069, %v2157
    %2159 = vmatmul.bf16.gmra.mxu0 %v1622
    %v2160 = vpop.f32.mrf.mxu0
    %v2161 = vadd.f32 %v2072, %v2160
    %v2162 = vpop.f32.mrf.mxu0
    %v2163 = vadd.f32 %v2074, %v2162
    %2164 = vmatmul.bf16.gmra.mxu0 %v1624
    %v2165 = vpop.f32.mrf.mxu0
    %v2166 = vadd.f32 %v2077, %v2165
    %v2167 = vpop.f32.mrf.mxu0
    %v2168 = vadd.f32 %v2079, %v2167
    %2169 = vmatmul.bf16.gmra.mxu0 %v1626
    %v2170 = vpop.f32.mrf.mxu0
    %v2171 = vadd.f32 %v2082, %v2170
    %v2172 = vpop.f32.mrf.mxu0
    %v2173 = vadd.f32 %v2084, %v2172
    %2174 = vmatmul.bf16.gmra.mxu0 %v1628
    %v2175 = vpop.f32.mrf.mxu0
    %v2176 = vadd.f32 %v2087, %v2175
    %v2177 = vpop.f32.mrf.mxu0
    %v2178 = vadd.f32 %v2089, %v2177
    %2179 = vmatmul.bf16.gmra.mxu0 %v1630
    %v2180 = vpop.f32.mrf.mxu0
    %v2181 = vadd.f32 %v2092, %v2180
    %v2182 = vpop.f32.mrf.mxu0
    %v2183 = vadd.f32 %v2094, %v2182
    %2184 = vdwg.mxu0
    %v2185 = vmax.f32 %v1928, 0.0
    %v2186 = vmax.f32 %v2106, 0.0
    %v2187 = vmax.f32 %v1930, 0.0
    %v2188 = vmax.f32 %v2108, 0.0
    %v2189 = vmax.f32 %v1933, 0.0
    %v2190 = vmax.f32 %v2111, 0.0
    %v2191 = vmax.f32 %v1935, 0.0
    %v2192 = vmax.f32 %v2113, 0.0
    %v2193 = vmax.f32 %v1938, 0.0
    %v2194 = vmax.f32 %v2116, 0.0
    %v2195 = vmax.f32 %v1940, 0.0
    %v2196 = vmax.f32 %v2118, 0.0
    %v2197 = vmax.f32 %v1943, 0.0
    %v2198 = vmax.f32 %v2121, 0.0
    %v2199 = vmax.f32 %v1945, 0.0
    %v2200 = vmax.f32 %v2123, 0.0
    %v2201 = vmax.f32 %v1948, 0.0
    %v2202 = vmax.f32 %v2126, 0.0
    %v2203 = vmax.f32 %v1950, 0.0
    %v2204 = vmax.f32 %v2128, 0.0
    %v2205 = vmax.f32 %v1953, 0.0
    %v2206 = vmax.f32 %v2131, 0.0
    %v2207 = vmax.f32 %v1955, 0.0
    %v2208 = vmax.f32 %v2133, 0.0
    %v2209 = vmax.f32 %v1958, 0.0
    %v2210 = vmax.f32 %v2136, 0.0
    %v2211 = vmax.f32 %v1960, 0.0
    %v2212 = vmax.f32 %v2138, 0.0
    %v2213 = vmax.f32 %v1963, 0.0
    %v2214 = vmax.f32 %v2141, 0.0
    %v2215 = vmax.f32 %v1965, 0.0
    %v2216 = vmax.f32 %v2143, 0.0
    %v2217 = vmax.f32 %v1968, 0.0
    %v2218 = vmax.f32 %v2146, 0.0
    %v2219 = vmax.f32 %v1970, 0.0
    %v2220 = vmax.f32 %v2148, 0.0
    %v2221 = vmax.f32 %v1973, 0.0
    %v2222 = vmax.f32 %v2151, 0.0
    %v2223 = vmax.f32 %v1975, 0.0
    %v2224 = vmax.f32 %v2153, 0.0
    %v2225 = vmax.f32 %v1978, 0.0
    %v2226 = vmax.f32 %v2156, 0.0
    %v2227 = vmax.f32 %v1980, 0.0
    %v2228 = vmax.f32 %v2158, 0.0
    %v2229 = vmax.f32 %v1983, 0.0
    %v2230 = vmax.f32 %v2161, 0.0
    %v2231 = vmax.f32 %v1985, 0.0
    %v2232 = vmax.f32 %v2163, 0.0
    %v2233 = vmax.f32 %v1988, 0.0
    %v2234 = vmax.f32 %v2166, 0.0
    %v2235 = vmax.f32 %v1990, 0.0
    %v2236 = vmax.f32 %v2168, 0.0
    %v2237 = vmax.f32 %v1993, 0.0
    %v2238 = vmax.f32 %v2171, 0.0
    %v2239 = vmax.f32 %v1995, 0.0
    %v2240 = vmax.f32 %v2173, 0.0
    %v2241 = vmax.f32 %v1998, 0.0
    %v2242 = vmax.f32 %v2176, 0.0
    %v2243 = vmax.f32 %v2000, 0.0
    %v2244 = vmax.f32 %v2178, 0.0
    %v2245 = vmax.f32 %v2003, 0.0
    %v2246 = vmax.f32 %v2181, 0.0
    %v2247 = vmax.f32 %v2005, 0.0
    %v2248 = vmax.f32 %v2183, 0.0
    %v2249 = vpack.c.bf16 %v2187, %v2185
    %v2250 = vpack.c.bf16 %v2188, %v2186
    %v2251 = vpack.c.bf16 %v2191, %v2189
    %v2252 = vpack.c.bf16 %v2192, %v2190
    %v2253 = vpack.c.bf16 %v2195, %v2193
    %v2254 = vpack.c.bf16 %v2196, %v2194
    %v2255 = vpack.c.bf16 %v2199, %v2197
    %v2256 = vpack.c.bf16 %v2200, %v2198
    %v2257 = vpack.c.bf16 %v2203, %v2201
    %v2258 = vpack.c.bf16 %v2204, %v2202
    %v2259 = vpack.c.bf16 %v2207, %v2205
    %v2260 = vpack.c.bf16 %v2208, %v2206
    %v2261 = vpack.c.bf16 %v2211, %v2209
    %v2262 = vpack.c.bf16 %v2212, %v2210
    %v2263 = vpack.c.bf16 %v2215, %v2213
    %v2264 = vpack.c.bf16 %v2216, %v2214
    %v2265 = vpack.c.bf16 %v2219, %v2217
    %v2266 = vpack.c.bf16 %v2220, %v2218
    %v2267 = vpack.c.bf16 %v2223, %v2221
    %v2268 = vpack.c.bf16 %v2224, %v2222
    %v2269 = vpack.c.bf16 %v2227, %v2225
    %v2270 = vpack.c.bf16 %v2228, %v2226
    %v2271 = vpack.c.bf16 %v2231, %v2229
    %v2272 = vpack.c.bf16 %v2232, %v2230
    %v2273 = vpack.c.bf16 %v2235, %v2233
    %v2274 = vpack.c.bf16 %v2236, %v2234
    %v2275 = vpack.c.bf16 %v2239, %v2237
    %v2276 = vpack.c.bf16 %v2240, %v2238
    %v2277 = vpack.c.bf16 %v2243, %v2241
    %v2278 = vpack.c.bf16 %v2244, %v2242
    %v2279 = vpack.c.bf16 %v2247, %v2245
    %v2280 = vpack.c.bf16 %v2248, %v2246
    %v2281 = vld [vmem:[%s6] sm:$0xff]
    %v2282 = vld [vmem:[%s6 + $0x8] sm:$0xff]
    %v2283 = vld [vmem:[%s6 + $0x10] sm:$0xff]
    %v2284 = vld [vmem:[%s6 + $0x18] sm:$0xff]
    %v2285 = vld [vmem:[%s6 + $0x20] sm:$0xff]
    %v2286 = vld [vmem:[%s6 + $0x28] sm:$0xff]
    %v2287 = vld [vmem:[%s6 + $0x30] sm:$0xff]
    %v2288 = vld [vmem:[%s6 + $0x38] sm:$0xff]
    %v2289 = vld [vmem:[%s6 + $0x40] sm:$0xff]
    %v2290 = vld [vmem:[%s6 + $0x48] sm:$0xff]
    %v2291 = vld [vmem:[%s6 + $0x50] sm:$0xff]
    %v2292 = vld [vmem:[%s6 + $0x58] sm:$0xff]
    %v2293 = vld [vmem:[%s6 + $0x60] sm:$0xff]
    %v2294 = vld [vmem:[%s6 + $0x68] sm:$0xff]
    %v2295 = vld [vmem:[%s6 + $0x70] sm:$0xff]
    %v2296 = vld [vmem:[%s6 + $0x78] sm:$0xff]
    %v2297 = vld [vmem:[%s6 + $0x80] sm:$0xff]
    %v2298 = vld [vmem:[%s6 + $0x88] sm:$0xff]
    %v2299 = vld [vmem:[%s6 + $0x90] sm:$0xff]
    %v2300 = vld [vmem:[%s6 + $0x98] sm:$0xff]
    %v2301 = vld [vmem:[%s6 + $0xa0] sm:$0xff]
    %v2302 = vld [vmem:[%s6 + $0xa8] sm:$0xff]
    %v2303 = vld [vmem:[%s6 + $0xb0] sm:$0xff]
    %v2304 = vld [vmem:[%s6 + $0xb8] sm:$0xff]
    %v2305 = vld [vmem:[%s6 + $0xc0] sm:$0xff]
    %v2306 = vld [vmem:[%s6 + $0xc8] sm:$0xff]
    %v2307 = vld [vmem:[%s6 + $0xd0] sm:$0xff]
    %v2308 = vld [vmem:[%s6 + $0xd8] sm:$0xff]
    %v2309 = vld [vmem:[%s6 + $0xe0] sm:$0xff]
    %v2310 = vld [vmem:[%s6 + $0xe8] sm:$0xff]
    %v2311 = vld [vmem:[%s6 + $0xf0] sm:$0xff]
    %v2312 = vld [vmem:[%s6 + $0xf8] sm:$0xff]
    %v2313 = vld [vmem:[%s7] sm:$0x3]
    %v2315 = vperm.slane %v2313, 0
    %v2316 = vperm.slane %v2313, 1
    %v2351 = vunpack.c.l.b16 %v2281
    %v2352 = vunpack.c.h.b16 %v2281
    %v2353 = vunpack.c.l.b16 %v2282
    %v2354 = vunpack.c.h.b16 %v2282
    %v2355 = vunpack.c.l.b16 %v2283
    %v2356 = vunpack.c.h.b16 %v2283
    %v2357 = vunpack.c.l.b16 %v2284
    %v2358 = vunpack.c.h.b16 %v2284
    %v2359 = vunpack.c.l.b16 %v2285
    %v2360 = vunpack.c.h.b16 %v2285
    %v2361 = vunpack.c.l.b16 %v2286
    %v2362 = vunpack.c.h.b16 %v2286
    %v2363 = vunpack.c.l.b16 %v2287
    %v2364 = vunpack.c.h.b16 %v2287
    %v2365 = vunpack.c.l.b16 %v2288
    %v2366 = vunpack.c.h.b16 %v2288
    %v2367 = vunpack.c.l.b16 %v2289
    %v2368 = vunpack.c.h.b16 %v2289
    %v2369 = vunpack.c.l.b16 %v2290
    %v2370 = vunpack.c.h.b16 %v2290
    %v2371 = vunpack.c.l.b16 %v2291
    %v2372 = vunpack.c.h.b16 %v2291
    %v2373 = vunpack.c.l.b16 %v2292
    %v2374 = vunpack.c.h.b16 %v2292
    %v2375 = vunpack.c.l.b16 %v2293
    %v2376 = vunpack.c.h.b16 %v2293
    %v2377 = vunpack.c.l.b16 %v2294
    %v2378 = vunpack.c.h.b16 %v2294
    %v2379 = vunpack.c.l.b16 %v2295
    %v2380 = vunpack.c.h.b16 %v2295
    %v2381 = vunpack.c.l.b16 %v2296
    %v2382 = vunpack.c.h.b16 %v2296
    %v2383 = vunpack.c.l.b16 %v2297
    %v2384 = vunpack.c.h.b16 %v2297
    %v2385 = vunpack.c.l.b16 %v2298
    %v2386 = vunpack.c.h.b16 %v2298
    %v2387 = vunpack.c.l.b16 %v2299
    %v2388 = vunpack.c.h.b16 %v2299
    %v2389 = vunpack.c.l.b16 %v2300
    %v2390 = vunpack.c.h.b16 %v2300
    %v2391 = vunpack.c.l.b16 %v2301
    %v2392 = vunpack.c.h.b16 %v2301
    %v2393 = vunpack.c.l.b16 %v2302
    %v2394 = vunpack.c.h.b16 %v2302
    %v2395 = vunpack.c.l.b16 %v2303
    %v2396 = vunpack.c.h.b16 %v2303
    %v2397 = vunpack.c.l.b16 %v2304
    %v2398 = vunpack.c.h.b16 %v2304
    %v2399 = vunpack.c.l.b16 %v2305
    %v2400 = vunpack.c.h.b16 %v2305
    %v2401 = vunpack.c.l.b16 %v2306
    %v2402 = vunpack.c.h.b16 %v2306
    %v2403 = vunpack.c.l.b16 %v2307
    %v2404 = vunpack.c.h.b16 %v2307
    %v2405 = vunpack.c.l.b16 %v2308
    %v2406 = vunpack.c.h.b16 %v2308
    %v2407 = vunpack.c.l.b16 %v2309
    %v2408 = vunpack.c.h.b16 %v2309
    %v2409 = vunpack.c.l.b16 %v2310
    %v2410 = vunpack.c.h.b16 %v2310
    %v2411 = vunpack.c.l.b16 %v2311
    %v2412 = vunpack.c.h.b16 %v2311
    %v2413 = vunpack.c.l.b16 %v2312
    %v2414 = vunpack.c.h.b16 %v2312
    %v2415 = vpack.c.b16 %v2353, %v2351
    %v2416 = vpack.c.b16 %v2354, %v2352
    %v2417 = vpack.c.b16 %v2357, %v2355
    %v2418 = vpack.c.b16 %v2358, %v2356
    %v2419 = vpack.c.b16 %v2361, %v2359
    %v2420 = vpack.c.b16 %v2362, %v2360
    %v2421 = vpack.c.b16 %v2365, %v2363
    %v2422 = vpack.c.b16 %v2366, %v2364
    %v2423 = vpack.c.b16 %v2369, %v2367
    %v2424 = vpack.c.b16 %v2370, %v2368
    %v2425 = vpack.c.b16 %v2373, %v2371
    %v2426 = vpack.c.b16 %v2374, %v2372
    %v2427 = vpack.c.b16 %v2377, %v2375
    %v2428 = vpack.c.b16 %v2378, %v2376
    %v2429 = vpack.c.b16 %v2381, %v2379
    %v2430 = vpack.c.b16 %v2382, %v2380
    %v2431 = vpack.c.b16 %v2385, %v2383
    %v2432 = vpack.c.b16 %v2386, %v2384
    %v2433 = vpack.c.b16 %v2389, %v2387
    %v2434 = vpack.c.b16 %v2390, %v2388
    %v2435 = vpack.c.b16 %v2393, %v2391
    %v2436 = vpack.c.b16 %v2394, %v2392
    %v2437 = vpack.c.b16 %v2397, %v2395
    %v2438 = vpack.c.b16 %v2398, %v2396
    %v2439 = vpack.c.b16 %v2401, %v2399
    %v2440 = vpack.c.b16 %v2402, %v2400
    %v2441 = vpack.c.b16 %v2405, %v2403
    %v2442 = vpack.c.b16 %v2406, %v2404
    %v2443 = vpack.c.b16 %v2409, %v2407
    %v2444 = vpack.c.b16 %v2410, %v2408
    %v2445 = vpack.c.b16 %v2413, %v2411
    %v2446 = vpack.c.b16 %v2414, %v2412
    %2479 = vmatpush.bf16.msra.mxu0 %v2429
    %2480 = vmatpush.bf16.msra.mxu0 %v2427
    %2481 = vmatpush.bf16.msra.mxu0 %v2425
    %2482 = vmatpush.bf16.msra.mxu0 %v2423
    %2483 = vmatpush.bf16.msra.mxu0 %v2421
    %2484 = vmatpush.bf16.msra.mxu0 %v2419
    %2485 = vmatpush.bf16.msra.mxu0 %v2417
    %2486 = vmatpush.bf16.msra.mxu0 %v2415
    %2487 = vmatmul.bf16.gmra.mxu0 %v2249
    %v2488 = vpop.f32.mrf.mxu0
    %v2489 = vadd.f32 %v2315, %v2488
    %v2490 = vpop.f32.mrf.mxu0
    %v2491 = vadd.f32 %v2315, %v2490
    %2492 = vmatmul.bf16.gmra.mxu0 %v2251
    %v2493 = vpop.f32.mrf.mxu0
    %v2494 = vadd.f32 %v2315, %v2493
    %v2495 = vpop.f32.mrf.mxu0
    %v2496 = vadd.f32 %v2315, %v2495
    %2497 = vmatmul.bf16.gmra.mxu0 %v2253
    %v2498 = vpop.f32.mrf.mxu0
    %v2499 = vadd.f32 %v2315, %v2498
    %v2500 = vpop.f32.mrf.mxu0
    %v2501 = vadd.f32 %v2315, %v2500
    %2502 = vmatmul.bf16.gmra.mxu0 %v2255
    %v2503 = vpop.f32.mrf.mxu0
    %v2504 = vadd.f32 %v2315, %v2503
    %v2505 = vpop.f32.mrf.mxu0
    %v2506 = vadd.f32 %v2315, %v2505
    %2507 = vmatmul.bf16.gmra.mxu0 %v2257
    %v2508 = vpop.f32.mrf.mxu0
    %v2509 = vadd.f32 %v2315, %v2508
    %v2510 = vpop.f32.mrf.mxu0
    %v2511 = vadd.f32 %v2315, %v2510
    %2512 = vmatmul.bf16.gmra.mxu0 %v2259
    %v2513 = vpop.f32.mrf.mxu0
    %v2514 = vadd.f32 %v2315, %v2513
    %v2515 = vpop.f32.mrf.mxu0
    %v2516 = vadd.f32 %v2315, %v2515
    %2517 = vmatmul.bf16.gmra.mxu0 %v2261
    %v2518 = vpop.f32.mrf.mxu0
    %v2519 = vadd.f32 %v2315, %v2518
    %v2520 = vpop.f32.mrf.mxu0
    %v2521 = vadd.f32 %v2315, %v2520
    %2522 = vmatmul.bf16.gmra.mxu0 %v2263
    %v2523 = vpop.f32.mrf.mxu0
    %v2524 = vadd.f32 %v2315, %v2523
    %v2525 = vpop.f32.mrf.mxu0
    %v2526 = vadd.f32 %v2315, %v2525
    %2527 = vmatmul.bf16.gmra.mxu0 %v2265
    %v2528 = vpop.f32.mrf.mxu0
    %v2529 = vadd.f32 %v2315, %v2528
    %v2530 = vpop.f32.mrf.mxu0
    %v2531 = vadd.f32 %v2315, %v2530
    %2532 = vmatmul.bf16.gmra.mxu0 %v2267
    %v2533 = vpop.f32.mrf.mxu0
    %v2534 = vadd.f32 %v2315, %v2533
    %v2535 = vpop.f32.mrf.mxu0
    %v2536 = vadd.f32 %v2315, %v2535
    %2537 = vmatmul.bf16.gmra.mxu0 %v2269
    %v2538 = vpop.f32.mrf.mxu0
    %v2539 = vadd.f32 %v2315, %v2538
    %v2540 = vpop.f32.mrf.mxu0
    %v2541 = vadd.f32 %v2315, %v2540
    %2542 = vmatmul.bf16.gmra.mxu0 %v2271
    %v2543 = vpop.f32.mrf.mxu0
    %v2544 = vadd.f32 %v2315, %v2543
    %v2545 = vpop.f32.mrf.mxu0
    %v2546 = vadd.f32 %v2315, %v2545
    %2547 = vmatmul.bf16.gmra.mxu0 %v2273
    %v2548 = vpop.f32.mrf.mxu0
    %v2549 = vadd.f32 %v2315, %v2548
    %v2550 = vpop.f32.mrf.mxu0
    %v2551 = vadd.f32 %v2315, %v2550
    %2552 = vmatmul.bf16.gmra.mxu0 %v2275
    %v2553 = vpop.f32.mrf.mxu0
    %v2554 = vadd.f32 %v2315, %v2553
    %v2555 = vpop.f32.mrf.mxu0
    %v2556 = vadd.f32 %v2315, %v2555
    %2557 = vmatmul.bf16.gmra.mxu0 %v2277
    %v2558 = vpop.f32.mrf.mxu0
    %v2559 = vadd.f32 %v2315, %v2558
    %v2560 = vpop.f32.mrf.mxu0
    %v2561 = vadd.f32 %v2315, %v2560
    %2562 = vmatmul.bf16.gmra.mxu0 %v2279
    %v2563 = vpop.f32.mrf.mxu0
    %v2564 = vadd.f32 %v2315, %v2563
    %v2565 = vpop.f32.mrf.mxu0
    %v2566 = vadd.f32 %v2315, %v2565
    %2567 = vdwg.mxu0
    %2568 = vmatpush.bf16.msra.mxu0 %v2445
    %2569 = vmatpush.bf16.msra.mxu0 %v2443
    %2570 = vmatpush.bf16.msra.mxu0 %v2441
    %2571 = vmatpush.bf16.msra.mxu0 %v2439
    %2572 = vmatpush.bf16.msra.mxu0 %v2437
    %2573 = vmatpush.bf16.msra.mxu0 %v2435
    %2574 = vmatpush.bf16.msra.mxu0 %v2433
    %2575 = vmatpush.bf16.msra.mxu0 %v2431
    %2576 = vmatmul.bf16.gmra.mxu0 %v2250
    %v2577 = vpop.f32.mrf.mxu0
    %v2578 = vadd.f32 %v2489, %v2577
    %v2579 = vpop.f32.mrf.mxu0
    %v2580 = vadd.f32 %v2491, %v2579
    %2581 = vmatmul.bf16.gmra.mxu0 %v2252
    %v2582 = vpop.f32.mrf.mxu0
    %v2583 = vadd.f32 %v2494, %v2582
    %v2584 = vpop.f32.mrf.mxu0
    %v2585 = vadd.f32 %v2496, %v2584
    %2586 = vmatmul.bf16.gmra.mxu0 %v2254
    %v2587 = vpop.f32.mrf.mxu0
    %v2588 = vadd.f32 %v2499, %v2587
    %v2589 = vpop.f32.mrf.mxu0
    %v2590 = vadd.f32 %v2501, %v2589
    %2591 = vmatmul.bf16.gmra.mxu0 %v2256
    %v2592 = vpop.f32.mrf.mxu0
    %v2593 = vadd.f32 %v2504, %v2592
    %v2594 = vpop.f32.mrf.mxu0
    %v2595 = vadd.f32 %v2506, %v2594
    %2596 = vmatmul.bf16.gmra.mxu0 %v2258
    %v2597 = vpop.f32.mrf.mxu0
    %v2598 = vadd.f32 %v2509, %v2597
    %v2599 = vpop.f32.mrf.mxu0
    %v2600 = vadd.f32 %v2511, %v2599
    %2601 = vmatmul.bf16.gmra.mxu0 %v2260
    %v2602 = vpop.f32.mrf.mxu0
    %v2603 = vadd.f32 %v2514, %v2602
    %v2604 = vpop.f32.mrf.mxu0
    %v2605 = vadd.f32 %v2516, %v2604
    %2606 = vmatmul.bf16.gmra.mxu0 %v2262
    %v2607 = vpop.f32.mrf.mxu0
    %v2608 = vadd.f32 %v2519, %v2607
    %v2609 = vpop.f32.mrf.mxu0
    %v2610 = vadd.f32 %v2521, %v2609
    %2611 = vmatmul.bf16.gmra.mxu0 %v2264
    %v2612 = vpop.f32.mrf.mxu0
    %v2613 = vadd.f32 %v2524, %v2612
    %v2614 = vpop.f32.mrf.mxu0
    %v2615 = vadd.f32 %v2526, %v2614
    %2616 = vmatmul.bf16.gmra.mxu0 %v2266
    %v2617 = vpop.f32.mrf.mxu0
    %v2618 = vadd.f32 %v2529, %v2617
    %v2619 = vpop.f32.mrf.mxu0
    %v2620 = vadd.f32 %v2531, %v2619
    %2621 = vmatmul.bf16.gmra.mxu0 %v2268
    %v2622 = vpop.f32.mrf.mxu0
    %v2623 = vadd.f32 %v2534, %v2622
    %v2624 = vpop.f32.mrf.mxu0
    %v2625 = vadd.f32 %v2536, %v2624
    %2626 = vmatmul.bf16.gmra.mxu0 %v2270
    %v2627 = vpop.f32.mrf.mxu0
    %v2628 = vadd.f32 %v2539, %v2627
    %v2629 = vpop.f32.mrf.mxu0
    %v2630 = vadd.f32 %v2541, %v2629
    %2631 = vmatmul.bf16.gmra.mxu0 %v2272
    %v2632 = vpop.f32.mrf.mxu0
    %v2633 = vadd.f32 %v2544, %v2632
    %v2634 = vpop.f32.mrf.mxu0
    %v2635 = vadd.f32 %v2546, %v2634
    %2636 = vmatmul.bf16.gmra.mxu0 %v2274
    %v2637 = vpop.f32.mrf.mxu0
    %v2638 = vadd.f32 %v2549, %v2637
    %v2639 = vpop.f32.mrf.mxu0
    %v2640 = vadd.f32 %v2551, %v2639
    %2641 = vmatmul.bf16.gmra.mxu0 %v2276
    %v2642 = vpop.f32.mrf.mxu0
    %v2643 = vadd.f32 %v2554, %v2642
    %v2644 = vpop.f32.mrf.mxu0
    %v2645 = vadd.f32 %v2556, %v2644
    %2646 = vmatmul.bf16.gmra.mxu0 %v2278
    %v2647 = vpop.f32.mrf.mxu0
    %v2648 = vadd.f32 %v2559, %v2647
    %v2649 = vpop.f32.mrf.mxu0
    %v2650 = vadd.f32 %v2561, %v2649
    %2651 = vmatmul.bf16.gmra.mxu0 %v2280
    %v2652 = vpop.f32.mrf.mxu0
    %v2653 = vadd.f32 %v2564, %v2652
    %v2654 = vpop.f32.mrf.mxu0
    %v2655 = vadd.f32 %v2566, %v2654
    %2656 = vdwg.mxu0
    %2657 = vmatpush.bf16.msra.mxu0 %v2430
    %2658 = vmatpush.bf16.msra.mxu0 %v2428
    %2659 = vmatpush.bf16.msra.mxu0 %v2426
    %2660 = vmatpush.bf16.msra.mxu0 %v2424
    %2661 = vmatpush.bf16.msra.mxu0 %v2422
    %2662 = vmatpush.bf16.msra.mxu0 %v2420
    %2663 = vmatpush.bf16.msra.mxu0 %v2418
    %2664 = vmatpush.bf16.msra.mxu0 %v2416
    %2665 = vmatmul.bf16.gmra.mxu0 %v2249
    %v2666 = vpop.f32.mrf.mxu0
    %v2667 = vadd.f32 %v2316, %v2666
    %v2668 = vpop.f32.mrf.mxu0
    %v2669 = vadd.f32 %v2316, %v2668
    %2670 = vmatmul.bf16.gmra.mxu0 %v2251
    %v2671 = vpop.f32.mrf.mxu0
    %v2672 = vadd.f32 %v2316, %v2671
    %v2673 = vpop.f32.mrf.mxu0
    %v2674 = vadd.f32 %v2316, %v2673
    %2675 = vmatmul.bf16.gmra.mxu0 %v2253
    %v2676 = vpop.f32.mrf.mxu0
    %v2677 = vadd.f32 %v2316, %v2676
    %v2678 = vpop.f32.mrf.mxu0
    %v2679 = vadd.f32 %v2316, %v2678
    %2680 = vmatmul.bf16.gmra.mxu0 %v2255
    %v2681 = vpop.f32.mrf.mxu0
    %v2682 = vadd.f32 %v2316, %v2681
    %v2683 = vpop.f32.mrf.mxu0
    %v2684 = vadd.f32 %v2316, %v2683
    %2685 = vmatmul.bf16.gmra.mxu0 %v2257
    %v2686 = vpop.f32.mrf.mxu0
    %v2687 = vadd.f32 %v2316, %v2686
    %v2688 = vpop.f32.mrf.mxu0
    %v2689 = vadd.f32 %v2316, %v2688
    %2690 = vmatmul.bf16.gmra.mxu0 %v2259
    %v2691 = vpop.f32.mrf.mxu0
    %v2692 = vadd.f32 %v2316, %v2691
    %v2693 = vpop.f32.mrf.mxu0
    %v2694 = vadd.f32 %v2316, %v2693
    %2695 = vmatmul.bf16.gmra.mxu0 %v2261
    %v2696 = vpop.f32.mrf.mxu0
    %v2697 = vadd.f32 %v2316, %v2696
    %v2698 = vpop.f32.mrf.mxu0
    %v2699 = vadd.f32 %v2316, %v2698
    %2700 = vmatmul.bf16.gmra.mxu0 %v2263
    %v2701 = vpop.f32.mrf.mxu0
    %v2702 = vadd.f32 %v2316, %v2701
    %v2703 = vpop.f32.mrf.mxu0
    %v2704 = vadd.f32 %v2316, %v2703
    %2705 = vmatmul.bf16.gmra.mxu0 %v2265
    %v2706 = vpop.f32.mrf.mxu0
    %v2707 = vadd.f32 %v2316, %v2706
    %v2708 = vpop.f32.mrf.mxu0
    %v2709 = vadd.f32 %v2316, %v2708
    %2710 = vmatmul.bf16.gmra.mxu0 %v2267
    %v2711 = vpop.f32.mrf.mxu0
    %v2712 = vadd.f32 %v2316, %v2711
    %v2713 = vpop.f32.mrf.mxu0
    %v2714 = vadd.f32 %v2316, %v2713
    %2715 = vmatmul.bf16.gmra.mxu0 %v2269
    %v2716 = vpop.f32.mrf.mxu0
    %v2717 = vadd.f32 %v2316, %v2716
    %v2718 = vpop.f32.mrf.mxu0
    %v2719 = vadd.f32 %v2316, %v2718
    %2720 = vmatmul.bf16.gmra.mxu0 %v2271
    %v2721 = vpop.f32.mrf.mxu0
    %v2722 = vadd.f32 %v2316, %v2721
    %v2723 = vpop.f32.mrf.mxu0
    %v2724 = vadd.f32 %v2316, %v2723
    %2725 = vmatmul.bf16.gmra.mxu0 %v2273
    %v2726 = vpop.f32.mrf.mxu0
    %v2727 = vadd.f32 %v2316, %v2726
    %v2728 = vpop.f32.mrf.mxu0
    %v2729 = vadd.f32 %v2316, %v2728
    %2730 = vmatmul.bf16.gmra.mxu0 %v2275
    %v2731 = vpop.f32.mrf.mxu0
    %v2732 = vadd.f32 %v2316, %v2731
    %v2733 = vpop.f32.mrf.mxu0
    %v2734 = vadd.f32 %v2316, %v2733
    %2735 = vmatmul.bf16.gmra.mxu0 %v2277
    %v2736 = vpop.f32.mrf.mxu0
    %v2737 = vadd.f32 %v2316, %v2736
    %v2738 = vpop.f32.mrf.mxu0
    %v2739 = vadd.f32 %v2316, %v2738
    %2740 = vmatmul.bf16.gmra.mxu0 %v2279
    %v2741 = vpop.f32.mrf.mxu0
    %v2742 = vadd.f32 %v2316, %v2741
    %v2743 = vpop.f32.mrf.mxu0
    %v2744 = vadd.f32 %v2316, %v2743
    %2745 = vdwg.mxu0
    %2746 = vmatpush.bf16.msra.mxu0 %v2446
    %2747 = vmatpush.bf16.msra.mxu0 %v2444
    %2748 = vmatpush.bf16.msra.mxu0 %v2442
    %2749 = vmatpush.bf16.msra.mxu0 %v2440
    %2750 = vmatpush.bf16.msra.mxu0 %v2438
    %2751 = vmatpush.bf16.msra.mxu0 %v2436
    %2752 = vmatpush.bf16.msra.mxu0 %v2434
    %2753 = vmatpush.bf16.msra.mxu0 %v2432
    %2754 = vmatmul.bf16.gmra.mxu0 %v2250
    %v2755 = vpop.f32.mrf.mxu0
    %v2756 = vadd.f32 %v2667, %v2755
    %v2757 = vpop.f32.mrf.mxu0
    %v2758 = vadd.f32 %v2669, %v2757
    %2759 = vmatmul.bf16.gmra.mxu0 %v2252
    %v2760 = vpop.f32.mrf.mxu0
    %v2761 = vadd.f32 %v2672, %v2760
    %v2762 = vpop.f32.mrf.mxu0
    %v2763 = vadd.f32 %v2674, %v2762
    %2764 = vmatmul.bf16.gmra.mxu0 %v2254
    %v2765 = vpop.f32.mrf.mxu0
    %v2766 = vadd.f32 %v2677, %v2765
    %v2767 = vpop.f32.mrf.mxu0
    %v2768 = vadd.f32 %v2679, %v2767
    %2769 = vmatmul.bf16.gmra.mxu0 %v2256
    %v2770 = vpop.f32.mrf.mxu0
    %v2771 = vadd.f32 %v2682, %v2770
    %v2772 = vpop.f32.mrf.mxu0
    %v2773 = vadd.f32 %v2684, %v2772
    %2774 = vmatmul.bf16.gmra.mxu0 %v2258
    %v2775 = vpop.f32.mrf.mxu0
    %v2776 = vadd.f32 %v2687, %v2775
    %v2777 = vpop.f32.mrf.mxu0
    %v2778 = vadd.f32 %v2689, %v2777
    %2779 = vmatmul.bf16.gmra.mxu0 %v2260
    %v2780 = vpop.f32.mrf.mxu0
    %v2781 = vadd.f32 %v2692, %v2780
    %v2782 = vpop.f32.mrf.mxu0
    %v2783 = vadd.f32 %v2694, %v2782
    %2784 = vmatmul.bf16.gmra.mxu0 %v2262
    %v2785 = vpop.f32.mrf.mxu0
    %v2786 = vadd.f32 %v2697, %v2785
    %v2787 = vpop.f32.mrf.mxu0
    %v2788 = vadd.f32 %v2699, %v2787
    %2789 = vmatmul.bf16.gmra.mxu0 %v2264
    %v2790 = vpop.f32.mrf.mxu0
    %v2791 = vadd.f32 %v2702, %v2790
    %v2792 = vpop.f32.mrf.mxu0
    %v2793 = vadd.f32 %v2704, %v2792
    %2794 = vmatmul.bf16.gmra.mxu0 %v2266
    %v2795 = vpop.f32.mrf.mxu0
    %v2796 = vadd.f32 %v2707, %v2795
    %v2797 = vpop.f32.mrf.mxu0
    %v2798 = vadd.f32 %v2709, %v2797
    %2799 = vmatmul.bf16.gmra.mxu0 %v2268
    %v2800 = vpop.f32.mrf.mxu0
    %v2801 = vadd.f32 %v2712, %v2800
    %v2802 = vpop.f32.mrf.mxu0
    %v2803 = vadd.f32 %v2714, %v2802
    %2804 = vmatmul.bf16.gmra.mxu0 %v2270
    %v2805 = vpop.f32.mrf.mxu0
    %v2806 = vadd.f32 %v2717, %v2805
    %v2807 = vpop.f32.mrf.mxu0
    %v2808 = vadd.f32 %v2719, %v2807
    %2809 = vmatmul.bf16.gmra.mxu0 %v2272
    %v2810 = vpop.f32.mrf.mxu0
    %v2811 = vadd.f32 %v2722, %v2810
    %v2812 = vpop.f32.mrf.mxu0
    %v2813 = vadd.f32 %v2724, %v2812
    %2814 = vmatmul.bf16.gmra.mxu0 %v2274
    %v2815 = vpop.f32.mrf.mxu0
    %v2816 = vadd.f32 %v2727, %v2815
    %v2817 = vpop.f32.mrf.mxu0
    %v2818 = vadd.f32 %v2729, %v2817
    %2819 = vmatmul.bf16.gmra.mxu0 %v2276
    %v2820 = vpop.f32.mrf.mxu0
    %v2821 = vadd.f32 %v2732, %v2820
    %v2822 = vpop.f32.mrf.mxu0
    %v2823 = vadd.f32 %v2734, %v2822
    %2824 = vmatmul.bf16.gmra.mxu0 %v2278
    %v2825 = vpop.f32.mrf.mxu0
    %v2826 = vadd.f32 %v2737, %v2825
    %v2827 = vpop.f32.mrf.mxu0
    %v2828 = vadd.f32 %v2739, %v2827
    %2829 = vmatmul.bf16.gmra.mxu0 %v2280
    %v2830 = vpop.f32.mrf.mxu0
    %v2831 = vadd.f32 %v2742, %v2830
    %v2832 = vpop.f32.mrf.mxu0
    %v2833 = vadd.f32 %v2744, %v2832
    %2834 = vdwg.mxu0
    %v2835 = vmax.f32 %v2578, 0.0
    %v2836 = vmax.f32 %v2756, 0.0
    %v2837 = vmax.f32 %v2580, 0.0
    %v2838 = vmax.f32 %v2758, 0.0
    %v2839 = vmax.f32 %v2583, 0.0
    %v2840 = vmax.f32 %v2761, 0.0
    %v2841 = vmax.f32 %v2585, 0.0
    %v2842 = vmax.f32 %v2763, 0.0
    %v2843 = vmax.f32 %v2588, 0.0
    %v2844 = vmax.f32 %v2766, 0.0
    %v2845 = vmax.f32 %v2590, 0.0
    %v2846 = vmax.f32 %v2768, 0.0
    %v2847 = vmax.f32 %v2593, 0.0
    %v2848 = vmax.f32 %v2771, 0.0
    %v2849 = vmax.f32 %v2595, 0.0
    %v2850 = vmax.f32 %v2773, 0.0
    %v2851 = vmax.f32 %v2598, 0.0
    %v2852 = vmax.f32 %v2776, 0.0
    %v2853 = vmax.f32 %v2600, 0.0
    %v2854 = vmax.f32 %v2778, 0.0
    %v2855 = vmax.f32 %v2603, 0.0
    %v2856 = vmax.f32 %v2781, 0.0
    %v2857 = vmax.f32 %v2605, 0.0
    %v2858 = vmax.f32 %v2783, 0.0
    %v2859 = vmax.f32 %v2608, 0.0
    %v2860 = vmax.f32 %v2786, 0.0
    %v2861 = vmax.f32 %v2610, 0.0
    %v2862 = vmax.f32 %v2788, 0.0
    %v2863 = vmax.f32 %v2613, 0.0
    %v2864 = vmax.f32 %v2791, 0.0
    %v2865 = vmax.f32 %v2615, 0.0
    %v2866 = vmax.f32 %v2793, 0.0
    %v2867 = vmax.f32 %v2618, 0.0
    %v2868 = vmax.f32 %v2796, 0.0
    %v2869 = vmax.f32 %v2620, 0.0
    %v2870 = vmax.f32 %v2798, 0.0
    %v2871 = vmax.f32 %v2623, 0.0
    %v2872 = vmax.f32 %v2801, 0.0
    %v2873 = vmax.f32 %v2625, 0.0
    %v2874 = vmax.f32 %v2803, 0.0
    %v2875 = vmax.f32 %v2628, 0.0
    %v2876 = vmax.f32 %v2806, 0.0
    %v2877 = vmax.f32 %v2630, 0.0
    %v2878 = vmax.f32 %v2808, 0.0
    %v2879 = vmax.f32 %v2633, 0.0
    %v2880 = vmax.f32 %v2811, 0.0
    %v2881 = vmax.f32 %v2635, 0.0
    %v2882 = vmax.f32 %v2813, 0.0
    %v2883 = vmax.f32 %v2638, 0.0
    %v2884 = vmax.f32 %v2816, 0.0
    %v2885 = vmax.f32 %v2640, 0.0
    %v2886 = vmax.f32 %v2818, 0.0
    %v2887 = vmax.f32 %v2643, 0.0
    %v2888 = vmax.f32 %v2821, 0.0
    %v2889 = vmax.f32 %v2645, 0.0
    %v2890 = vmax.f32 %v2823, 0.0
    %v2891 = vmax.f32 %v2648, 0.0
    %v2892 = vmax.f32 %v2826, 0.0
    %v2893 = vmax.f32 %v2650, 0.0
    %v2894 = vmax.f32 %v2828, 0.0
    %v2895 = vmax.f32 %v2653, 0.0
    %v2896 = vmax.f32 %v2831, 0.0
    %v2897 = vmax.f32 %v2655, 0.0
    %v2898 = vmax.f32 %v2833, 0.0
    %v2899 = vpack.c.bf16 %v2837, %v2835
    %v2900 = vpack.c.bf16 %v2838, %v2836
    %v2901 = vpack.c.bf16 %v2841, %v2839
    %v2902 = vpack.c.bf16 %v2842, %v2840
    %v2903 = vpack.c.bf16 %v2845, %v2843
    %v2904 = vpack.c.bf16 %v2846, %v2844
    %v2905 = vpack.c.bf16 %v2849, %v2847
    %v2906 = vpack.c.bf16 %v2850, %v2848
    %v2907 = vpack.c.bf16 %v2853, %v2851
    %v2908 = vpack.c.bf16 %v2854, %v2852
    %v2909 = vpack.c.bf16 %v2857, %v2855
    %v2910 = vpack.c.bf16 %v2858, %v2856
    %v2911 = vpack.c.bf16 %v2861, %v2859
    %v2912 = vpack.c.bf16 %v2862, %v2860
    %v2913 = vpack.c.bf16 %v2865, %v2863
    %v2914 = vpack.c.bf16 %v2866, %v2864
    %v2915 = vpack.c.bf16 %v2869, %v2867
    %v2916 = vpack.c.bf16 %v2870, %v2868
    %v2917 = vpack.c.bf16 %v2873, %v2871
    %v2918 = vpack.c.bf16 %v2874, %v2872
    %v2919 = vpack.c.bf16 %v2877, %v2875
    %v2920 = vpack.c.bf16 %v2878, %v2876
    %v2921 = vpack.c.bf16 %v2881, %v2879
    %v2922 = vpack.c.bf16 %v2882, %v2880
    %v2923 = vpack.c.bf16 %v2885, %v2883
    %v2924 = vpack.c.bf16 %v2886, %v2884
    %v2925 = vpack.c.bf16 %v2889, %v2887
    %v2926 = vpack.c.bf16 %v2890, %v2888
    %v2927 = vpack.c.bf16 %v2893, %v2891
    %v2928 = vpack.c.bf16 %v2894, %v2892
    %v2929 = vpack.c.bf16 %v2897, %v2895
    %v2930 = vpack.c.bf16 %v2898, %v2896
    %v2931 = vld [vmem:[#allocation5] sm:$0xff]
    %v2932 = vld [vmem:[#allocation5 + $0x8] sm:$0xff]
    %v2933 = vld [vmem:[#allocation5 + $0x10] sm:$0xff]
    %v2934 = vld [vmem:[#allocation5 + $0x18] sm:$0xff]
    %v2935 = vld [vmem:[#allocation5 + $0x20] sm:$0xff]
    %v2936 = vld [vmem:[#allocation5 + $0x28] sm:$0xff]
    %v2937 = vld [vmem:[#allocation5 + $0x30] sm:$0xff]
    %v2938 = vld [vmem:[#allocation5 + $0x38] sm:$0xff]
    %v2939 = vld [vmem:[#allocation5 + $0x40] sm:$0xff]
    %v2940 = vld [vmem:[#allocation5 + $0x48] sm:$0xff]
    %v2941 = vld [vmem:[#allocation5 + $0x50] sm:$0xff]
    %v2942 = vld [vmem:[#allocation5 + $0x58] sm:$0xff]
    %v2943 = vld [vmem:[#allocation5 + $0x60] sm:$0xff]
    %v2944 = vld [vmem:[#allocation5 + $0x68] sm:$0xff]
    %v2945 = vld [vmem:[#allocation5 + $0x70] sm:$0xff]
    %v2946 = vld [vmem:[#allocation5 + $0x78] sm:$0xff]
    %v2947 = vld [vmem:[#allocation5 + $0x80] sm:$0xff]
    %v2948 = vld [vmem:[#allocation5 + $0x88] sm:$0xff]
    %v2949 = vld [vmem:[#allocation5 + $0x90] sm:$0xff]
    %v2950 = vld [vmem:[#allocation5 + $0x98] sm:$0xff]
    %v2951 = vld [vmem:[#allocation5 + $0xa0] sm:$0xff]
    %v2952 = vld [vmem:[#allocation5 + $0xa8] sm:$0xff]
    %v2953 = vld [vmem:[#allocation5 + $0xb0] sm:$0xff]
    %v2954 = vld [vmem:[#allocation5 + $0xb8] sm:$0xff]
    %v2955 = vld [vmem:[#allocation5 + $0xc0] sm:$0xff]
    %v2956 = vld [vmem:[#allocation5 + $0xc8] sm:$0xff]
    %v2957 = vld [vmem:[#allocation5 + $0xd0] sm:$0xff]
    %v2958 = vld [vmem:[#allocation5 + $0xd8] sm:$0xff]
    %v2959 = vld [vmem:[#allocation5 + $0xe0] sm:$0xff]
    %v2960 = vld [vmem:[#allocation5 + $0xe8] sm:$0xff]
    %v2961 = vld [vmem:[#allocation5 + $0xf0] sm:$0xff]
    %v2962 = vld [vmem:[#allocation5 + $0xf8] sm:$0xff]
    %v2963 = vld [vmem:[%s9] sm:$0x3]
    %v2965 = vperm.slane %v2963, 0
    %v2966 = vperm.slane %v2963, 1
    %v3001 = vunpack.c.l.b16 %v2931
    %v3002 = vunpack.c.h.b16 %v2931
    %v3003 = vunpack.c.l.b16 %v2932
    %v3004 = vunpack.c.h.b16 %v2932
    %v3005 = vunpack.c.l.b16 %v2933
    %v3006 = vunpack.c.h.b16 %v2933
    %v3007 = vunpack.c.l.b16 %v2934
    %v3008 = vunpack.c.h.b16 %v2934
    %v3009 = vunpack.c.l.b16 %v2935
    %v3010 = vunpack.c.h.b16 %v2935
    %v3011 = vunpack.c.l.b16 %v2936
    %v3012 = vunpack.c.h.b16 %v2936
    %v3013 = vunpack.c.l.b16 %v2937
    %v3014 = vunpack.c.h.b16 %v2937
    %v3015 = vunpack.c.l.b16 %v2938
    %v3016 = vunpack.c.h.b16 %v2938
    %v3017 = vunpack.c.l.b16 %v2939
    %v3018 = vunpack.c.h.b16 %v2939
    %v3019 = vunpack.c.l.b16 %v2940
    %v3020 = vunpack.c.h.b16 %v2940
    %v3021 = vunpack.c.l.b16 %v2941
    %v3022 = vunpack.c.h.b16 %v2941
    %v3023 = vunpack.c.l.b16 %v2942
    %v3024 = vunpack.c.h.b16 %v2942
    %v3025 = vunpack.c.l.b16 %v2943
    %v3026 = vunpack.c.h.b16 %v2943
    %v3027 = vunpack.c.l.b16 %v2944
    %v3028 = vunpack.c.h.b16 %v2944
    %v3029 = vunpack.c.l.b16 %v2945
    %v3030 = vunpack.c.h.b16 %v2945
    %v3031 = vunpack.c.l.b16 %v2946
    %v3032 = vunpack.c.h.b16 %v2946
    %v3033 = vunpack.c.l.b16 %v2947
    %v3034 = vunpack.c.h.b16 %v2947
    %v3035 = vunpack.c.l.b16 %v2948
    %v3036 = vunpack.c.h.b16 %v2948
    %v3037 = vunpack.c.l.b16 %v2949
    %v3038 = vunpack.c.h.b16 %v2949
    %v3039 = vunpack.c.l.b16 %v2950
    %v3040 = vunpack.c.h.b16 %v2950
    %v3041 = vunpack.c.l.b16 %v2951
    %v3042 = vunpack.c.h.b16 %v2951
    %v3043 = vunpack.c.l.b16 %v2952
    %v3044 = vunpack.c.h.b16 %v2952
    %v3045 = vunpack.c.l.b16 %v2953
    %v3046 = vunpack.c.h.b16 %v2953
    %v3047 = vunpack.c.l.b16 %v2954
    %v3048 = vunpack.c.h.b16 %v2954
    %v3049 = vunpack.c.l.b16 %v2955
    %v3050 = vunpack.c.h.b16 %v2955
    %v3051 = vunpack.c.l.b16 %v2956
    %v3052 = vunpack.c.h.b16 %v2956
    %v3053 = vunpack.c.l.b16 %v2957
    %v3054 = vunpack.c.h.b16 %v2957
    %v3055 = vunpack.c.l.b16 %v2958
    %v3056 = vunpack.c.h.b16 %v2958
    %v3057 = vunpack.c.l.b16 %v2959
    %v3058 = vunpack.c.h.b16 %v2959
    %v3059 = vunpack.c.l.b16 %v2960
    %v3060 = vunpack.c.h.b16 %v2960
    %v3061 = vunpack.c.l.b16 %v2961
    %v3062 = vunpack.c.h.b16 %v2961
    %v3063 = vunpack.c.l.b16 %v2962
    %v3064 = vunpack.c.h.b16 %v2962
    %v3065 = vpack.c.b16 %v3003, %v3001
    %v3066 = vpack.c.b16 %v3004, %v3002
    %v3067 = vpack.c.b16 %v3007, %v3005
    %v3068 = vpack.c.b16 %v3008, %v3006
    %v3069 = vpack.c.b16 %v3011, %v3009
    %v3070 = vpack.c.b16 %v3012, %v3010
    %v3071 = vpack.c.b16 %v3015, %v3013
    %v3072 = vpack.c.b16 %v3016, %v3014
    %v3073 = vpack.c.b16 %v3019, %v3017
    %v3074 = vpack.c.b16 %v3020, %v3018
    %v3075 = vpack.c.b16 %v3023, %v3021
    %v3076 = vpack.c.b16 %v3024, %v3022
    %v3077 = vpack.c.b16 %v3027, %v3025
    %v3078 = vpack.c.b16 %v3028, %v3026
    %v3079 = vpack.c.b16 %v3031, %v3029
    %v3080 = vpack.c.b16 %v3032, %v3030
    %v3081 = vpack.c.b16 %v3035, %v3033
    %v3082 = vpack.c.b16 %v3036, %v3034
    %v3083 = vpack.c.b16 %v3039, %v3037
    %v3084 = vpack.c.b16 %v3040, %v3038
    %v3085 = vpack.c.b16 %v3043, %v3041
    %v3086 = vpack.c.b16 %v3044, %v3042
    %v3087 = vpack.c.b16 %v3047, %v3045
    %v3088 = vpack.c.b16 %v3048, %v3046
    %v3089 = vpack.c.b16 %v3051, %v3049
    %v3090 = vpack.c.b16 %v3052, %v3050
    %v3091 = vpack.c.b16 %v3055, %v3053
    %v3092 = vpack.c.b16 %v3056, %v3054
    %v3093 = vpack.c.b16 %v3059, %v3057
    %v3094 = vpack.c.b16 %v3060, %v3058
    %v3095 = vpack.c.b16 %v3063, %v3061
    %v3096 = vpack.c.b16 %v3064, %v3062
    %3129 = vmatpush.bf16.msra.mxu0 %v3079
    %3130 = vmatpush.bf16.msra.mxu0 %v3077
    %3131 = vmatpush.bf16.msra.mxu0 %v3075
    %3132 = vmatpush.bf16.msra.mxu0 %v3073
    %3133 = vmatpush.bf16.msra.mxu0 %v3071
    %3134 = vmatpush.bf16.msra.mxu0 %v3069
    %3135 = vmatpush.bf16.msra.mxu0 %v3067
    %3136 = vmatpush.bf16.msra.mxu0 %v3065
    %3137 = vmatmul.bf16.gmra.mxu0 %v2899
    %v3138 = vpop.f32.mrf.mxu0
    %v3139 = vadd.f32 %v2965, %v3138
    %v3140 = vpop.f32.mrf.mxu0
    %v3141 = vadd.f32 %v2965, %v3140
    %3142 = vmatmul.bf16.gmra.mxu0 %v2901
    %v3143 = vpop.f32.mrf.mxu0
    %v3144 = vadd.f32 %v2965, %v3143
    %v3145 = vpop.f32.mrf.mxu0
    %v3146 = vadd.f32 %v2965, %v3145
    %3147 = vmatmul.bf16.gmra.mxu0 %v2903
    %v3148 = vpop.f32.mrf.mxu0
    %v3149 = vadd.f32 %v2965, %v3148
    %v3150 = vpop.f32.mrf.mxu0
    %v3151 = vadd.f32 %v2965, %v3150
    %3152 = vmatmul.bf16.gmra.mxu0 %v2905
    %v3153 = vpop.f32.mrf.mxu0
    %v3154 = vadd.f32 %v2965, %v3153
    %v3155 = vpop.f32.mrf.mxu0
    %v3156 = vadd.f32 %v2965, %v3155
    %3157 = vmatmul.bf16.gmra.mxu0 %v2907
    %v3158 = vpop.f32.mrf.mxu0
    %v3159 = vadd.f32 %v2965, %v3158
    %v3160 = vpop.f32.mrf.mxu0
    %v3161 = vadd.f32 %v2965, %v3160
    %3162 = vmatmul.bf16.gmra.mxu0 %v2909
    %v3163 = vpop.f32.mrf.mxu0
    %v3164 = vadd.f32 %v2965, %v3163
    %v3165 = vpop.f32.mrf.mxu0
    %v3166 = vadd.f32 %v2965, %v3165
    %3167 = vmatmul.bf16.gmra.mxu0 %v2911
    %v3168 = vpop.f32.mrf.mxu0
    %v3169 = vadd.f32 %v2965, %v3168
    %v3170 = vpop.f32.mrf.mxu0
    %v3171 = vadd.f32 %v2965, %v3170
    %3172 = vmatmul.bf16.gmra.mxu0 %v2913
    %v3173 = vpop.f32.mrf.mxu0
    %v3174 = vadd.f32 %v2965, %v3173
    %v3175 = vpop.f32.mrf.mxu0
    %v3176 = vadd.f32 %v2965, %v3175
    %3177 = vmatmul.bf16.gmra.mxu0 %v2915
    %v3178 = vpop.f32.mrf.mxu0
    %v3179 = vadd.f32 %v2965, %v3178
    %v3180 = vpop.f32.mrf.mxu0
    %v3181 = vadd.f32 %v2965, %v3180
    %3182 = vmatmul.bf16.gmra.mxu0 %v2917
    %v3183 = vpop.f32.mrf.mxu0
    %v3184 = vadd.f32 %v2965, %v3183
    %v3185 = vpop.f32.mrf.mxu0
    %v3186 = vadd.f32 %v2965, %v3185
    %3187 = vmatmul.bf16.gmra.mxu0 %v2919
    %v3188 = vpop.f32.mrf.mxu0
    %v3189 = vadd.f32 %v2965, %v3188
    %v3190 = vpop.f32.mrf.mxu0
    %v3191 = vadd.f32 %v2965, %v3190
    %3192 = vmatmul.bf16.gmra.mxu0 %v2921
    %v3193 = vpop.f32.mrf.mxu0
    %v3194 = vadd.f32 %v2965, %v3193
    %v3195 = vpop.f32.mrf.mxu0
    %v3196 = vadd.f32 %v2965, %v3195
    %3197 = vmatmul.bf16.gmra.mxu0 %v2923
    %v3198 = vpop.f32.mrf.mxu0
    %v3199 = vadd.f32 %v2965, %v3198
    %v3200 = vpop.f32.mrf.mxu0
    %v3201 = vadd.f32 %v2965, %v3200
    %3202 = vmatmul.bf16.gmra.mxu0 %v2925
    %v3203 = vpop.f32.mrf.mxu0
    %v3204 = vadd.f32 %v2965, %v3203
    %v3205 = vpop.f32.mrf.mxu0
    %v3206 = vadd.f32 %v2965, %v3205
    %3207 = vmatmul.bf16.gmra.mxu0 %v2927
    %v3208 = vpop.f32.mrf.mxu0
    %v3209 = vadd.f32 %v2965, %v3208
    %v3210 = vpop.f32.mrf.mxu0
    %v3211 = vadd.f32 %v2965, %v3210
    %3212 = vmatmul.bf16.gmra.mxu0 %v2929
    %v3213 = vpop.f32.mrf.mxu0
    %v3214 = vadd.f32 %v2965, %v3213
    %v3215 = vpop.f32.mrf.mxu0
    %v3216 = vadd.f32 %v2965, %v3215
    %3217 = vdwg.mxu0
    %3218 = vmatpush.bf16.msra.mxu0 %v3095
    %3219 = vmatpush.bf16.msra.mxu0 %v3093
    %3220 = vmatpush.bf16.msra.mxu0 %v3091
    %3221 = vmatpush.bf16.msra.mxu0 %v3089
    %3222 = vmatpush.bf16.msra.mxu0 %v3087
    %3223 = vmatpush.bf16.msra.mxu0 %v3085
    %3224 = vmatpush.bf16.msra.mxu0 %v3083
    %3225 = vmatpush.bf16.msra.mxu0 %v3081
    %3226 = vmatmul.bf16.gmra.mxu0 %v2900
    %v3227 = vpop.f32.mrf.mxu0
    %v3228 = vadd.f32 %v3139, %v3227
    %v3229 = vpop.f32.mrf.mxu0
    %v3230 = vadd.f32 %v3141, %v3229
    %3231 = vmatmul.bf16.gmra.mxu0 %v2902
    %v3232 = vpop.f32.mrf.mxu0
    %v3233 = vadd.f32 %v3144, %v3232
    %v3234 = vpop.f32.mrf.mxu0
    %v3235 = vadd.f32 %v3146, %v3234
    %3236 = vmatmul.bf16.gmra.mxu0 %v2904
    %v3237 = vpop.f32.mrf.mxu0
    %v3238 = vadd.f32 %v3149, %v3237
    %v3239 = vpop.f32.mrf.mxu0
    %v3240 = vadd.f32 %v3151, %v3239
    %3241 = vmatmul.bf16.gmra.mxu0 %v2906
    %v3242 = vpop.f32.mrf.mxu0
    %v3243 = vadd.f32 %v3154, %v3242
    %v3244 = vpop.f32.mrf.mxu0
    %v3245 = vadd.f32 %v3156, %v3244
    %3246 = vmatmul.bf16.gmra.mxu0 %v2908
    %v3247 = vpop.f32.mrf.mxu0
    %v3248 = vadd.f32 %v3159, %v3247
    %v3249 = vpop.f32.mrf.mxu0
    %v3250 = vadd.f32 %v3161, %v3249
    %3251 = vmatmul.bf16.gmra.mxu0 %v2910
    %v3252 = vpop.f32.mrf.mxu0
    %v3253 = vadd.f32 %v3164, %v3252
    %v3254 = vpop.f32.mrf.mxu0
    %v3255 = vadd.f32 %v3166, %v3254
    %3256 = vmatmul.bf16.gmra.mxu0 %v2912
    %v3257 = vpop.f32.mrf.mxu0
    %v3258 = vadd.f32 %v3169, %v3257
    %v3259 = vpop.f32.mrf.mxu0
    %v3260 = vadd.f32 %v3171, %v3259
    %3261 = vmatmul.bf16.gmra.mxu0 %v2914
    %v3262 = vpop.f32.mrf.mxu0
    %v3263 = vadd.f32 %v3174, %v3262
    %v3264 = vpop.f32.mrf.mxu0
    %v3265 = vadd.f32 %v3176, %v3264
    %3266 = vmatmul.bf16.gmra.mxu0 %v2916
    %v3267 = vpop.f32.mrf.mxu0
    %v3268 = vadd.f32 %v3179, %v3267
    %v3269 = vpop.f32.mrf.mxu0
    %v3270 = vadd.f32 %v3181, %v3269
    %3271 = vmatmul.bf16.gmra.mxu0 %v2918
    %v3272 = vpop.f32.mrf.mxu0
    %v3273 = vadd.f32 %v3184, %v3272
    %v3274 = vpop.f32.mrf.mxu0
    %v3275 = vadd.f32 %v3186, %v3274
    %3276 = vmatmul.bf16.gmra.mxu0 %v2920
    %v3277 = vpop.f32.mrf.mxu0
    %v3278 = vadd.f32 %v3189, %v3277
    %v3279 = vpop.f32.mrf.mxu0
    %v3280 = vadd.f32 %v3191, %v3279
    %3281 = vmatmul.bf16.gmra.mxu0 %v2922
    %v3282 = vpop.f32.mrf.mxu0
    %v3283 = vadd.f32 %v3194, %v3282
    %v3284 = vpop.f32.mrf.mxu0
    %v3285 = vadd.f32 %v3196, %v3284
    %3286 = vmatmul.bf16.gmra.mxu0 %v2924
    %v3287 = vpop.f32.mrf.mxu0
    %v3288 = vadd.f32 %v3199, %v3287
    %v3289 = vpop.f32.mrf.mxu0
    %v3290 = vadd.f32 %v3201, %v3289
    %3291 = vmatmul.bf16.gmra.mxu0 %v2926
    %v3292 = vpop.f32.mrf.mxu0
    %v3293 = vadd.f32 %v3204, %v3292
    %v3294 = vpop.f32.mrf.mxu0
    %v3295 = vadd.f32 %v3206, %v3294
    %3296 = vmatmul.bf16.gmra.mxu0 %v2928
    %v3297 = vpop.f32.mrf.mxu0
    %v3298 = vadd.f32 %v3209, %v3297
    %v3299 = vpop.f32.mrf.mxu0
    %v3300 = vadd.f32 %v3211, %v3299
    %3301 = vmatmul.bf16.gmra.mxu0 %v2930
    %v3302 = vpop.f32.mrf.mxu0
    %v3303 = vadd.f32 %v3214, %v3302
    %v3304 = vpop.f32.mrf.mxu0
    %v3305 = vadd.f32 %v3216, %v3304
    %3306 = vdwg.mxu0
    %3307 = vmatpush.bf16.msra.mxu0 %v3080
    %3308 = vmatpush.bf16.msra.mxu0 %v3078
    %3309 = vmatpush.bf16.msra.mxu0 %v3076
    %3310 = vmatpush.bf16.msra.mxu0 %v3074
    %3311 = vmatpush.bf16.msra.mxu0 %v3072
    %3312 = vmatpush.bf16.msra.mxu0 %v3070
    %3313 = vmatpush.bf16.msra.mxu0 %v3068
    %3314 = vmatpush.bf16.msra.mxu0 %v3066
    %3315 = vmatmul.bf16.gmra.mxu0 %v2899
    %v3316 = vpop.f32.mrf.mxu0
    %v3317 = vadd.f32 %v2966, %v3316
    %v3318 = vpop.f32.mrf.mxu0
    %v3319 = vadd.f32 %v2966, %v3318
    %3320 = vmatmul.bf16.gmra.mxu0 %v2901
    %v3321 = vpop.f32.mrf.mxu0
    %v3322 = vadd.f32 %v2966, %v3321
    %v3323 = vpop.f32.mrf.mxu0
    %v3324 = vadd.f32 %v2966, %v3323
    %3325 = vmatmul.bf16.gmra.mxu0 %v2903
    %v3326 = vpop.f32.mrf.mxu0
    %v3327 = vadd.f32 %v2966, %v3326
    %v3328 = vpop.f32.mrf.mxu0
    %v3329 = vadd.f32 %v2966, %v3328
    %3330 = vmatmul.bf16.gmra.mxu0 %v2905
    %v3331 = vpop.f32.mrf.mxu0
    %v3332 = vadd.f32 %v2966, %v3331
    %v3333 = vpop.f32.mrf.mxu0
    %v3334 = vadd.f32 %v2966, %v3333
    %3335 = vmatmul.bf16.gmra.mxu0 %v2907
    %v3336 = vpop.f32.mrf.mxu0
    %v3337 = vadd.f32 %v2966, %v3336
    %v3338 = vpop.f32.mrf.mxu0
    %v3339 = vadd.f32 %v2966, %v3338
    %3340 = vmatmul.bf16.gmra.mxu0 %v2909
    %v3341 = vpop.f32.mrf.mxu0
    %v3342 = vadd.f32 %v2966, %v3341
    %v3343 = vpop.f32.mrf.mxu0
    %v3344 = vadd.f32 %v2966, %v3343
    %3345 = vmatmul.bf16.gmra.mxu0 %v2911
    %v3346 = vpop.f32.mrf.mxu0
    %v3347 = vadd.f32 %v2966, %v3346
    %v3348 = vpop.f32.mrf.mxu0
    %v3349 = vadd.f32 %v2966, %v3348
    %3350 = vmatmul.bf16.gmra.mxu0 %v2913
    %v3351 = vpop.f32.mrf.mxu0
    %v3352 = vadd.f32 %v2966, %v3351
    %v3353 = vpop.f32.mrf.mxu0
    %v3354 = vadd.f32 %v2966, %v3353
    %3355 = vmatmul.bf16.gmra.mxu0 %v2915
    %v3356 = vpop.f32.mrf.mxu0
    %v3357 = vadd.f32 %v2966, %v3356
    %v3358 = vpop.f32.mrf.mxu0
    %v3359 = vadd.f32 %v2966, %v3358
    %3360 = vmatmul.bf16.gmra.mxu0 %v2917
    %v3361 = vpop.f32.mrf.mxu0
    %v3362 = vadd.f32 %v2966, %v3361
    %v3363 = vpop.f32.mrf.mxu0
    %v3364 = vadd.f32 %v2966, %v3363
    %3365 = vmatmul.bf16.gmra.mxu0 %v2919
    %v3366 = vpop.f32.mrf.mxu0
    %v3367 = vadd.f32 %v2966, %v3366
    %v3368 = vpop.f32.mrf.mxu0
    %v3369 = vadd.f32 %v2966, %v3368
    %3370 = vmatmul.bf16.gmra.mxu0 %v2921
    %v3371 = vpop.f32.mrf.mxu0
    %v3372 = vadd.f32 %v2966, %v3371
    %v3373 = vpop.f32.mrf.mxu0
    %v3374 = vadd.f32 %v2966, %v3373
    %3375 = vmatmul.bf16.gmra.mxu0 %v2923
    %v3376 = vpop.f32.mrf.mxu0
    %v3377 = vadd.f32 %v2966, %v3376
    %v3378 = vpop.f32.mrf.mxu0
    %v3379 = vadd.f32 %v2966, %v3378
    %3380 = vmatmul.bf16.gmra.mxu0 %v2925
    %v3381 = vpop.f32.mrf.mxu0
    %v3382 = vadd.f32 %v2966, %v3381
    %v3383 = vpop.f32.mrf.mxu0
    %v3384 = vadd.f32 %v2966, %v3383
    %3385 = vmatmul.bf16.gmra.mxu0 %v2927
    %v3386 = vpop.f32.mrf.mxu0
    %v3387 = vadd.f32 %v2966, %v3386
    %v3388 = vpop.f32.mrf.mxu0
    %v3389 = vadd.f32 %v2966, %v3388
    %3390 = vmatmul.bf16.gmra.mxu0 %v2929
    %v3391 = vpop.f32.mrf.mxu0
    %v3392 = vadd.f32 %v2966, %v3391
    %v3393 = vpop.f32.mrf.mxu0
    %v3394 = vadd.f32 %v2966, %v3393
    %3395 = vdwg.mxu0
    %3396 = vmatpush.bf16.msra.mxu0 %v3096
    %3397 = vmatpush.bf16.msra.mxu0 %v3094
    %3398 = vmatpush.bf16.msra.mxu0 %v3092
    %3399 = vmatpush.bf16.msra.mxu0 %v3090
    %3400 = vmatpush.bf16.msra.mxu0 %v3088
    %3401 = vmatpush.bf16.msra.mxu0 %v3086
    %3402 = vmatpush.bf16.msra.mxu0 %v3084
    %3403 = vmatpush.bf16.msra.mxu0 %v3082
    %3404 = vmatmul.bf16.gmra.mxu0 %v2900
    %v3405 = vpop.f32.mrf.mxu0
    %v3406 = vadd.f32 %v3317, %v3405
    %v3407 = vpop.f32.mrf.mxu0
    %v3408 = vadd.f32 %v3319, %v3407
    %3409 = vmatmul.bf16.gmra.mxu0 %v2902
    %v3410 = vpop.f32.mrf.mxu0
    %v3411 = vadd.f32 %v3322, %v3410
    %v3412 = vpop.f32.mrf.mxu0
    %v3413 = vadd.f32 %v3324, %v3412
    %3414 = vmatmul.bf16.gmra.mxu0 %v2904
    %v3415 = vpop.f32.mrf.mxu0
    %v3416 = vadd.f32 %v3327, %v3415
    %v3417 = vpop.f32.mrf.mxu0
    %v3418 = vadd.f32 %v3329, %v3417
    %3419 = vmatmul.bf16.gmra.mxu0 %v2906
    %v3420 = vpop.f32.mrf.mxu0
    %v3421 = vadd.f32 %v3332, %v3420
    %v3422 = vpop.f32.mrf.mxu0
    %v3423 = vadd.f32 %v3334, %v3422
    %3424 = vmatmul.bf16.gmra.mxu0 %v2908
    %v3425 = vpop.f32.mrf.mxu0
    %v3426 = vadd.f32 %v3337, %v3425
    %v3427 = vpop.f32.mrf.mxu0
    %v3428 = vadd.f32 %v3339, %v3427
    %3429 = vmatmul.bf16.gmra.mxu0 %v2910
    %v3430 = vpop.f32.mrf.mxu0
    %v3431 = vadd.f32 %v3342, %v3430
    %v3432 = vpop.f32.mrf.mxu0
    %v3433 = vadd.f32 %v3344, %v3432
    %3434 = vmatmul.bf16.gmra.mxu0 %v2912
    %v3435 = vpop.f32.mrf.mxu0
    %v3436 = vadd.f32 %v3347, %v3435
    %v3437 = vpop.f32.mrf.mxu0
    %v3438 = vadd.f32 %v3349, %v3437
    %3439 = vmatmul.bf16.gmra.mxu0 %v2914
    %v3440 = vpop.f32.mrf.mxu0
    %v3441 = vadd.f32 %v3352, %v3440
    %v3442 = vpop.f32.mrf.mxu0
    %v3443 = vadd.f32 %v3354, %v3442
    %3444 = vmatmul.bf16.gmra.mxu0 %v2916
    %v3445 = vpop.f32.mrf.mxu0
    %v3446 = vadd.f32 %v3357, %v3445
    %v3447 = vpop.f32.mrf.mxu0
    %v3448 = vadd.f32 %v3359, %v3447
    %3449 = vmatmul.bf16.gmra.mxu0 %v2918
    %v3450 = vpop.f32.mrf.mxu0
    %v3451 = vadd.f32 %v3362, %v3450
    %v3452 = vpop.f32.mrf.mxu0
    %v3453 = vadd.f32 %v3364, %v3452
    %3454 = vmatmul.bf16.gmra.mxu0 %v2920
    %v3455 = vpop.f32.mrf.mxu0
    %v3456 = vadd.f32 %v3367, %v3455
    %v3457 = vpop.f32.mrf.mxu0
    %v3458 = vadd.f32 %v3369, %v3457
    %3459 = vmatmul.bf16.gmra.mxu0 %v2922
    %v3460 = vpop.f32.mrf.mxu0
    %v3461 = vadd.f32 %v3372, %v3460
    %v3462 = vpop.f32.mrf.mxu0
    %v3463 = vadd.f32 %v3374, %v3462
    %3464 = vmatmul.bf16.gmra.mxu0 %v2924
    %v3465 = vpop.f32.mrf.mxu0
    %v3466 = vadd.f32 %v3377, %v3465
    %v3467 = vpop.f32.mrf.mxu0
    %v3468 = vadd.f32 %v3379, %v3467
    %3469 = vmatmul.bf16.gmra.mxu0 %v2926
    %v3470 = vpop.f32.mrf.mxu0
    %v3471 = vadd.f32 %v3382, %v3470
    %v3472 = vpop.f32.mrf.mxu0
    %v3473 = vadd.f32 %v3384, %v3472
    %3474 = vmatmul.bf16.gmra.mxu0 %v2928
    %v3475 = vpop.f32.mrf.mxu0
    %v3476 = vadd.f32 %v3387, %v3475
    %v3477 = vpop.f32.mrf.mxu0
    %v3478 = vadd.f32 %v3389, %v3477
    %3479 = vmatmul.bf16.gmra.mxu0 %v2930
    %v3480 = vpop.f32.mrf.mxu0
    %v3481 = vadd.f32 %v3392, %v3480
    %v3482 = vpop.f32.mrf.mxu0
    %v3483 = vadd.f32 %v3394, %v3482
    %3484 = vdwg.mxu0
    %v3485 = vmax.f32 %v3228, 0.0
    %v3486 = vmax.f32 %v3406, 0.0
    %v3487 = vmax.f32 %v3230, 0.0
    %v3488 = vmax.f32 %v3408, 0.0
    %v3489 = vmax.f32 %v3233, 0.0
    %v3490 = vmax.f32 %v3411, 0.0
    %v3491 = vmax.f32 %v3235, 0.0
    %v3492 = vmax.f32 %v3413, 0.0
    %v3493 = vmax.f32 %v3238, 0.0
    %v3494 = vmax.f32 %v3416, 0.0
    %v3495 = vmax.f32 %v3240, 0.0
    %v3496 = vmax.f32 %v3418, 0.0
    %v3497 = vmax.f32 %v3243, 0.0
    %v3498 = vmax.f32 %v3421, 0.0
    %v3499 = vmax.f32 %v3245, 0.0
    %v3500 = vmax.f32 %v3423, 0.0
    %v3501 = vmax.f32 %v3248, 0.0
    %v3502 = vmax.f32 %v3426, 0.0
    %v3503 = vmax.f32 %v3250, 0.0
    %v3504 = vmax.f32 %v3428, 0.0
    %v3505 = vmax.f32 %v3253, 0.0
    %v3506 = vmax.f32 %v3431, 0.0
    %v3507 = vmax.f32 %v3255, 0.0
    %v3508 = vmax.f32 %v3433, 0.0
    %v3509 = vmax.f32 %v3258, 0.0
    %v3510 = vmax.f32 %v3436, 0.0
    %v3511 = vmax.f32 %v3260, 0.0
    %v3512 = vmax.f32 %v3438, 0.0
    %v3513 = vmax.f32 %v3263, 0.0
    %v3514 = vmax.f32 %v3441, 0.0
    %v3515 = vmax.f32 %v3265, 0.0
    %v3516 = vmax.f32 %v3443, 0.0
    %v3517 = vmax.f32 %v3268, 0.0
    %v3518 = vmax.f32 %v3446, 0.0
    %v3519 = vmax.f32 %v3270, 0.0
    %v3520 = vmax.f32 %v3448, 0.0
    %v3521 = vmax.f32 %v3273, 0.0
    %v3522 = vmax.f32 %v3451, 0.0
    %v3523 = vmax.f32 %v3275, 0.0
    %v3524 = vmax.f32 %v3453, 0.0
    %v3525 = vmax.f32 %v3278, 0.0
    %v3526 = vmax.f32 %v3456, 0.0
    %v3527 = vmax.f32 %v3280, 0.0
    %v3528 = vmax.f32 %v3458, 0.0
    %v3529 = vmax.f32 %v3283, 0.0
    %v3530 = vmax.f32 %v3461, 0.0
    %v3531 = vmax.f32 %v3285, 0.0
    %v3532 = vmax.f32 %v3463, 0.0
    %v3533 = vmax.f32 %v3288, 0.0
    %v3534 = vmax.f32 %v3466, 0.0
    %v3535 = vmax.f32 %v3290, 0.0
    %v3536 = vmax.f32 %v3468, 0.0
    %v3537 = vmax.f32 %v3293, 0.0
    %v3538 = vmax.f32 %v3471, 0.0
    %v3539 = vmax.f32 %v3295, 0.0
    %v3540 = vmax.f32 %v3473, 0.0
    %v3541 = vmax.f32 %v3298, 0.0
    %v3542 = vmax.f32 %v3476, 0.0
    %v3543 = vmax.f32 %v3300, 0.0
    %v3544 = vmax.f32 %v3478, 0.0
    %v3545 = vmax.f32 %v3303, 0.0
    %v3546 = vmax.f32 %v3481, 0.0
    %v3547 = vmax.f32 %v3305, 0.0
    %v3548 = vmax.f32 %v3483, 0.0
    %v3549 = vpack.c.bf16 %v3487, %v3485
    %v3550 = vpack.c.bf16 %v3488, %v3486
    %v3551 = vpack.c.bf16 %v3491, %v3489
    %v3552 = vpack.c.bf16 %v3492, %v3490
    %v3553 = vpack.c.bf16 %v3495, %v3493
    %v3554 = vpack.c.bf16 %v3496, %v3494
    %v3555 = vpack.c.bf16 %v3499, %v3497
    %v3556 = vpack.c.bf16 %v3500, %v3498
    %v3557 = vpack.c.bf16 %v3503, %v3501
    %v3558 = vpack.c.bf16 %v3504, %v3502
    %v3559 = vpack.c.bf16 %v3507, %v3505
    %v3560 = vpack.c.bf16 %v3508, %v3506
    %v3561 = vpack.c.bf16 %v3511, %v3509
    %v3562 = vpack.c.bf16 %v3512, %v3510
    %v3563 = vpack.c.bf16 %v3515, %v3513
    %v3564 = vpack.c.bf16 %v3516, %v3514
    %v3565 = vpack.c.bf16 %v3519, %v3517
    %v3566 = vpack.c.bf16 %v3520, %v3518
    %v3567 = vpack.c.bf16 %v3523, %v3521
    %v3568 = vpack.c.bf16 %v3524, %v3522
    %v3569 = vpack.c.bf16 %v3527, %v3525
    %v3570 = vpack.c.bf16 %v3528, %v3526
    %v3571 = vpack.c.bf16 %v3531, %v3529
    %v3572 = vpack.c.bf16 %v3532, %v3530
    %v3573 = vpack.c.bf16 %v3535, %v3533
    %v3574 = vpack.c.bf16 %v3536, %v3534
    %v3575 = vpack.c.bf16 %v3539, %v3537
    %v3576 = vpack.c.bf16 %v3540, %v3538
    %v3577 = vpack.c.bf16 %v3543, %v3541
    %v3578 = vpack.c.bf16 %v3544, %v3542
    %v3579 = vpack.c.bf16 %v3547, %v3545
    %v3580 = vpack.c.bf16 %v3548, %v3546
    %v3581 = vld [vmem:[#allocation7] sm:$0xff]
    %v3582 = vld [vmem:[#allocation7 + $0x8] sm:$0xff]
    %v3583 = vld [vmem:[#allocation7 + $0x10] sm:$0xff]
    %v3584 = vld [vmem:[#allocation7 + $0x18] sm:$0xff]
    %v3585 = vld [vmem:[#allocation7 + $0x20] sm:$0xff]
    %v3586 = vld [vmem:[#allocation7 + $0x28] sm:$0xff]
    %v3587 = vld [vmem:[#allocation7 + $0x30] sm:$0xff]
    %v3588 = vld [vmem:[#allocation7 + $0x38] sm:$0xff]
    %v3589 = vld [vmem:[#allocation7 + $0x40] sm:$0xff]
    %v3590 = vld [vmem:[#allocation7 + $0x48] sm:$0xff]
    %v3591 = vld [vmem:[#allocation7 + $0x50] sm:$0xff]
    %v3592 = vld [vmem:[#allocation7 + $0x58] sm:$0xff]
    %v3593 = vld [vmem:[#allocation7 + $0x60] sm:$0xff]
    %v3594 = vld [vmem:[#allocation7 + $0x68] sm:$0xff]
    %v3595 = vld [vmem:[#allocation7 + $0x70] sm:$0xff]
    %v3596 = vld [vmem:[#allocation7 + $0x78] sm:$0xff]
    %v3597 = vld [vmem:[#allocation7 + $0x80] sm:$0xff]
    %v3598 = vld [vmem:[#allocation7 + $0x88] sm:$0xff]
    %v3599 = vld [vmem:[#allocation7 + $0x90] sm:$0xff]
    %v3600 = vld [vmem:[#allocation7 + $0x98] sm:$0xff]
    %v3601 = vld [vmem:[#allocation7 + $0xa0] sm:$0xff]
    %v3602 = vld [vmem:[#allocation7 + $0xa8] sm:$0xff]
    %v3603 = vld [vmem:[#allocation7 + $0xb0] sm:$0xff]
    %v3604 = vld [vmem:[#allocation7 + $0xb8] sm:$0xff]
    %v3605 = vld [vmem:[#allocation7 + $0xc0] sm:$0xff]
    %v3606 = vld [vmem:[#allocation7 + $0xc8] sm:$0xff]
    %v3607 = vld [vmem:[#allocation7 + $0xd0] sm:$0xff]
    %v3608 = vld [vmem:[#allocation7 + $0xd8] sm:$0xff]
    %v3609 = vld [vmem:[#allocation7 + $0xe0] sm:$0xff]
    %v3610 = vld [vmem:[#allocation7 + $0xe8] sm:$0xff]
    %v3611 = vld [vmem:[#allocation7 + $0xf0] sm:$0xff]
    %v3612 = vld [vmem:[#allocation7 + $0xf8] sm:$0xff]
    %v3613 = vld [vmem:[%s11] sm:$0x3]
    %v3615 = vperm.slane %v3613, 0
    %v3616 = vperm.slane %v3613, 1
    %v3651 = vunpack.c.l.b16 %v3581
    %v3652 = vunpack.c.h.b16 %v3581
    %v3653 = vunpack.c.l.b16 %v3582
    %v3654 = vunpack.c.h.b16 %v3582
    %v3655 = vunpack.c.l.b16 %v3583
    %v3656 = vunpack.c.h.b16 %v3583
    %v3657 = vunpack.c.l.b16 %v3584
    %v3658 = vunpack.c.h.b16 %v3584
    %v3659 = vunpack.c.l.b16 %v3585
    %v3660 = vunpack.c.h.b16 %v3585
    %v3661 = vunpack.c.l.b16 %v3586
    %v3662 = vunpack.c.h.b16 %v3586
    %v3663 = vunpack.c.l.b16 %v3587
    %v3664 = vunpack.c.h.b16 %v3587
    %v3665 = vunpack.c.l.b16 %v3588
    %v3666 = vunpack.c.h.b16 %v3588
    %v3667 = vunpack.c.l.b16 %v3589
    %v3668 = vunpack.c.h.b16 %v3589
    %v3669 = vunpack.c.l.b16 %v3590
    %v3670 = vunpack.c.h.b16 %v3590
    %v3671 = vunpack.c.l.b16 %v3591
    %v3672 = vunpack.c.h.b16 %v3591
    %v3673 = vunpack.c.l.b16 %v3592
    %v3674 = vunpack.c.h.b16 %v3592
    %v3675 = vunpack.c.l.b16 %v3593
    %v3676 = vunpack.c.h.b16 %v3593
    %v3677 = vunpack.c.l.b16 %v3594
    %v3678 = vunpack.c.h.b16 %v3594
    %v3679 = vunpack.c.l.b16 %v3595
    %v3680 = vunpack.c.h.b16 %v3595
    %v3681 = vunpack.c.l.b16 %v3596
    %v3682 = vunpack.c.h.b16 %v3596
    %v3683 = vunpack.c.l.b16 %v3597
    %v3684 = vunpack.c.h.b16 %v3597
    %v3685 = vunpack.c.l.b16 %v3598
    %v3686 = vunpack.c.h.b16 %v3598
    %v3687 = vunpack.c.l.b16 %v3599
    %v3688 = vunpack.c.h.b16 %v3599
    %v3689 = vunpack.c.l.b16 %v3600
    %v3690 = vunpack.c.h.b16 %v3600
    %v3691 = vunpack.c.l.b16 %v3601
    %v3692 = vunpack.c.h.b16 %v3601
    %v3693 = vunpack.c.l.b16 %v3602
    %v3694 = vunpack.c.h.b16 %v3602
    %v3695 = vunpack.c.l.b16 %v3603
    %v3696 = vunpack.c.h.b16 %v3603
    %v3697 = vunpack.c.l.b16 %v3604
    %v3698 = vunpack.c.h.b16 %v3604
    %v3699 = vunpack.c.l.b16 %v3605
    %v3700 = vunpack.c.h.b16 %v3605
    %v3701 = vunpack.c.l.b16 %v3606
    %v3702 = vunpack.c.h.b16 %v3606
    %v3703 = vunpack.c.l.b16 %v3607
    %v3704 = vunpack.c.h.b16 %v3607
    %v3705 = vunpack.c.l.b16 %v3608
    %v3706 = vunpack.c.h.b16 %v3608
    %v3707 = vunpack.c.l.b16 %v3609
    %v3708 = vunpack.c.h.b16 %v3609
    %v3709 = vunpack.c.l.b16 %v3610
    %v3710 = vunpack.c.h.b16 %v3610
    %v3711 = vunpack.c.l.b16 %v3611
    %v3712 = vunpack.c.h.b16 %v3611
    %v3713 = vunpack.c.l.b16 %v3612
    %v3714 = vunpack.c.h.b16 %v3612
    %v3715 = vpack.c.b16 %v3653, %v3651
    %v3716 = vpack.c.b16 %v3654, %v3652
    %v3717 = vpack.c.b16 %v3657, %v3655
    %v3718 = vpack.c.b16 %v3658, %v3656
    %v3719 = vpack.c.b16 %v3661, %v3659
    %v3720 = vpack.c.b16 %v3662, %v3660
    %v3721 = vpack.c.b16 %v3665, %v3663
    %v3722 = vpack.c.b16 %v3666, %v3664
    %v3723 = vpack.c.b16 %v3669, %v3667
    %v3724 = vpack.c.b16 %v3670, %v3668
    %v3725 = vpack.c.b16 %v3673, %v3671
    %v3726 = vpack.c.b16 %v3674, %v3672
    %v3727 = vpack.c.b16 %v3677, %v3675
    %v3728 = vpack.c.b16 %v3678, %v3676
    %v3729 = vpack.c.b16 %v3681, %v3679
    %v3730 = vpack.c.b16 %v3682, %v3680
    %v3731 = vpack.c.b16 %v3685, %v3683
    %v3732 = vpack.c.b16 %v3686, %v3684
    %v3733 = vpack.c.b16 %v3689, %v3687
    %v3734 = vpack.c.b16 %v3690, %v3688
    %v3735 = vpack.c.b16 %v3693, %v3691
    %v3736 = vpack.c.b16 %v3694, %v3692
    %v3737 = vpack.c.b16 %v3697, %v3695
    %v3738 = vpack.c.b16 %v3698, %v3696
    %v3739 = vpack.c.b16 %v3701, %v3699
    %v3740 = vpack.c.b16 %v3702, %v3700
    %v3741 = vpack.c.b16 %v3705, %v3703
    %v3742 = vpack.c.b16 %v3706, %v3704
    %v3743 = vpack.c.b16 %v3709, %v3707
    %v3744 = vpack.c.b16 %v3710, %v3708
    %v3745 = vpack.c.b16 %v3713, %v3711
    %v3746 = vpack.c.b16 %v3714, %v3712
    %3779 = vmatpush.bf16.msra.mxu0 %v3729
    %3780 = vmatpush.bf16.msra.mxu0 %v3727
    %3781 = vmatpush.bf16.msra.mxu0 %v3725
    %3782 = vmatpush.bf16.msra.mxu0 %v3723
    %3783 = vmatpush.bf16.msra.mxu0 %v3721
    %3784 = vmatpush.bf16.msra.mxu0 %v3719
    %3785 = vmatpush.bf16.msra.mxu0 %v3717
    %3786 = vmatpush.bf16.msra.mxu0 %v3715
    %3787 = vmatmul.bf16.gmra.mxu0 %v3549
    %v3788 = vpop.f32.mrf.mxu0
    %v3789 = vadd.f32 %v3615, %v3788
    %v3790 = vpop.f32.mrf.mxu0
    %v3791 = vadd.f32 %v3615, %v3790
    %3792 = vmatmul.bf16.gmra.mxu0 %v3551
    %v3793 = vpop.f32.mrf.mxu0
    %v3794 = vadd.f32 %v3615, %v3793
    %v3795 = vpop.f32.mrf.mxu0
    %v3796 = vadd.f32 %v3615, %v3795
    %3797 = vmatmul.bf16.gmra.mxu0 %v3553
    %v3798 = vpop.f32.mrf.mxu0
    %v3799 = vadd.f32 %v3615, %v3798
    %v3800 = vpop.f32.mrf.mxu0
    %v3801 = vadd.f32 %v3615, %v3800
    %3802 = vmatmul.bf16.gmra.mxu0 %v3555
    %v3803 = vpop.f32.mrf.mxu0
    %v3804 = vadd.f32 %v3615, %v3803
    %v3805 = vpop.f32.mrf.mxu0
    %v3806 = vadd.f32 %v3615, %v3805
    %3807 = vmatmul.bf16.gmra.mxu0 %v3557
    %v3808 = vpop.f32.mrf.mxu0
    %v3809 = vadd.f32 %v3615, %v3808
    %v3810 = vpop.f32.mrf.mxu0
    %v3811 = vadd.f32 %v3615, %v3810
    %3812 = vmatmul.bf16.gmra.mxu0 %v3559
    %v3813 = vpop.f32.mrf.mxu0
    %v3814 = vadd.f32 %v3615, %v3813
    %v3815 = vpop.f32.mrf.mxu0
    %v3816 = vadd.f32 %v3615, %v3815
    %3817 = vmatmul.bf16.gmra.mxu0 %v3561
    %v3818 = vpop.f32.mrf.mxu0
    %v3819 = vadd.f32 %v3615, %v3818
    %v3820 = vpop.f32.mrf.mxu0
    %v3821 = vadd.f32 %v3615, %v3820
    %3822 = vmatmul.bf16.gmra.mxu0 %v3563
    %v3823 = vpop.f32.mrf.mxu0
    %v3824 = vadd.f32 %v3615, %v3823
    %v3825 = vpop.f32.mrf.mxu0
    %v3826 = vadd.f32 %v3615, %v3825
    %3827 = vmatmul.bf16.gmra.mxu0 %v3565
    %v3828 = vpop.f32.mrf.mxu0
    %v3829 = vadd.f32 %v3615, %v3828
    %v3830 = vpop.f32.mrf.mxu0
    %v3831 = vadd.f32 %v3615, %v3830
    %3832 = vmatmul.bf16.gmra.mxu0 %v3567
    %v3833 = vpop.f32.mrf.mxu0
    %v3834 = vadd.f32 %v3615, %v3833
    %v3835 = vpop.f32.mrf.mxu0
    %v3836 = vadd.f32 %v3615, %v3835
    %3837 = vmatmul.bf16.gmra.mxu0 %v3569
    %v3838 = vpop.f32.mrf.mxu0
    %v3839 = vadd.f32 %v3615, %v3838
    %v3840 = vpop.f32.mrf.mxu0
    %v3841 = vadd.f32 %v3615, %v3840
    %3842 = vmatmul.bf16.gmra.mxu0 %v3571
    %v3843 = vpop.f32.mrf.mxu0
    %v3844 = vadd.f32 %v3615, %v3843
    %v3845 = vpop.f32.mrf.mxu0
    %v3846 = vadd.f32 %v3615, %v3845
    %3847 = vmatmul.bf16.gmra.mxu0 %v3573
    %v3848 = vpop.f32.mrf.mxu0
    %v3849 = vadd.f32 %v3615, %v3848
    %v3850 = vpop.f32.mrf.mxu0
    %v3851 = vadd.f32 %v3615, %v3850
    %3852 = vmatmul.bf16.gmra.mxu0 %v3575
    %v3853 = vpop.f32.mrf.mxu0
    %v3854 = vadd.f32 %v3615, %v3853
    %v3855 = vpop.f32.mrf.mxu0
    %v3856 = vadd.f32 %v3615, %v3855
    %3857 = vmatmul.bf16.gmra.mxu0 %v3577
    %v3858 = vpop.f32.mrf.mxu0
    %v3859 = vadd.f32 %v3615, %v3858
    %v3860 = vpop.f32.mrf.mxu0
    %v3861 = vadd.f32 %v3615, %v3860
    %3862 = vmatmul.bf16.gmra.mxu0 %v3579
    %v3863 = vpop.f32.mrf.mxu0
    %v3864 = vadd.f32 %v3615, %v3863
    %v3865 = vpop.f32.mrf.mxu0
    %v3866 = vadd.f32 %v3615, %v3865
    %3867 = vdwg.mxu0
    %3868 = vmatpush.bf16.msra.mxu0 %v3745
    %3869 = vmatpush.bf16.msra.mxu0 %v3743
    %3870 = vmatpush.bf16.msra.mxu0 %v3741
    %3871 = vmatpush.bf16.msra.mxu0 %v3739
    %3872 = vmatpush.bf16.msra.mxu0 %v3737
    %3873 = vmatpush.bf16.msra.mxu0 %v3735
    %3874 = vmatpush.bf16.msra.mxu0 %v3733
    %3875 = vmatpush.bf16.msra.mxu0 %v3731
    %3876 = vmatmul.bf16.gmra.mxu0 %v3550
    %v3877 = vpop.f32.mrf.mxu0
    %v3878 = vadd.f32 %v3789, %v3877
    %v3879 = vpop.f32.mrf.mxu0
    %v3880 = vadd.f32 %v3791, %v3879
    %3881 = vmatmul.bf16.gmra.mxu0 %v3552
    %v3882 = vpop.f32.mrf.mxu0
    %v3883 = vadd.f32 %v3794, %v3882
    %v3884 = vpop.f32.mrf.mxu0
    %v3885 = vadd.f32 %v3796, %v3884
    %3886 = vmatmul.bf16.gmra.mxu0 %v3554
    %v3887 = vpop.f32.mrf.mxu0
    %v3888 = vadd.f32 %v3799, %v3887
    %v3889 = vpop.f32.mrf.mxu0
    %v3890 = vadd.f32 %v3801, %v3889
    %3891 = vmatmul.bf16.gmra.mxu0 %v3556
    %v3892 = vpop.f32.mrf.mxu0
    %v3893 = vadd.f32 %v3804, %v3892
    %v3894 = vpop.f32.mrf.mxu0
    %v3895 = vadd.f32 %v3806, %v3894
    %3896 = vmatmul.bf16.gmra.mxu0 %v3558
    %v3897 = vpop.f32.mrf.mxu0
    %v3898 = vadd.f32 %v3809, %v3897
    %v3899 = vpop.f32.mrf.mxu0
    %v3900 = vadd.f32 %v3811, %v3899
    %3901 = vmatmul.bf16.gmra.mxu0 %v3560
    %v3902 = vpop.f32.mrf.mxu0
    %v3903 = vadd.f32 %v3814, %v3902
    %v3904 = vpop.f32.mrf.mxu0
    %v3905 = vadd.f32 %v3816, %v3904
    %3906 = vmatmul.bf16.gmra.mxu0 %v3562
    %v3907 = vpop.f32.mrf.mxu0
    %v3908 = vadd.f32 %v3819, %v3907
    %v3909 = vpop.f32.mrf.mxu0
    %v3910 = vadd.f32 %v3821, %v3909
    %3911 = vmatmul.bf16.gmra.mxu0 %v3564
    %v3912 = vpop.f32.mrf.mxu0
    %v3913 = vadd.f32 %v3824, %v3912
    %v3914 = vpop.f32.mrf.mxu0
    %v3915 = vadd.f32 %v3826, %v3914
    %3916 = vmatmul.bf16.gmra.mxu0 %v3566
    %v3917 = vpop.f32.mrf.mxu0
    %v3918 = vadd.f32 %v3829, %v3917
    %v3919 = vpop.f32.mrf.mxu0
    %v3920 = vadd.f32 %v3831, %v3919
    %3921 = vmatmul.bf16.gmra.mxu0 %v3568
    %v3922 = vpop.f32.mrf.mxu0
    %v3923 = vadd.f32 %v3834, %v3922
    %v3924 = vpop.f32.mrf.mxu0
    %v3925 = vadd.f32 %v3836, %v3924
    %3926 = vmatmul.bf16.gmra.mxu0 %v3570
    %v3927 = vpop.f32.mrf.mxu0
    %v3928 = vadd.f32 %v3839, %v3927
    %v3929 = vpop.f32.mrf.mxu0
    %v3930 = vadd.f32 %v3841, %v3929
    %3931 = vmatmul.bf16.gmra.mxu0 %v3572
    %v3932 = vpop.f32.mrf.mxu0
    %v3933 = vadd.f32 %v3844, %v3932
    %v3934 = vpop.f32.mrf.mxu0
    %v3935 = vadd.f32 %v3846, %v3934
    %3936 = vmatmul.bf16.gmra.mxu0 %v3574
    %v3937 = vpop.f32.mrf.mxu0
    %v3938 = vadd.f32 %v3849, %v3937
    %v3939 = vpop.f32.mrf.mxu0
    %v3940 = vadd.f32 %v3851, %v3939
    %3941 = vmatmul.bf16.gmra.mxu0 %v3576
    %v3942 = vpop.f32.mrf.mxu0
    %v3943 = vadd.f32 %v3854, %v3942
    %v3944 = vpop.f32.mrf.mxu0
    %v3945 = vadd.f32 %v3856, %v3944
    %3946 = vmatmul.bf16.gmra.mxu0 %v3578
    %v3947 = vpop.f32.mrf.mxu0
    %v3948 = vadd.f32 %v3859, %v3947
    %v3949 = vpop.f32.mrf.mxu0
    %v3950 = vadd.f32 %v3861, %v3949
    %3951 = vmatmul.bf16.gmra.mxu0 %v3580
    %v3952 = vpop.f32.mrf.mxu0
    %v3953 = vadd.f32 %v3864, %v3952
    %v3954 = vpop.f32.mrf.mxu0
    %v3955 = vadd.f32 %v3866, %v3954
    %3956 = vdwg.mxu0
    %3957 = vmatpush.bf16.msra.mxu0 %v3730
    %3958 = vmatpush.bf16.msra.mxu0 %v3728
    %3959 = vmatpush.bf16.msra.mxu0 %v3726
    %3960 = vmatpush.bf16.msra.mxu0 %v3724
    %3961 = vmatpush.bf16.msra.mxu0 %v3722
    %3962 = vmatpush.bf16.msra.mxu0 %v3720
    %3963 = vmatpush.bf16.msra.mxu0 %v3718
    %3964 = vmatpush.bf16.msra.mxu0 %v3716
    %3965 = vmatmul.bf16.gmra.mxu0 %v3549
    %v3966 = vpop.f32.mrf.mxu0
    %v3967 = vadd.f32 %v3616, %v3966
    %v3968 = vpop.f32.mrf.mxu0
    %v3969 = vadd.f32 %v3616, %v3968
    %3970 = vmatmul.bf16.gmra.mxu0 %v3551
    %v3971 = vpop.f32.mrf.mxu0
    %v3972 = vadd.f32 %v3616, %v3971
    %v3973 = vpop.f32.mrf.mxu0
    %v3974 = vadd.f32 %v3616, %v3973
    %3975 = vmatmul.bf16.gmra.mxu0 %v3553
    %v3976 = vpop.f32.mrf.mxu0
    %v3977 = vadd.f32 %v3616, %v3976
    %v3978 = vpop.f32.mrf.mxu0
    %v3979 = vadd.f32 %v3616, %v3978
    %3980 = vmatmul.bf16.gmra.mxu0 %v3555
    %v3981 = vpop.f32.mrf.mxu0
    %v3982 = vadd.f32 %v3616, %v3981
    %v3983 = vpop.f32.mrf.mxu0
    %v3984 = vadd.f32 %v3616, %v3983
    %3985 = vmatmul.bf16.gmra.mxu0 %v3557
    %v3986 = vpop.f32.mrf.mxu0
    %v3987 = vadd.f32 %v3616, %v3986
    %v3988 = vpop.f32.mrf.mxu0
    %v3989 = vadd.f32 %v3616, %v3988
    %3990 = vmatmul.bf16.gmra.mxu0 %v3559
    %v3991 = vpop.f32.mrf.mxu0
    %v3992 = vadd.f32 %v3616, %v3991
    %v3993 = vpop.f32.mrf.mxu0
    %v3994 = vadd.f32 %v3616, %v3993
    %3995 = vmatmul.bf16.gmra.mxu0 %v3561
    %v3996 = vpop.f32.mrf.mxu0
    %v3997 = vadd.f32 %v3616, %v3996
    %v3998 = vpop.f32.mrf.mxu0
    %v3999 = vadd.f32 %v3616, %v3998
    %4000 = vmatmul.bf16.gmra.mxu0 %v3563
    %v4001 = vpop.f32.mrf.mxu0
    %v4002 = vadd.f32 %v3616, %v4001
    %v4003 = vpop.f32.mrf.mxu0
    %v4004 = vadd.f32 %v3616, %v4003
    %4005 = vmatmul.bf16.gmra.mxu0 %v3565
    %v4006 = vpop.f32.mrf.mxu0
    %v4007 = vadd.f32 %v3616, %v4006
    %v4008 = vpop.f32.mrf.mxu0
    %v4009 = vadd.f32 %v3616, %v4008
    %4010 = vmatmul.bf16.gmra.mxu0 %v3567
    %v4011 = vpop.f32.mrf.mxu0
    %v4012 = vadd.f32 %v3616, %v4011
    %v4013 = vpop.f32.mrf.mxu0
    %v4014 = vadd.f32 %v3616, %v4013
    %4015 = vmatmul.bf16.gmra.mxu0 %v3569
    %v4016 = vpop.f32.mrf.mxu0
    %v4017 = vadd.f32 %v3616, %v4016
    %v4018 = vpop.f32.mrf.mxu0
    %v4019 = vadd.f32 %v3616, %v4018
    %4020 = vmatmul.bf16.gmra.mxu0 %v3571
    %v4021 = vpop.f32.mrf.mxu0
    %v4022 = vadd.f32 %v3616, %v4021
    %v4023 = vpop.f32.mrf.mxu0
    %v4024 = vadd.f32 %v3616, %v4023
    %4025 = vmatmul.bf16.gmra.mxu0 %v3573
    %v4026 = vpop.f32.mrf.mxu0
    %v4027 = vadd.f32 %v3616, %v4026
    %v4028 = vpop.f32.mrf.mxu0
    %v4029 = vadd.f32 %v3616, %v4028
    %4030 = vmatmul.bf16.gmra.mxu0 %v3575
    %v4031 = vpop.f32.mrf.mxu0
    %v4032 = vadd.f32 %v3616, %v4031
    %v4033 = vpop.f32.mrf.mxu0
    %v4034 = vadd.f32 %v3616, %v4033
    %4035 = vmatmul.bf16.gmra.mxu0 %v3577
    %v4036 = vpop.f32.mrf.mxu0
    %v4037 = vadd.f32 %v3616, %v4036
    %v4038 = vpop.f32.mrf.mxu0
    %v4039 = vadd.f32 %v3616, %v4038
    %4040 = vmatmul.bf16.gmra.mxu0 %v3579
    %v4041 = vpop.f32.mrf.mxu0
    %v4042 = vadd.f32 %v3616, %v4041
    %v4043 = vpop.f32.mrf.mxu0
    %v4044 = vadd.f32 %v3616, %v4043
    %4045 = vdwg.mxu0
    %4046 = vmatpush.bf16.msra.mxu0 %v3746
    %4047 = vmatpush.bf16.msra.mxu0 %v3744
    %4048 = vmatpush.bf16.msra.mxu0 %v3742
    %4049 = vmatpush.bf16.msra.mxu0 %v3740
    %4050 = vmatpush.bf16.msra.mxu0 %v3738
    %4051 = vmatpush.bf16.msra.mxu0 %v3736
    %4052 = vmatpush.bf16.msra.mxu0 %v3734
    %4053 = vmatpush.bf16.msra.mxu0 %v3732
    %4054 = vmatmul.bf16.gmra.mxu0 %v3550
    %v4055 = vpop.f32.mrf.mxu0
    %v4056 = vadd.f32 %v3967, %v4055
    %v4057 = vpop.f32.mrf.mxu0
    %v4058 = vadd.f32 %v3969, %v4057
    %4059 = vmatmul.bf16.gmra.mxu0 %v3552
    %v4060 = vpop.f32.mrf.mxu0
    %v4061 = vadd.f32 %v3972, %v4060
    %v4062 = vpop.f32.mrf.mxu0
    %v4063 = vadd.f32 %v3974, %v4062
    %4064 = vmatmul.bf16.gmra.mxu0 %v3554
    %v4065 = vpop.f32.mrf.mxu0
    %v4066 = vadd.f32 %v3977, %v4065
    %v4067 = vpop.f32.mrf.mxu0
    %v4068 = vadd.f32 %v3979, %v4067
    %4069 = vmatmul.bf16.gmra.mxu0 %v3556
    %v4070 = vpop.f32.mrf.mxu0
    %v4071 = vadd.f32 %v3982, %v4070
    %v4072 = vpop.f32.mrf.mxu0
    %v4073 = vadd.f32 %v3984, %v4072
    %4074 = vmatmul.bf16.gmra.mxu0 %v3558
    %v4075 = vpop.f32.mrf.mxu0
    %v4076 = vadd.f32 %v3987, %v4075
    %v4077 = vpop.f32.mrf.mxu0
    %v4078 = vadd.f32 %v3989, %v4077
    %4079 = vmatmul.bf16.gmra.mxu0 %v3560
    %v4080 = vpop.f32.mrf.mxu0
    %v4081 = vadd.f32 %v3992, %v4080
    %v4082 = vpop.f32.mrf.mxu0
    %v4083 = vadd.f32 %v3994, %v4082
    %4084 = vmatmul.bf16.gmra.mxu0 %v3562
    %v4085 = vpop.f32.mrf.mxu0
    %v4086 = vadd.f32 %v3997, %v4085
    %v4087 = vpop.f32.mrf.mxu0
    %v4088 = vadd.f32 %v3999, %v4087
    %4089 = vmatmul.bf16.gmra.mxu0 %v3564
    %v4090 = vpop.f32.mrf.mxu0
    %v4091 = vadd.f32 %v4002, %v4090
    %v4092 = vpop.f32.mrf.mxu0
    %v4093 = vadd.f32 %v4004, %v4092
    %4094 = vmatmul.bf16.gmra.mxu0 %v3566
    %v4095 = vpop.f32.mrf.mxu0
    %v4096 = vadd.f32 %v4007, %v4095
    %v4097 = vpop.f32.mrf.mxu0
    %v4098 = vadd.f32 %v4009, %v4097
    %4099 = vmatmul.bf16.gmra.mxu0 %v3568
    %v4100 = vpop.f32.mrf.mxu0
    %v4101 = vadd.f32 %v4012, %v4100
    %v4102 = vpop.f32.mrf.mxu0
    %v4103 = vadd.f32 %v4014, %v4102
    %4104 = vmatmul.bf16.gmra.mxu0 %v3570
    %v4105 = vpop.f32.mrf.mxu0
    %v4106 = vadd.f32 %v4017, %v4105
    %v4107 = vpop.f32.mrf.mxu0
    %v4108 = vadd.f32 %v4019, %v4107
    %4109 = vmatmul.bf16.gmra.mxu0 %v3572
    %v4110 = vpop.f32.mrf.mxu0
    %v4111 = vadd.f32 %v4022, %v4110
    %v4112 = vpop.f32.mrf.mxu0
    %v4113 = vadd.f32 %v4024, %v4112
    %4114 = vmatmul.bf16.gmra.mxu0 %v3574
    %v4115 = vpop.f32.mrf.mxu0
    %v4116 = vadd.f32 %v4027, %v4115
    %v4117 = vpop.f32.mrf.mxu0
    %v4118 = vadd.f32 %v4029, %v4117
    %4119 = vmatmul.bf16.gmra.mxu0 %v3576
    %v4120 = vpop.f32.mrf.mxu0
    %v4121 = vadd.f32 %v4032, %v4120
    %v4122 = vpop.f32.mrf.mxu0
    %v4123 = vadd.f32 %v4034, %v4122
    %4124 = vmatmul.bf16.gmra.mxu0 %v3578
    %v4125 = vpop.f32.mrf.mxu0
    %v4126 = vadd.f32 %v4037, %v4125
    %v4127 = vpop.f32.mrf.mxu0
    %v4128 = vadd.f32 %v4039, %v4127
    %4129 = vmatmul.bf16.gmra.mxu0 %v3580
    %v4130 = vpop.f32.mrf.mxu0
    %v4131 = vadd.f32 %v4042, %v4130
    %v4132 = vpop.f32.mrf.mxu0
    %v4133 = vadd.f32 %v4044, %v4132
    %4134 = vdwg.mxu0
    %v4135 = vmax.f32 %v3878, 0.0
    %v4136 = vmax.f32 %v4056, 0.0
    %v4137 = vmax.f32 %v3880, 0.0
    %v4138 = vmax.f32 %v4058, 0.0
    %v4139 = vmax.f32 %v3883, 0.0
    %v4140 = vmax.f32 %v4061, 0.0
    %v4141 = vmax.f32 %v3885, 0.0
    %v4142 = vmax.f32 %v4063, 0.0
    %v4143 = vmax.f32 %v3888, 0.0
    %v4144 = vmax.f32 %v4066, 0.0
    %v4145 = vmax.f32 %v3890, 0.0
    %v4146 = vmax.f32 %v4068, 0.0
    %v4147 = vmax.f32 %v3893, 0.0
    %v4148 = vmax.f32 %v4071, 0.0
    %v4149 = vmax.f32 %v3895, 0.0
    %v4150 = vmax.f32 %v4073, 0.0
    %v4151 = vmax.f32 %v3898, 0.0
    %v4152 = vmax.f32 %v4076, 0.0
    %v4153 = vmax.f32 %v3900, 0.0
    %v4154 = vmax.f32 %v4078, 0.0
    %v4155 = vmax.f32 %v3903, 0.0
    %v4156 = vmax.f32 %v4081, 0.0
    %v4157 = vmax.f32 %v3905, 0.0
    %v4158 = vmax.f32 %v4083, 0.0
    %v4159 = vmax.f32 %v3908, 0.0
    %v4160 = vmax.f32 %v4086, 0.0
    %v4161 = vmax.f32 %v3910, 0.0
    %v4162 = vmax.f32 %v4088, 0.0
    %v4163 = vmax.f32 %v3913, 0.0
    %v4164 = vmax.f32 %v4091, 0.0
    %v4165 = vmax.f32 %v3915, 0.0
    %v4166 = vmax.f32 %v4093, 0.0
    %v4167 = vmax.f32 %v3918, 0.0
    %v4168 = vmax.f32 %v4096, 0.0
    %v4169 = vmax.f32 %v3920, 0.0
    %v4170 = vmax.f32 %v4098, 0.0
    %v4171 = vmax.f32 %v3923, 0.0
    %v4172 = vmax.f32 %v4101, 0.0
    %v4173 = vmax.f32 %v3925, 0.0
    %v4174 = vmax.f32 %v4103, 0.0
    %v4175 = vmax.f32 %v3928, 0.0
    %v4176 = vmax.f32 %v4106, 0.0
    %v4177 = vmax.f32 %v3930, 0.0
    %v4178 = vmax.f32 %v4108, 0.0
    %v4179 = vmax.f32 %v3933, 0.0
    %v4180 = vmax.f32 %v4111, 0.0
    %v4181 = vmax.f32 %v3935, 0.0
    %v4182 = vmax.f32 %v4113, 0.0
    %v4183 = vmax.f32 %v3938, 0.0
    %v4184 = vmax.f32 %v4116, 0.0
    %v4185 = vmax.f32 %v3940, 0.0
    %v4186 = vmax.f32 %v4118, 0.0
    %v4187 = vmax.f32 %v3943, 0.0
    %v4188 = vmax.f32 %v4121, 0.0
    %v4189 = vmax.f32 %v3945, 0.0
    %v4190 = vmax.f32 %v4123, 0.0
    %v4191 = vmax.f32 %v3948, 0.0
    %v4192 = vmax.f32 %v4126, 0.0
    %v4193 = vmax.f32 %v3950, 0.0
    %v4194 = vmax.f32 %v4128, 0.0
    %v4195 = vmax.f32 %v3953, 0.0
    %v4196 = vmax.f32 %v4131, 0.0
    %v4197 = vmax.f32 %v3955, 0.0
    %v4198 = vmax.f32 %v4133, 0.0
    %v4199 = vpack.c.bf16 %v4137, %v4135
    %v4200 = vpack.c.bf16 %v4138, %v4136
    %v4201 = vpack.c.bf16 %v4141, %v4139
    %v4202 = vpack.c.bf16 %v4142, %v4140
    %v4203 = vpack.c.bf16 %v4145, %v4143
    %v4204 = vpack.c.bf16 %v4146, %v4144
    %v4205 = vpack.c.bf16 %v4149, %v4147
    %v4206 = vpack.c.bf16 %v4150, %v4148
    %v4207 = vpack.c.bf16 %v4153, %v4151
    %v4208 = vpack.c.bf16 %v4154, %v4152
    %v4209 = vpack.c.bf16 %v4157, %v4155
    %v4210 = vpack.c.bf16 %v4158, %v4156
    %v4211 = vpack.c.bf16 %v4161, %v4159
    %v4212 = vpack.c.bf16 %v4162, %v4160
    %v4213 = vpack.c.bf16 %v4165, %v4163
    %v4214 = vpack.c.bf16 %v4166, %v4164
    %v4215 = vpack.c.bf16 %v4169, %v4167
    %v4216 = vpack.c.bf16 %v4170, %v4168
    %v4217 = vpack.c.bf16 %v4173, %v4171
    %v4218 = vpack.c.bf16 %v4174, %v4172
    %v4219 = vpack.c.bf16 %v4177, %v4175
    %v4220 = vpack.c.bf16 %v4178, %v4176
    %v4221 = vpack.c.bf16 %v4181, %v4179
    %v4222 = vpack.c.bf16 %v4182, %v4180
    %v4223 = vpack.c.bf16 %v4185, %v4183
    %v4224 = vpack.c.bf16 %v4186, %v4184
    %v4225 = vpack.c.bf16 %v4189, %v4187
    %v4226 = vpack.c.bf16 %v4190, %v4188
    %v4227 = vpack.c.bf16 %v4193, %v4191
    %v4228 = vpack.c.bf16 %v4194, %v4192
    %v4229 = vpack.c.bf16 %v4197, %v4195
    %v4230 = vpack.c.bf16 %v4198, %v4196
    %v4231 = vld [vmem:[#allocation8] sm:$0xf]
    %v4232 = vld [vmem:[#allocation8 + $0x4] sm:$0xf]
    %v4233 = vld [vmem:[#allocation8 + $0x8] sm:$0xf]
    %v4234 = vld [vmem:[#allocation8 + $0xc] sm:$0xf]
    %v4235 = vld [vmem:[#allocation8 + $0x10] sm:$0xf]
    %v4236 = vld [vmem:[#allocation8 + $0x14] sm:$0xf]
    %v4237 = vld [vmem:[#allocation8 + $0x18] sm:$0xf]
    %v4238 = vld [vmem:[#allocation8 + $0x1c] sm:$0xf]
    %v4239 = vld [vmem:[#allocation8 + $0x20] sm:$0xf]
    %v4240 = vld [vmem:[#allocation8 + $0x24] sm:$0xf]
    %v4241 = vld [vmem:[#allocation8 + $0x28] sm:$0xf]
    %v4242 = vld [vmem:[#allocation8 + $0x2c] sm:$0xf]
    %v4243 = vld [vmem:[#allocation8 + $0x30] sm:$0xf]
    %v4244 = vld [vmem:[#allocation8 + $0x34] sm:$0xf]
    %v4245 = vld [vmem:[#allocation8 + $0x38] sm:$0xf]
    %v4246 = vld [vmem:[#allocation8 + $0x3c] sm:$0xf]
    %v4247 = vld [vmem:[#allocation8 + $0x40] sm:$0xf]
    %v4248 = vld [vmem:[#allocation8 + $0x44] sm:$0xf]
    %v4249 = vld [vmem:[#allocation8 + $0x48] sm:$0xf]
    %v4250 = vld [vmem:[#allocation8 + $0x4c] sm:$0xf]
    %v4251 = vld [vmem:[#allocation8 + $0x50] sm:$0xf]
    %v4252 = vld [vmem:[#allocation8 + $0x54] sm:$0xf]
    %v4253 = vld [vmem:[#allocation8 + $0x58] sm:$0xf]
    %v4254 = vld [vmem:[#allocation8 + $0x5c] sm:$0xf]
    %v4255 = vld [vmem:[#allocation8 + $0x60] sm:$0xf]
    %v4256 = vld [vmem:[#allocation8 + $0x64] sm:$0xf]
    %v4257 = vld [vmem:[#allocation8 + $0x68] sm:$0xf]
    %v4258 = vld [vmem:[#allocation8 + $0x6c] sm:$0xf]
    %v4259 = vld [vmem:[#allocation8 + $0x70] sm:$0xf]
    %v4260 = vld [vmem:[#allocation8 + $0x74] sm:$0xf]
    %v4261 = vld [vmem:[#allocation8 + $0x78] sm:$0xf]
    %v4262 = vld [vmem:[#allocation8 + $0x7c] sm:$0xf]
    %v4263 = vld [vmem:[%s13] sm:$0x1]
    %v4265 = vperm.slane %v4263, 0
    %v4299 = vunpack.c.l.b16 %v4231
    %v4300 = vunpack.c.l.b16 %v4232
    %v4301 = vunpack.c.l.b16 %v4233
    %v4302 = vunpack.c.l.b16 %v4234
    %v4303 = vunpack.c.l.b16 %v4235
    %v4304 = vunpack.c.l.b16 %v4236
    %v4305 = vunpack.c.l.b16 %v4237
    %v4306 = vunpack.c.l.b16 %v4238
    %v4307 = vunpack.c.l.b16 %v4239
    %v4308 = vunpack.c.l.b16 %v4240
    %v4309 = vunpack.c.l.b16 %v4241
    %v4310 = vunpack.c.l.b16 %v4242
    %v4311 = vunpack.c.l.b16 %v4243
    %v4312 = vunpack.c.l.b16 %v4244
    %v4313 = vunpack.c.l.b16 %v4245
    %v4314 = vunpack.c.l.b16 %v4246
    %v4315 = vunpack.c.l.b16 %v4247
    %v4316 = vunpack.c.l.b16 %v4248
    %v4317 = vunpack.c.l.b16 %v4249
    %v4318 = vunpack.c.l.b16 %v4250
    %v4319 = vunpack.c.l.b16 %v4251
    %v4320 = vunpack.c.l.b16 %v4252
    %v4321 = vunpack.c.l.b16 %v4253
    %v4322 = vunpack.c.l.b16 %v4254
    %v4323 = vunpack.c.l.b16 %v4255
    %v4324 = vunpack.c.l.b16 %v4256
    %v4325 = vunpack.c.l.b16 %v4257
    %v4326 = vunpack.c.l.b16 %v4258
    %v4327 = vunpack.c.l.b16 %v4259
    %v4328 = vunpack.c.l.b16 %v4260
    %v4329 = vunpack.c.l.b16 %v4261
    %v4330 = vunpack.c.l.b16 %v4262
    %v4331 = vpack.c.b16 %v4300, %v4299
    %v4332 = vpack.c.b16 %v4302, %v4301
    %v4333 = vpack.c.b16 %v4304, %v4303
    %v4334 = vpack.c.b16 %v4306, %v4305
    %v4335 = vpack.c.b16 %v4308, %v4307
    %v4336 = vpack.c.b16 %v4310, %v4309
    %v4337 = vpack.c.b16 %v4312, %v4311
    %v4338 = vpack.c.b16 %v4314, %v4313
    %v4339 = vpack.c.b16 %v4316, %v4315
    %v4340 = vpack.c.b16 %v4318, %v4317
    %v4341 = vpack.c.b16 %v4320, %v4319
    %v4342 = vpack.c.b16 %v4322, %v4321
    %v4343 = vpack.c.b16 %v4324, %v4323
    %v4344 = vpack.c.b16 %v4326, %v4325
    %v4345 = vpack.c.b16 %v4328, %v4327
    %v4346 = vpack.c.b16 %v4330, %v4329
    %4363 = vmatpush.bf16.msra.mxu0 %v4338
    %4364 = vmatpush.bf16.msra.mxu0 %v4337
    %4365 = vmatpush.bf16.msra.mxu0 %v4336
    %4366 = vmatpush.bf16.msra.mxu0 %v4335
    %4367 = vmatpush.bf16.msra.mxu0 %v4334
    %4368 = vmatpush.bf16.msra.mxu0 %v4333
    %4369 = vmatpush.bf16.msra.mxu0 %v4332
    %4370 = vmatpush.bf16.msra.mxu0 %v4331
    %4371 = vmatmul.bf16.gmra.mxu0 %v4199
    %v4372 = vpop.f32.mrf.mxu0
    %v4373 = vadd.f32 %v4265, %v4372
    %v4374 = vpop.f32.mrf.mxu0
    %v4375 = vadd.f32 %v4265, %v4374
    %4376 = vmatmul.bf16.gmra.mxu0 %v4201
    %v4377 = vpop.f32.mrf.mxu0
    %v4378 = vadd.f32 %v4265, %v4377
    %v4379 = vpop.f32.mrf.mxu0
    %v4380 = vadd.f32 %v4265, %v4379
    %4381 = vmatmul.bf16.gmra.mxu0 %v4203
    %v4382 = vpop.f32.mrf.mxu0
    %v4383 = vadd.f32 %v4265, %v4382
    %v4384 = vpop.f32.mrf.mxu0
    %v4385 = vadd.f32 %v4265, %v4384
    %4386 = vmatmul.bf16.gmra.mxu0 %v4205
    %v4387 = vpop.f32.mrf.mxu0
    %v4388 = vadd.f32 %v4265, %v4387
    %v4389 = vpop.f32.mrf.mxu0
    %v4390 = vadd.f32 %v4265, %v4389
    %4391 = vmatmul.bf16.gmra.mxu0 %v4207
    %v4392 = vpop.f32.mrf.mxu0
    %v4393 = vadd.f32 %v4265, %v4392
    %v4394 = vpop.f32.mrf.mxu0
    %v4395 = vadd.f32 %v4265, %v4394
    %4396 = vmatmul.bf16.gmra.mxu0 %v4209
    %v4397 = vpop.f32.mrf.mxu0
    %v4398 = vadd.f32 %v4265, %v4397
    %v4399 = vpop.f32.mrf.mxu0
    %v4400 = vadd.f32 %v4265, %v4399
    %4401 = vmatmul.bf16.gmra.mxu0 %v4211
    %v4402 = vpop.f32.mrf.mxu0
    %v4403 = vadd.f32 %v4265, %v4402
    %v4404 = vpop.f32.mrf.mxu0
    %v4405 = vadd.f32 %v4265, %v4404
    %4406 = vmatmul.bf16.gmra.mxu0 %v4213
    %v4407 = vpop.f32.mrf.mxu0
    %v4408 = vadd.f32 %v4265, %v4407
    %v4409 = vpop.f32.mrf.mxu0
    %v4410 = vadd.f32 %v4265, %v4409
    %4411 = vmatmul.bf16.gmra.mxu0 %v4215
    %v4412 = vpop.f32.mrf.mxu0
    %v4413 = vadd.f32 %v4265, %v4412
    %v4414 = vpop.f32.mrf.mxu0
    %v4415 = vadd.f32 %v4265, %v4414
    %4416 = vmatmul.bf16.gmra.mxu0 %v4217
    %v4417 = vpop.f32.mrf.mxu0
    %v4418 = vadd.f32 %v4265, %v4417
    %v4419 = vpop.f32.mrf.mxu0
    %v4420 = vadd.f32 %v4265, %v4419
    %4421 = vmatmul.bf16.gmra.mxu0 %v4219
    %v4422 = vpop.f32.mrf.mxu0
    %v4423 = vadd.f32 %v4265, %v4422
    %v4424 = vpop.f32.mrf.mxu0
    %v4425 = vadd.f32 %v4265, %v4424
    %4426 = vmatmul.bf16.gmra.mxu0 %v4221
    %v4427 = vpop.f32.mrf.mxu0
    %v4428 = vadd.f32 %v4265, %v4427
    %v4429 = vpop.f32.mrf.mxu0
    %v4430 = vadd.f32 %v4265, %v4429
    %4431 = vmatmul.bf16.gmra.mxu0 %v4223
    %v4432 = vpop.f32.mrf.mxu0
    %v4433 = vadd.f32 %v4265, %v4432
    %v4434 = vpop.f32.mrf.mxu0
    %v4435 = vadd.f32 %v4265, %v4434
    %4436 = vmatmul.bf16.gmra.mxu0 %v4225
    %v4437 = vpop.f32.mrf.mxu0
    %v4438 = vadd.f32 %v4265, %v4437
    %v4439 = vpop.f32.mrf.mxu0
    %v4440 = vadd.f32 %v4265, %v4439
    %4441 = vmatmul.bf16.gmra.mxu0 %v4227
    %v4442 = vpop.f32.mrf.mxu0
    %v4443 = vadd.f32 %v4265, %v4442
    %v4444 = vpop.f32.mrf.mxu0
    %v4445 = vadd.f32 %v4265, %v4444
    %4446 = vmatmul.bf16.gmra.mxu0 %v4229
    %v4447 = vpop.f32.mrf.mxu0
    %v4448 = vadd.f32 %v4265, %v4447
    %v4449 = vpop.f32.mrf.mxu0
    %v4450 = vadd.f32 %v4265, %v4449
    %4451 = vdwg.mxu0
    %4452 = vmatpush.bf16.msra.mxu0 %v4346
    %4453 = vmatpush.bf16.msra.mxu0 %v4345
    %4454 = vmatpush.bf16.msra.mxu0 %v4344
    %4455 = vmatpush.bf16.msra.mxu0 %v4343
    %4456 = vmatpush.bf16.msra.mxu0 %v4342
    %4457 = vmatpush.bf16.msra.mxu0 %v4341
    %4458 = vmatpush.bf16.msra.mxu0 %v4340
    %4459 = vmatpush.bf16.msra.mxu0 %v4339
    %4460 = vmatmul.bf16.gmra.mxu0 %v4200
    %v4461 = vpop.f32.mrf.mxu0
    %v4462 = vadd.f32 %v4373, %v4461
    %v4463 = vpop.f32.mrf.mxu0
    %v4464 = vadd.f32 %v4375, %v4463
    %4465 = vmatmul.bf16.gmra.mxu0 %v4202
    %v4466 = vpop.f32.mrf.mxu0
    %v4467 = vadd.f32 %v4378, %v4466
    %v4468 = vpop.f32.mrf.mxu0
    %v4469 = vadd.f32 %v4380, %v4468
    %4470 = vmatmul.bf16.gmra.mxu0 %v4204
    %v4471 = vpop.f32.mrf.mxu0
    %v4472 = vadd.f32 %v4383, %v4471
    %v4473 = vpop.f32.mrf.mxu0
    %v4474 = vadd.f32 %v4385, %v4473
    %4475 = vmatmul.bf16.gmra.mxu0 %v4206
    %v4476 = vpop.f32.mrf.mxu0
    %v4477 = vadd.f32 %v4388, %v4476
    %v4478 = vpop.f32.mrf.mxu0
    %v4479 = vadd.f32 %v4390, %v4478
    %4480 = vmatmul.bf16.gmra.mxu0 %v4208
    %v4481 = vpop.f32.mrf.mxu0
    %v4482 = vadd.f32 %v4393, %v4481
    %v4483 = vpop.f32.mrf.mxu0
    %v4484 = vadd.f32 %v4395, %v4483
    %4485 = vmatmul.bf16.gmra.mxu0 %v4210
    %v4486 = vpop.f32.mrf.mxu0
    %v4487 = vadd.f32 %v4398, %v4486
    %v4488 = vpop.f32.mrf.mxu0
    %v4489 = vadd.f32 %v4400, %v4488
    %4490 = vmatmul.bf16.gmra.mxu0 %v4212
    %v4491 = vpop.f32.mrf.mxu0
    %v4492 = vadd.f32 %v4403, %v4491
    %v4493 = vpop.f32.mrf.mxu0
    %v4494 = vadd.f32 %v4405, %v4493
    %4495 = vmatmul.bf16.gmra.mxu0 %v4214
    %v4496 = vpop.f32.mrf.mxu0
    %v4497 = vadd.f32 %v4408, %v4496
    %v4498 = vpop.f32.mrf.mxu0
    %v4499 = vadd.f32 %v4410, %v4498
    %4500 = vmatmul.bf16.gmra.mxu0 %v4216
    %v4501 = vpop.f32.mrf.mxu0
    %v4502 = vadd.f32 %v4413, %v4501
    %v4503 = vpop.f32.mrf.mxu0
    %v4504 = vadd.f32 %v4415, %v4503
    %4505 = vmatmul.bf16.gmra.mxu0 %v4218
    %v4506 = vpop.f32.mrf.mxu0
    %v4507 = vadd.f32 %v4418, %v4506
    %v4508 = vpop.f32.mrf.mxu0
    %v4509 = vadd.f32 %v4420, %v4508
    %4510 = vmatmul.bf16.gmra.mxu0 %v4220
    %v4511 = vpop.f32.mrf.mxu0
    %v4512 = vadd.f32 %v4423, %v4511
    %v4513 = vpop.f32.mrf.mxu0
    %v4514 = vadd.f32 %v4425, %v4513
    %4515 = vmatmul.bf16.gmra.mxu0 %v4222
    %v4516 = vpop.f32.mrf.mxu0
    %v4517 = vadd.f32 %v4428, %v4516
    %v4518 = vpop.f32.mrf.mxu0
    %v4519 = vadd.f32 %v4430, %v4518
    %4520 = vmatmul.bf16.gmra.mxu0 %v4224
    %v4521 = vpop.f32.mrf.mxu0
    %v4522 = vadd.f32 %v4433, %v4521
    %v4523 = vpop.f32.mrf.mxu0
    %v4524 = vadd.f32 %v4435, %v4523
    %4525 = vmatmul.bf16.gmra.mxu0 %v4226
    %v4526 = vpop.f32.mrf.mxu0
    %v4527 = vadd.f32 %v4438, %v4526
    %v4528 = vpop.f32.mrf.mxu0
    %v4529 = vadd.f32 %v4440, %v4528
    %4530 = vmatmul.bf16.gmra.mxu0 %v4228
    %v4531 = vpop.f32.mrf.mxu0
    %v4532 = vadd.f32 %v4443, %v4531
    %v4533 = vpop.f32.mrf.mxu0
    %v4534 = vadd.f32 %v4445, %v4533
    %4535 = vmatmul.bf16.gmra.mxu0 %v4230
    %v4536 = vpop.f32.mrf.mxu0
    %v4537 = vadd.f32 %v4448, %v4536
    %v4538 = vpop.f32.mrf.mxu0
    %v4539 = vadd.f32 %v4450, %v4538
    %4540 = vdwg.mxu0
    %4541 = vst [vmem:[#allocation10] sm:$0xff] %v4462
    %4542 = vst [vmem:[#allocation10 + $0x8] sm:$0xff] %v4464
    %4543 = vst [vmem:[#allocation10 + $0x10] sm:$0xff] %v4467
    %4544 = vst [vmem:[#allocation10 + $0x18] sm:$0xff] %v4469
    %4545 = vst [vmem:[#allocation10 + $0x20] sm:$0xff] %v4472
    %4546 = vst [vmem:[#allocation10 + $0x28] sm:$0xff] %v4474
    %4547 = vst [vmem:[#allocation10 + $0x30] sm:$0xff] %v4477
    %4548 = vst [vmem:[#allocation10 + $0x38] sm:$0xff] %v4479
    %4549 = vst [vmem:[#allocation10 + $0x40] sm:$0xff] %v4482
    %4550 = vst [vmem:[#allocation10 + $0x48] sm:$0xff] %v4484
    %4551 = vst [vmem:[#allocation10 + $0x50] sm:$0xff] %v4487
    %4552 = vst [vmem:[#allocation10 + $0x58] sm:$0xff] %v4489
    %4553 = vst [vmem:[#allocation10 + $0x60] sm:$0xff] %v4492
    %4554 = vst [vmem:[#allocation10 + $0x68] sm:$0xff] %v4494
    %4555 = vst [vmem:[#allocation10 + $0x70] sm:$0xff] %v4497
    %4556 = vst [vmem:[#allocation10 + $0x78] sm:$0xff] %v4499
    %4557 = vst [vmem:[#allocation10 + $0x80] sm:$0xff] %v4502
    %4558 = vst [vmem:[#allocation10 + $0x88] sm:$0xff] %v4504
    %4559 = vst [vmem:[#allocation10 + $0x90] sm:$0xff] %v4507
    %4560 = vst [vmem:[#allocation10 + $0x98] sm:$0xff] %v4509
    %4561 = vst [vmem:[#allocation10 + $0xa0] sm:$0xff] %v4512
    %4562 = vst [vmem:[#allocation10 + $0xa8] sm:$0xff] %v4514
    %4563 = vst [vmem:[#allocation10 + $0xb0] sm:$0xff] %v4517
    %4564 = vst [vmem:[#allocation10 + $0xb8] sm:$0xff] %v4519
    %4565 = vst [vmem:[#allocation10 + $0xc0] sm:$0xff] %v4522
    %4566 = vst [vmem:[#allocation10 + $0xc8] sm:$0xff] %v4524
    %4567 = vst [vmem:[#allocation10 + $0xd0] sm:$0xff] %v4527
    %4568 = vst [vmem:[#allocation10 + $0xd8] sm:$0xff] %v4529
    %4569 = vst [vmem:[#allocation10 + $0xe0] sm:$0xff] %v4532
    %4570 = vst [vmem:[#allocation10 + $0xe8] sm:$0xff] %v4534
    %4571 = vst [vmem:[#allocation10 + $0xf0] sm:$0xff] %v4537
    %4572 = vst [vmem:[#allocation10 + $0xf8] sm:$0xff] %v4539
    // Predicated region
    $region74: #{tpu_custom_call.1} parent=1 // pred_check
      _
    $region75: #{tpu_custom_call.1} parent=1 // pred_check_branch
      %4574 = sbr.rel (0) target = $region77
    $region76: #{tpu_custom_call.1} parent=1 // pred_region
      %4576 = vsyncadd [#allocation4], 0
      %s4577 = sshll.u32 [#allocation10], 4
      %s4578 = int_to_ptr.vmem [resolvable:$true] %s4577
      %s4579 = sshll.u32 %s14, 4
      %s4580 = int_to_ptr.hbm [resolvable:$true] %s4579
      %4585 = dma.vmem_to_hbm [thread:$0]  %s4578, 4096, %s4580, [#allocation4], 128, 128, 8
    $region77: #{tpu_custom_call.1} parent=1 // pred_fallthru
      _
    // Predicated region
    $region78: #{tpu_custom_call.1} parent=1 // pred_check
      _
    $region79: #{tpu_custom_call.1} parent=1 // pred_check_branch
      %4587 = sbr.rel (0) target = $region81
    $region80: #{tpu_custom_call.1} parent=1 // pred_region
      %4589 = dma.done [#allocation4], 4096
    $region81: #{tpu_custom_call.1} parent=1 // pred_fallthru
      _
    %4590 = vsyncpa [#allocation3], 1
    %4591 = vsyncpa [#allocation6], 1
    %4592 = vsyncpa [#allocation9], 1
    %4593 = vsyncpa [#allocation4], 1

</llo_original>
